<compile_context>
chip_gen: v6e
topology: v6e:2x2x1
jax: 0.10.0
libtpu: 0.0.40
codegen_flags: <defaults>
</compile_context>

<pallas_src>
import functools

import jax
import jax.numpy as jnp
from jax import lax
from jax.experimental import pallas as pl
from jax.experimental.pallas import tpu as pltpu

LN_EPS = 1e-5  # torch.nn.LayerNorm default


def _layernorm(x, w, b):
    mean = jnp.mean(x, axis=-1, keepdims=True)
    var = jnp.mean((x - mean) ** 2, axis=-1, keepdims=True)
    return (x - mean) * lax.rsqrt(var + LN_EPS) * w + b


def _bf16(a):
    return a.astype(jnp.bfloat16)


# ---------------------------------------------------------------------------
# Kernel 1: transformer stack — one layer per grid step, weights streamed
# ---------------------------------------------------------------------------
def stack_kernel(x0_ref,
                 ln1w_ref, ln1b_ref, ln2w_ref, ln2b_ref,
                 bo_ref, b1_ref, b2_ref,
                 wqkv_ref, wo_ref, w1_ref, w2_ref,
                 x_ref, *, n_head, B, T):
    l = pl.program_id(0)
    N, C = x_ref.shape
    hs = C // n_head
    scale = 1.0 / (hs ** 0.5)

    @pl.when(l == 0)
    def _():
        x_ref[...] = x0_ref[...]          # activation becomes VMEM-resident

    row = lax.broadcasted_iota(jnp.int32, (T, T), 0)
    col = lax.broadcasted_iota(jnp.int32, (T, T), 1)
    causal = (row >= col)[None]            # (1, T, T)

    x = x_ref[...]                         # (N, C) f32

    # ---- causal multi-head self-attention ----
    xn = _layernorm(x, ln1w_ref[pl.ds(l, 1)], ln1b_ref[pl.ds(l, 1)])
    qkv = jnp.dot(_bf16(xn), wqkv_ref[...],
                  preferred_element_type=jnp.float32).reshape(B, T, 3 * C)

    heads = []
    for h in range(n_head):
        qh = qkv[:, :, h * hs:(h + 1) * hs]
        kh = qkv[:, :, C + h * hs:C + (h + 1) * hs]
        vh = qkv[:, :, 2 * C + h * hs:2 * C + (h + 1) * hs]
        s = jnp.einsum('btd,bsd->bts', _bf16(qh), _bf16(kh),
                       preferred_element_type=jnp.float32) * scale
        s = jnp.where(causal, s, -1e30)
        s = s - jnp.max(s, axis=-1, keepdims=True)
        p = jnp.exp(s)
        p = p * pl.reciprocal(jnp.sum(p, axis=-1, keepdims=True), approx=True)
        heads.append(jnp.einsum('bts,bsd->btd', _bf16(p), _bf16(vh),
                                preferred_element_type=jnp.float32))
    # concat heads on the lane axis -> single full-C projection (fills the MXU)
    cat = jnp.concatenate(heads, axis=-1).reshape(N, C)
    sa = (jnp.dot(_bf16(cat), wo_ref[...], preferred_element_type=jnp.float32)
          + bo_ref[pl.ds(l, 1)])
    x = x + sa

    # ---- feed-forward ----
    xn2 = _layernorm(x, ln2w_ref[pl.ds(l, 1)], ln2b_ref[pl.ds(l, 1)])
    hmid = jnp.maximum(
        jnp.dot(_bf16(xn2), w1_ref[...], preferred_element_type=jnp.float32)
        + b1_ref[pl.ds(l, 1)], 0.0)
    x = x + (jnp.dot(_bf16(hmid), w2_ref[...], preferred_element_type=jnp.float32)
             + b2_ref[pl.ds(l, 1)])

    x_ref[...] = x


# ---------------------------------------------------------------------------
# Kernel 2: ln_f -> VAE encode / reparameterize / decode (tiny, f32)
# ---------------------------------------------------------------------------
def vae_kernel(x_ref, eps_ref, lnfw_ref, lnfb_ref,
               fc1w_ref, fc1b_ref, fc2w_ref, fc2b_ref,
               fc3w_ref, fc3b_ref, fc4w_ref, fc4b_ref,
               xvae_ref, muvar_ref):
    z_dim = eps_ref.shape[-1]
    xn = _layernorm(x_ref[...], lnfw_ref[...], lnfb_ref[...])
    h1 = jnp.maximum(
        jnp.dot(xn, fc1w_ref[...], preferred_element_type=jnp.float32)
        + fc1b_ref[...], 0.0)
    muvar = (jnp.dot(h1, fc2w_ref[...], preferred_element_type=jnp.float32)
             + fc2b_ref[...])
    mu = muvar[:, :z_dim]
    logvar = muvar[:, z_dim:]
    z = mu + eps_ref[...] * jnp.exp(0.5 * logvar)
    h3 = jnp.maximum(
        jnp.dot(z, fc3w_ref[...], preferred_element_type=jnp.float32)
        + fc3b_ref[...], 0.0)
    pre = (jnp.dot(h3, fc4w_ref[...], preferred_element_type=jnp.float32)
           + fc4b_ref[...])
    xvae_ref[...] = 1.0 / (1.0 + jnp.exp(-pre))   # exact sigmoid (not approx)
    muvar_ref[...] = muvar                        # lane-contiguous [mu | logvar]


# ---------------------------------------------------------------------------
# Kernel 3: lm_head tiled over vocab (lane-dense output blocks)
# ---------------------------------------------------------------------------
def lm_head_kernel(xv_ref, w_ref, b_ref, out_ref):
    out_ref[...] = (jnp.dot(_bf16(xv_ref[...]), w_ref[...],
                            preferred_element_type=jnp.float32) + b_ref[...])


def _vocab_tile(vocab):
    for t in (512, 256, 128):
        if vocab % t == 0:
            return t
    return vocab


# ---------------------------------------------------------------------------
# Forward wrapper
# ---------------------------------------------------------------------------
def gpt_muse_vae_forward(idx, eps, params, *, n_head, vocab_size, z_dim):
    B, T = idx.shape
    C = params["tok_emb"].shape[-1]
    n_layer = params["ln1w"].shape[0]
    N = B * T

    # Embedding gather + positional add: plain-JAX glue around the kernels.
    x0 = (params["tok_emb"][idx] + params["pos_emb"][:T]).reshape(N, C)

    small_names = ("ln1w", "ln1b", "ln2w", "ln2b", "bo", "b1", "b2")
    small = [params[k] for k in small_names]                       # f32, tiny
    wqkv = _bf16(params["wqkv"])
    wo = _bf16(params["wo"])
    w1 = _bf16(params["w1"])
    w2 = _bf16(params["w2"])

    small_specs = [pl.BlockSpec(p.shape, lambda l: (0, 0)) for p in small]
    big_specs = [
        pl.BlockSpec((None, C, 3 * C), lambda l: (l, 0, 0)),   # wqkv, streamed
        pl.BlockSpec((None, C, C), lambda l: (l, 0, 0)),       # wo
        pl.BlockSpec((None, C, 4 * C), lambda l: (l, 0, 0)),   # w1
        pl.BlockSpec((None, 4 * C, C), lambda l: (l, 0, 0)),   # w2
    ]

    flops_stack = int(n_layer * 2 * N * C * (12 * C + 2 * T))
    bytes_stack = int(n_layer * 12 * C * C * 2 + 8 * N * C
                      + n_layer * 10 * C * 4)
    trans_stack = int(n_layer * n_head * B * T * T + n_layer * 4 * N)

    x_final = pl.pallas_call(
        functools.partial(stack_kernel, n_head=n_head, B=B, T=T),
        out_shape=jax.ShapeDtypeStruct((N, C), jnp.float32),
        grid=(n_layer,),
        in_specs=[pl.BlockSpec((N, C), lambda l: (0, 0))]
                 + small_specs + big_specs,
        out_specs=pl.BlockSpec((N, C), lambda l: (0, 0)),
        compiler_params=pltpu.CompilerParams(
            dimension_semantics=("arbitrary",),
            vmem_limit_bytes=64 * 1024 * 1024),
        cost_estimate=pl.CostEstimate(flops=flops_stack,
                                      transcendentals=trans_stack,
                                      bytes_accessed=bytes_stack),
    )(x0, *small, wqkv, wo, w1, w2)

    # ln_f + VAE (small, grid-less, f32 matmuls for accuracy)
    x_vae, muvar = pl.pallas_call(
        vae_kernel,
        out_shape=(jax.ShapeDtypeStruct((N, C), jnp.float32),
                   jax.ShapeDtypeStruct((N, 2 * z_dim), jnp.float32)),
    )(x_final, eps, params["lnfw"], params["lnfb"],
      params["fc1w"], params["fc1b"], params["fc2w"], params["fc2b"],
      params["fc3w"], params["fc3b"], params["fc4w"], params["fc4b"])

    # lm_head tiled over vocab (lane-dense output), parallel across TCs
    TV = _vocab_tile(vocab_size)
    n_vt = vocab_size // TV
    logits = pl.pallas_call(
        lm_head_kernel,
        out_shape=jax.ShapeDtypeStruct((N, vocab_size), jnp.float32),
        grid=(n_vt,),
        in_specs=[pl.BlockSpec((N, C), lambda v: (0, 0)),
                  pl.BlockSpec((C, TV), lambda v: (0, v)),
                  pl.BlockSpec((1, TV), lambda v: (0, v))],
        out_specs=pl.BlockSpec((N, TV), lambda v: (0, v)),
        compiler_params=pltpu.CompilerParams(
            dimension_semantics=("parallel",),
            vmem_limit_bytes=64 * 1024 * 1024),
        cost_estimate=pl.CostEstimate(
            flops=int(2 * N * C * vocab_size), transcendentals=0,
            bytes_accessed=int(2 * C * vocab_size + 4 * N * vocab_size
                               + 4 * N * C)),
    )(x_vae, _bf16(params["lmw"]), params["lmb"])

    mu = muvar[:, :z_dim]
    logvar = muvar[:, z_dim:]
    return logits.reshape(B, T, vocab_size), mu, logvar


# ---------------------------------------------------------------------------
# Parameter construction (deterministic, matches module __init__ shapes)
# ---------------------------------------------------------------------------
def init_params(key, vocab_size, n_embd, n_head, n_layer, block_size, z_dim):
    C = n_embd
    ks = iter(jax.random.split(key, 32))

    def lin(*shape):  # weights stored (in, out); torch Linear applies x @ W.T
        return jax.random.normal(next(ks), shape, jnp.float32) * 0.02

    return {
        "tok_emb": lin(vocab_size, C),
        "pos_emb": lin(block_size, C),
        "ln1w": jnp.ones((n_layer, C), jnp.float32),
        "ln1b": jnp.zeros((n_layer, C), jnp.float32),
        "wqkv": lin(n_layer, C, 3 * C),            # [q | k | v] fused
        "wo": lin(n_layer, C, C),
        "bo": jnp.zeros((n_layer, C), jnp.float32),
        "ln2w": jnp.ones((n_layer, C), jnp.float32),
        "ln2b": jnp.zeros((n_layer, C), jnp.float32),
        "w1": lin(n_layer, C, 4 * C),
        "b1": jnp.zeros((n_layer, 4 * C), jnp.float32),
        "w2": lin(n_layer, 4 * C, C),
        "b2": jnp.zeros((n_layer, C), jnp.float32),
        "lnfw": jnp.ones((1, C), jnp.float32),
        "lnfb": jnp.zeros((1, C), jnp.float32),
        "fc1w": lin(C, 32), "fc1b": jnp.zeros((1, 32), jnp.float32),
        "fc2w": lin(32, 2 * z_dim),                # [fc21 | fc22] fused
        "fc2b": jnp.zeros((1, 2 * z_dim), jnp.float32),
        "fc3w": lin(z_dim, 64), "fc3b": jnp.zeros((1, 64), jnp.float32),
        "fc4w": lin(64, C), "fc4b": jnp.zeros((1, C), jnp.float32),
        "lmw": lin(C, vocab_size), "lmb": jnp.zeros((1, vocab_size), jnp.float32),
    }


# ---------------------------------------------------------------------------
# Pure-JAX f32 reference (same math / parameterization) for correctness check
# ---------------------------------------------------------------------------
def _ref_forward(idx, eps, params, *, n_head, vocab_size, z_dim):
    B, T = idx.shape
    x = params["tok_emb"][idx] + params["pos_emb"][:T]
    C = x.shape[-1]
    hs = C // n_head
    n_layer = params["ln1w"].shape[0]
    causal = jnp.tril(jnp.ones((T, T), bool))
    for l in range(n_layer):
        xn = _layernorm(x, params["ln1w"][l], params["ln1b"][l])
        qkv = xn @ params["wqkv"][l]
        q, k, v = qkv[..., :C], qkv[..., C:2 * C], qkv[..., 2 * C:]
        q = q.reshape(B, T, n_head, hs)
        k = k.reshape(B, T, n_head, hs)
        v = v.reshape(B, T, n_head, hs)
        wei = jnp.einsum("bthd,bshd->bhts", q, k) / (hs ** 0.5)
        wei = jnp.where(causal[None, None], wei, -jnp.inf)
        wei = jax.nn.softmax(wei, axis=-1)
        out = jnp.einsum("bhts,bshd->bthd", wei, v).reshape(B, T, C)
        x = x + out @ params["wo"][l] + params["bo"][l]
        xn2 = _layernorm(x, params["ln2w"][l], params["ln2b"][l])
        x = x + (jnp.maximum(xn2 @ params["w1"][l] + params["b1"][l], 0.0)
                 @ params["w2"][l] + params["b2"][l])
    xn = _layernorm(x, params["lnfw"][0], params["lnfb"][0]).reshape(B * T, C)
    h1 = jnp.maximum(xn @ params["fc1w"] + params["fc1b"][0], 0.0)
    muvar = h1 @ params["fc2w"] + params["fc2b"][0]
    mu, logvar = muvar[:, :z_dim], muvar[:, z_dim:]
    z = mu + eps * jnp.exp(0.5 * logvar)
    h3 = jnp.maximum(z @ params["fc3w"] + params["fc3b"][0], 0.0)
    x_vae = jax.nn.sigmoid(h3 @ params["fc4w"] + params["fc4b"][0])
    logits = x_vae @ params["lmw"] + params["lmb"][0]
    return logits.reshape(B, T, vocab_size), mu, logvar


if __name__ == "__main__":
    # small but representative, lane-friendly config
    vocab_size = 1024      # -> two 512-lane lm_head tiles
    n_embd = 128
    n_head = 4
    n_layer = 2
    block_size = 32
    z_dim = 8
    B, T = 2, 16

    key = jax.random.PRNGKey(0)
    kp, kidx, keps = jax.random.split(key, 3)
    params = init_params(kp, vocab_size, n_embd, n_head, n_layer, block_size,
                         z_dim)
    idx = jax.random.randint(kidx, (B, T), 0, vocab_size, dtype=jnp.int32)
    eps = jax.random.normal(keps, (B * T, z_dim), jnp.float32)

    logits, mu, logvar = gpt_muse_vae_forward(
        idx, eps, params, n_head=n_head, vocab_size=vocab_size, z_dim=z_dim)
    jax.block_until_ready((logits, mu, logvar))

    # correctness check vs pure-JAX f32 reference (bf16 matmul inputs +
    # approx softmax reciprocal in the kernel -> widened tolerance)
    r_logits, r_mu, r_logvar = _ref_forward(
        idx, eps, params, n_head=n_head, vocab_size=vocab_size, z_dim=z_dim)
    assert jnp.allclose(logits, r_logits, atol=2e-2, rtol=2e-2), "logits mismatch"
    assert jnp.allclose(mu, r_mu, atol=2e-2, rtol=2e-2), "mu mismatch"
    assert jnp.allclose(logvar, r_logvar, atol=2e-2, rtol=2e-2), "logvar mismatch"

    print("KERNEL_OK")
</pallas_src>

<mosaic_0001>
module attributes {stable_mosaic.version = 11 : i64} {
  func.func @stack_kernel(%arg0: i32, %arg1: memref<32x128xf32, #tpu.memory_space<vmem>>, %arg2: memref<2x128xf32, #tpu.memory_space<vmem>>, %arg3: memref<2x128xf32, #tpu.memory_space<vmem>>, %arg4: memref<2x128xf32, #tpu.memory_space<vmem>>, %arg5: memref<2x128xf32, #tpu.memory_space<vmem>>, %arg6: memref<2x128xf32, #tpu.memory_space<vmem>>, %arg7: memref<2x512xf32, #tpu.memory_space<vmem>>, %arg8: memref<2x128xf32, #tpu.memory_space<vmem>>, %arg9: memref<1x128x384xbf16, #tpu.memory_space<vmem>>, %arg10: memref<1x128x128xbf16, #tpu.memory_space<vmem>>, %arg11: memref<1x128x512xbf16, #tpu.memory_space<vmem>>, %arg12: memref<1x512x128xbf16, #tpu.memory_space<vmem>>, %arg13: memref<32x128xf32, #tpu.memory_space<vmem>>) attributes {dimension_semantics = [#tpu.dimension_semantics<arbitrary>], iteration_bounds = array<i64: 2>, scalar_prefetch = 0 : i64, scratch_operands = 0 : i64, tpu.core_type = #tpu.core_type<tc>, window_params = [{pipeline_mode = #tpu.pipeline_mode<synchronous>, transform_indices = @transform_0, window_bounds = array<i64: 32, 128>}, {pipeline_mode = #tpu.pipeline_mode<synchronous>, transform_indices = @transform_1, window_bounds = array<i64: 2, 128>}, {pipeline_mode = #tpu.pipeline_mode<synchronous>, transform_indices = @transform_2, window_bounds = array<i64: 2, 128>}, {pipeline_mode = #tpu.pipeline_mode<synchronous>, transform_indices = @transform_3, window_bounds = array<i64: 2, 128>}, {pipeline_mode = #tpu.pipeline_mode<synchronous>, transform_indices = @transform_4, window_bounds = array<i64: 2, 128>}, {pipeline_mode = #tpu.pipeline_mode<synchronous>, transform_indices = @transform_5, window_bounds = array<i64: 2, 128>}, {pipeline_mode = #tpu.pipeline_mode<synchronous>, transform_indices = @transform_6, window_bounds = array<i64: 2, 512>}, {pipeline_mode = #tpu.pipeline_mode<synchronous>, transform_indices = @transform_7, window_bounds = array<i64: 2, 128>}, {transform_indices = @transform_8, window_bounds = array<i64: 1, 128, 384>}, {transform_indices = @transform_9, window_bounds = array<i64: 1, 128, 128>}, {transform_indices = @transform_10, window_bounds = array<i64: 1, 128, 512>}, {transform_indices = @transform_11, window_bounds = array<i64: 1, 512, 128>}, {pipeline_mode = #tpu.pipeline_mode<synchronous>, transform_indices = @transform_12, window_bounds = array<i64: 32, 128>}]} {
    %c0_i32 = arith.constant 0 : i32
    %0 = arith.cmpi eq, %arg0, %c0_i32 : i32
    %1 = arith.extui %0 : i1 to i32
    %c0_i32_0 = arith.constant 0 : i32
    %2 = arith.cmpi ne, %1, %c0_i32_0 : i32
    scf.if %2 {
      %c0_61 = arith.constant 0 : index
      %c0_62 = arith.constant 0 : index
      %196 = vector.load %arg1[%c0_61, %c0_62] : memref<32x128xf32, #tpu.memory_space<vmem>>, vector<32x128xf32>
      %c0_63 = arith.constant 0 : index
      %c0_64 = arith.constant 0 : index
      %197 = vector.load %arg13[%c0_63, %c0_64] : memref<32x128xf32, #tpu.memory_space<vmem>>, vector<32x128xf32>
      tpu.vector_store %arg13[%c0_63, %c0_64], %196 {strides = array<i32>} : memref<32x128xf32, #tpu.memory_space<vmem>>, vector<32x128xf32>,
    } else {
    }
    %3 = tpu.iota {dimensions = array<i32: 0>} : vector<16x16xi32>
    %4 = tpu.iota {dimensions = array<i32: 1>} : vector<16x16xi32>
    %5 = arith.cmpi sge, %3, %4 : vector<16x16xi32>
    %6 = vector.shape_cast %5 : vector<16x16xi1> to vector<1x16x16xi1>
    %c0 = arith.constant 0 : index
    %c0_1 = arith.constant 0 : index
    %7 = vector.load %arg13[%c0, %c0_1] : memref<32x128xf32, #tpu.memory_space<vmem>>, vector<32x128xf32>
    %8 = arith.index_cast %arg0 : i32 to index
    %c0_2 = arith.constant 0 : index
    %9 = vector.load %arg2[%8, %c0_2] : memref<2x128xf32, #tpu.memory_space<vmem>>, vector<1x128xf32>
    %10 = arith.index_cast %arg0 : i32 to index
    %c0_3 = arith.constant 0 : index
    %11 = vector.load %arg3[%10, %c0_3] : memref<2x128xf32, #tpu.memory_space<vmem>>, vector<1x128xf32>
    %cst = arith.constant dense<0.000000e+00> : vector<32xf32>
    %12 = vector.multi_reduction <add>, %7, %cst [1] : vector<32x128xf32> to vector<32xf32>
    %13 = vector.shape_cast %12 : vector<32xf32> to vector<32x1xf32>
    %cst_4 = arith.constant 1.280000e+02 : f32
    %14 = vector.broadcast %cst_4 : f32 to vector<32x1xf32>
    %15 = arith.divf %13, %14 : vector<32x1xf32>
    %16 = vector.broadcast %15 : vector<32x1xf32> to vector<32x128xf32>
    %17 = arith.subf %7, %16 : vector<32x128xf32>
    %18 = arith.mulf %17, %17 : vector<32x128xf32>
    %cst_5 = arith.constant dense<0.000000e+00> : vector<32xf32>
    %19 = vector.multi_reduction <add>, %18, %cst_5 [1] : vector<32x128xf32> to vector<32xf32>
    %20 = vector.shape_cast %19 : vector<32xf32> to vector<32x1xf32>
    %cst_6 = arith.constant 1.280000e+02 : f32
    %21 = vector.broadcast %cst_6 : f32 to vector<32x1xf32>
    %22 = arith.divf %20, %21 : vector<32x1xf32>
    %23 = vector.broadcast %15 : vector<32x1xf32> to vector<32x128xf32>
    %24 = arith.subf %7, %23 : vector<32x128xf32>
    %cst_7 = arith.constant 9.99999974E-6 : f32
    %25 = vector.broadcast %cst_7 : f32 to vector<32x1xf32>
    %26 = arith.addf %22, %25 : vector<32x1xf32>
    %27 = math.rsqrt %26 : vector<32x1xf32>
    %28 = vector.broadcast %27 : vector<32x1xf32> to vector<32x128xf32>
    %29 = arith.mulf %24, %28 : vector<32x128xf32>
    %30 = vector.broadcast %9 : vector<1x128xf32> to vector<32x128xf32>
    %31 = arith.mulf %29, %30 : vector<32x128xf32>
    %32 = vector.broadcast %11 : vector<1x128xf32> to vector<32x128xf32>
    %33 = arith.addf %31, %32 : vector<32x128xf32>
    %34 = arith.truncf %33 : vector<32x128xf32> to vector<32x128xbf16>
    %c0_8 = arith.constant 0 : index
    %c0_9 = arith.constant 0 : index
    %c0_10 = arith.constant 0 : index
    %35 = vector.load %arg9[%c0_8, %c0_9, %c0_10] : memref<1x128x384xbf16, #tpu.memory_space<vmem>>, vector<1x128x384xbf16>
    %36 = vector.shape_cast %35 : vector<1x128x384xbf16> to vector<128x384xbf16>
    %cst_11 = arith.constant dense<0.000000e+00> : vector<32x384xf32>
    %37 = tpu.matmul %34, %36, %cst_11 {dimension_numbers = #tpu.dot_dimension_numbers<[1], [0], [0], [1], [0, 0, 1, 1], [], []>} : vector<32x128xbf16>, vector<128x384xbf16>, vector<32x384xf32> -> vector<32x384xf32>
    %38 = vector.shape_cast %37 : vector<32x384xf32> to vector<2x16x384xf32>
    %39 = vector.extract_strided_slice %38 {offsets = [0, 0, 0], sizes = [2, 16, 32], strides = [1, 1, 1]} : vector<2x16x384xf32> to vector<2x16x32xf32>
    %40 = vector.extract_strided_slice %38 {offsets = [0, 0, 128], sizes = [2, 16, 32], strides = [1, 1, 1]} : vector<2x16x384xf32> to vector<2x16x32xf32>
    %41 = vector.extract_strided_slice %38 {offsets = [0, 0, 256], sizes = [2, 16, 32], strides = [1, 1, 1]} : vector<2x16x384xf32> to vector<2x16x32xf32>
    %42 = arith.truncf %39 : vector<2x16x32xf32> to vector<2x16x32xbf16>
    %43 = arith.truncf %40 : vector<2x16x32xf32> to vector<2x16x32xbf16>
    "tpu.trace_start"() <{level = 10 : i32, message = "btd,bsd->bts"}> : () -> ()
    %cst_12 = arith.constant dense<0.000000e+00> : vector<2x16x16xf32>
    %44 = tpu.matmul %42, %43, %cst_12 {dimension_numbers = #tpu.dot_dimension_numbers<[2], [2], [1], [1], [0, 0, 0, 1, 1, 1], [0], [0]>} : vector<2x16x32xbf16>, vector<2x16x32xbf16>, vector<2x16x16xf32> -> vector<2x16x16xf32>
    "tpu.trace_stop"() : () -> ()
    %cst_13 = arith.constant 0.176776692 : f32
    %45 = vector.broadcast %cst_13 : f32 to vector<2x16x16xf32>
    %46 = arith.mulf %44, %45 : vector<2x16x16xf32>
    %cst_14 = arith.constant -1.000000e+30 : f32
    %47 = vector.shape_cast %6 : vector<1x16x16xi1> to vector<1x16x16xi1>
    %48 = vector.broadcast %47 : vector<1x16x16xi1> to vector<2x16x16xi1>
    %49 = vector.broadcast %cst_14 : f32 to vector<2x16x16xf32>
    %50 = arith.select %48, %46, %49 : vector<2x16x16xi1>, vector<2x16x16xf32>
    %cst_15 = arith.constant dense<0xFF800000> : vector<2x16xf32>
    %51 = vector.multi_reduction <maximumf>, %50, %cst_15 [2] : vector<2x16x16xf32> to vector<2x16xf32>
    %52 = vector.shape_cast %51 : vector<2x16xf32> to vector<2x16x1xf32>
    %53 = vector.broadcast %52 : vector<2x16x1xf32> to vector<2x16x16xf32>
    %54 = arith.subf %50, %53 : vector<2x16x16xf32>
    %55 = math.exp %54 : vector<2x16x16xf32>
    %cst_16 = arith.constant dense<0.000000e+00> : vector<2x16xf32>
    %56 = vector.multi_reduction <add>, %55, %cst_16 [2] : vector<2x16x16xf32> to vector<2x16xf32>
    %57 = vector.shape_cast %56 : vector<2x16xf32> to vector<2x16x1xf32>
    %58 = tpu.reciprocal %57 {approx = true} : vector<2x16x1xf32> -> vector<2x16x1xf32>
    %59 = vector.broadcast %58 : vector<2x16x1xf32> to vector<2x16x16xf32>
    %60 = arith.mulf %55, %59 : vector<2x16x16xf32>
    %61 = arith.truncf %60 : vector<2x16x16xf32> to vector<2x16x16xbf16>
    %62 = arith.truncf %41 : vector<2x16x32xf32> to vector<2x16x32xbf16>
    "tpu.trace_start"() <{level = 10 : i32, message = "bts,bsd->btd"}> : () -> ()
    %cst_17 = arith.constant dense<0.000000e+00> : vector<2x16x32xf32>
    %63 = tpu.matmul %61, %62, %cst_17 {dimension_numbers = #tpu.dot_dimension_numbers<[2], [1], [1], [2], [0, 0, 0, 1, 1, 2], [0], [0]>} : vector<2x16x16xbf16>, vector<2x16x32xbf16>, vector<2x16x32xf32> -> vector<2x16x32xf32>
    "tpu.trace_stop"() : () -> ()
    %64 = vector.extract_strided_slice %38 {offsets = [0, 0, 32], sizes = [2, 16, 32], strides = [1, 1, 1]} : vector<2x16x384xf32> to vector<2x16x32xf32>
    %65 = vector.extract_strided_slice %38 {offsets = [0, 0, 160], sizes = [2, 16, 32], strides = [1, 1, 1]} : vector<2x16x384xf32> to vector<2x16x32xf32>
    %66 = vector.extract_strided_slice %38 {offsets = [0, 0, 288], sizes = [2, 16, 32], strides = [1, 1, 1]} : vector<2x16x384xf32> to vector<2x16x32xf32>
    %67 = arith.truncf %64 : vector<2x16x32xf32> to vector<2x16x32xbf16>
    %68 = arith.truncf %65 : vector<2x16x32xf32> to vector<2x16x32xbf16>
    "tpu.trace_start"() <{level = 10 : i32, message = "btd,bsd->bts"}> : () -> ()
    %cst_18 = arith.constant dense<0.000000e+00> : vector<2x16x16xf32>
    %69 = tpu.matmul %67, %68, %cst_18 {dimension_numbers = #tpu.dot_dimension_numbers<[2], [2], [1], [1], [0, 0, 0, 1, 1, 1], [0], [0]>} : vector<2x16x32xbf16>, vector<2x16x32xbf16>, vector<2x16x16xf32> -> vector<2x16x16xf32>
    "tpu.trace_stop"() : () -> ()
    %cst_19 = arith.constant 0.176776692 : f32
    %70 = vector.broadcast %cst_19 : f32 to vector<2x16x16xf32>
    %71 = arith.mulf %69, %70 : vector<2x16x16xf32>
    %cst_20 = arith.constant -1.000000e+30 : f32
    %72 = vector.shape_cast %6 : vector<1x16x16xi1> to vector<1x16x16xi1>
    %73 = vector.broadcast %72 : vector<1x16x16xi1> to vector<2x16x16xi1>
    %74 = vector.broadcast %cst_20 : f32 to vector<2x16x16xf32>
    %75 = arith.select %73, %71, %74 : vector<2x16x16xi1>, vector<2x16x16xf32>
    %cst_21 = arith.constant dense<0xFF800000> : vector<2x16xf32>
    %76 = vector.multi_reduction <maximumf>, %75, %cst_21 [2] : vector<2x16x16xf32> to vector<2x16xf32>
    %77 = vector.shape_cast %76 : vector<2x16xf32> to vector<2x16x1xf32>
    %78 = vector.broadcast %77 : vector<2x16x1xf32> to vector<2x16x16xf32>
    %79 = arith.subf %75, %78 : vector<2x16x16xf32>
    %80 = math.exp %79 : vector<2x16x16xf32>
    %cst_22 = arith.constant dense<0.000000e+00> : vector<2x16xf32>
    %81 = vector.multi_reduction <add>, %80, %cst_22 [2] : vector<2x16x16xf32> to vector<2x16xf32>
    %82 = vector.shape_cast %81 : vector<2x16xf32> to vector<2x16x1xf32>
    %83 = tpu.reciprocal %82 {approx = true} : vector<2x16x1xf32> -> vector<2x16x1xf32>
    %84 = vector.broadcast %83 : vector<2x16x1xf32> to vector<2x16x16xf32>
    %85 = arith.mulf %80, %84 : vector<2x16x16xf32>
    %86 = arith.truncf %85 : vector<2x16x16xf32> to vector<2x16x16xbf16>
    %87 = arith.truncf %66 : vector<2x16x32xf32> to vector<2x16x32xbf16>
    "tpu.trace_start"() <{level = 10 : i32, message = "bts,bsd->btd"}> : () -> ()
    %cst_23 = arith.constant dense<0.000000e+00> : vector<2x16x32xf32>
    %88 = tpu.matmul %86, %87, %cst_23 {dimension_numbers = #tpu.dot_dimension_numbers<[2], [1], [1], [2], [0, 0, 0, 1, 1, 2], [0], [0]>} : vector<2x16x16xbf16>, vector<2x16x32xbf16>, vector<2x16x32xf32> -> vector<2x16x32xf32>
    "tpu.trace_stop"() : () -> ()
    %89 = vector.extract_strided_slice %38 {offsets = [0, 0, 64], sizes = [2, 16, 32], strides = [1, 1, 1]} : vector<2x16x384xf32> to vector<2x16x32xf32>
    %90 = vector.extract_strided_slice %38 {offsets = [0, 0, 192], sizes = [2, 16, 32], strides = [1, 1, 1]} : vector<2x16x384xf32> to vector<2x16x32xf32>
    %91 = vector.extract_strided_slice %38 {offsets = [0, 0, 320], sizes = [2, 16, 32], strides = [1, 1, 1]} : vector<2x16x384xf32> to vector<2x16x32xf32>
    %92 = arith.truncf %89 : vector<2x16x32xf32> to vector<2x16x32xbf16>
    %93 = arith.truncf %90 : vector<2x16x32xf32> to vector<2x16x32xbf16>
    "tpu.trace_start"() <{level = 10 : i32, message = "btd,bsd->bts"}> : () -> ()
    %cst_24 = arith.constant dense<0.000000e+00> : vector<2x16x16xf32>
    %94 = tpu.matmul %92, %93, %cst_24 {dimension_numbers = #tpu.dot_dimension_numbers<[2], [2], [1], [1], [0, 0, 0, 1, 1, 1], [0], [0]>} : vector<2x16x32xbf16>, vector<2x16x32xbf16>, vector<2x16x16xf32> -> vector<2x16x16xf32>
    "tpu.trace_stop"() : () -> ()
    %cst_25 = arith.constant 0.176776692 : f32
    %95 = vector.broadcast %cst_25 : f32 to vector<2x16x16xf32>
    %96 = arith.mulf %94, %95 : vector<2x16x16xf32>
    %cst_26 = arith.constant -1.000000e+30 : f32
    %97 = vector.shape_cast %6 : vector<1x16x16xi1> to vector<1x16x16xi1>
    %98 = vector.broadcast %97 : vector<1x16x16xi1> to vector<2x16x16xi1>
    %99 = vector.broadcast %cst_26 : f32 to vector<2x16x16xf32>
    %100 = arith.select %98, %96, %99 : vector<2x16x16xi1>, vector<2x16x16xf32>
    %cst_27 = arith.constant dense<0xFF800000> : vector<2x16xf32>
    %101 = vector.multi_reduction <maximumf>, %100, %cst_27 [2] : vector<2x16x16xf32> to vector<2x16xf32>
    %102 = vector.shape_cast %101 : vector<2x16xf32> to vector<2x16x1xf32>
    %103 = vector.broadcast %102 : vector<2x16x1xf32> to vector<2x16x16xf32>
    %104 = arith.subf %100, %103 : vector<2x16x16xf32>
    %105 = math.exp %104 : vector<2x16x16xf32>
    %cst_28 = arith.constant dense<0.000000e+00> : vector<2x16xf32>
    %106 = vector.multi_reduction <add>, %105, %cst_28 [2] : vector<2x16x16xf32> to vector<2x16xf32>
    %107 = vector.shape_cast %106 : vector<2x16xf32> to vector<2x16x1xf32>
    %108 = tpu.reciprocal %107 {approx = true} : vector<2x16x1xf32> -> vector<2x16x1xf32>
    %109 = vector.broadcast %108 : vector<2x16x1xf32> to vector<2x16x16xf32>
    %110 = arith.mulf %105, %109 : vector<2x16x16xf32>
    %111 = arith.truncf %110 : vector<2x16x16xf32> to vector<2x16x16xbf16>
    %112 = arith.truncf %91 : vector<2x16x32xf32> to vector<2x16x32xbf16>
    "tpu.trace_start"() <{level = 10 : i32, message = "bts,bsd->btd"}> : () -> ()
    %cst_29 = arith.constant dense<0.000000e+00> : vector<2x16x32xf32>
    %113 = tpu.matmul %111, %112, %cst_29 {dimension_numbers = #tpu.dot_dimension_numbers<[2], [1], [1], [2], [0, 0, 0, 1, 1, 2], [0], [0]>} : vector<2x16x16xbf16>, vector<2x16x32xbf16>, vector<2x16x32xf32> -> vector<2x16x32xf32>
    "tpu.trace_stop"() : () -> ()
    %114 = vector.extract_strided_slice %38 {offsets = [0, 0, 96], sizes = [2, 16, 32], strides = [1, 1, 1]} : vector<2x16x384xf32> to vector<2x16x32xf32>
    %115 = vector.extract_strided_slice %38 {offsets = [0, 0, 224], sizes = [2, 16, 32], strides = [1, 1, 1]} : vector<2x16x384xf32> to vector<2x16x32xf32>
    %116 = vector.extract_strided_slice %38 {offsets = [0, 0, 352], sizes = [2, 16, 32], strides = [1, 1, 1]} : vector<2x16x384xf32> to vector<2x16x32xf32>
    %117 = arith.truncf %114 : vector<2x16x32xf32> to vector<2x16x32xbf16>
    %118 = arith.truncf %115 : vector<2x16x32xf32> to vector<2x16x32xbf16>
    "tpu.trace_start"() <{level = 10 : i32, message = "btd,bsd->bts"}> : () -> ()
    %cst_30 = arith.constant dense<0.000000e+00> : vector<2x16x16xf32>
    %119 = tpu.matmul %117, %118, %cst_30 {dimension_numbers = #tpu.dot_dimension_numbers<[2], [2], [1], [1], [0, 0, 0, 1, 1, 1], [0], [0]>} : vector<2x16x32xbf16>, vector<2x16x32xbf16>, vector<2x16x16xf32> -> vector<2x16x16xf32>
    "tpu.trace_stop"() : () -> ()
    %cst_31 = arith.constant 0.176776692 : f32
    %120 = vector.broadcast %cst_31 : f32 to vector<2x16x16xf32>
    %121 = arith.mulf %119, %120 : vector<2x16x16xf32>
    %cst_32 = arith.constant -1.000000e+30 : f32
    %122 = vector.shape_cast %6 : vector<1x16x16xi1> to vector<1x16x16xi1>
    %123 = vector.broadcast %122 : vector<1x16x16xi1> to vector<2x16x16xi1>
    %124 = vector.broadcast %cst_32 : f32 to vector<2x16x16xf32>
    %125 = arith.select %123, %121, %124 : vector<2x16x16xi1>, vector<2x16x16xf32>
    %cst_33 = arith.constant dense<0xFF800000> : vector<2x16xf32>
    %126 = vector.multi_reduction <maximumf>, %125, %cst_33 [2] : vector<2x16x16xf32> to vector<2x16xf32>
    %127 = vector.shape_cast %126 : vector<2x16xf32> to vector<2x16x1xf32>
    %128 = vector.broadcast %127 : vector<2x16x1xf32> to vector<2x16x16xf32>
    %129 = arith.subf %125, %128 : vector<2x16x16xf32>
    %130 = math.exp %129 : vector<2x16x16xf32>
    %cst_34 = arith.constant dense<0.000000e+00> : vector<2x16xf32>
    %131 = vector.multi_reduction <add>, %130, %cst_34 [2] : vector<2x16x16xf32> to vector<2x16xf32>
    %132 = vector.shape_cast %131 : vector<2x16xf32> to vector<2x16x1xf32>
    %133 = tpu.reciprocal %132 {approx = true} : vector<2x16x1xf32> -> vector<2x16x1xf32>
    %134 = vector.broadcast %133 : vector<2x16x1xf32> to vector<2x16x16xf32>
    %135 = arith.mulf %130, %134 : vector<2x16x16xf32>
    %136 = arith.truncf %135 : vector<2x16x16xf32> to vector<2x16x16xbf16>
    %137 = arith.truncf %116 : vector<2x16x32xf32> to vector<2x16x32xbf16>
    "tpu.trace_start"() <{level = 10 : i32, message = "bts,bsd->btd"}> : () -> ()
    %cst_35 = arith.constant dense<0.000000e+00> : vector<2x16x32xf32>
    %138 = tpu.matmul %136, %137, %cst_35 {dimension_numbers = #tpu.dot_dimension_numbers<[2], [1], [1], [2], [0, 0, 0, 1, 1, 2], [0], [0]>} : vector<2x16x16xbf16>, vector<2x16x32xbf16>, vector<2x16x32xf32> -> vector<2x16x32xf32>
    "tpu.trace_stop"() : () -> ()
    %139 = tpu.concatenate %63, %88, %113, %138 in 2 : vector<2x16x32xf32>, vector<2x16x32xf32>, vector<2x16x32xf32>, vector<2x16x32xf32> -> vector<2x16x128xf32>
    %140 = vector.shape_cast %139 : vector<2x16x128xf32> to vector<32x128xf32>
    %141 = arith.truncf %140 : vector<32x128xf32> to vector<32x128xbf16>
    %c0_36 = arith.constant 0 : index
    %c0_37 = arith.constant 0 : index
    %c0_38 = arith.constant 0 : index
    %142 = vector.load %arg10[%c0_36, %c0_37, %c0_38] : memref<1x128x128xbf16, #tpu.memory_space<vmem>>, vector<1x128x128xbf16>
    %143 = vector.shape_cast %142 : vector<1x128x128xbf16> to vector<128x128xbf16>
    %cst_39 = arith.constant dense<0.000000e+00> : vector<32x128xf32>
    %144 = tpu.matmul %141, %143, %cst_39 {dimension_numbers = #tpu.dot_dimension_numbers<[1], [0], [0], [1], [0, 0, 1, 1], [], []>} : vector<32x128xbf16>, vector<128x128xbf16>, vector<32x128xf32> -> vector<32x128xf32>
    %145 = arith.index_cast %arg0 : i32 to index
    %c0_40 = arith.constant 0 : index
    %146 = vector.load %arg6[%145, %c0_40] : memref<2x128xf32, #tpu.memory_space<vmem>>, vector<1x128xf32>
    %147 = vector.broadcast %146 : vector<1x128xf32> to vector<32x128xf32>
    %148 = arith.addf %144, %147 : vector<32x128xf32>
    %149 = arith.addf %7, %148 : vector<32x128xf32>
    %150 = arith.index_cast %arg0 : i32 to index
    %c0_41 = arith.constant 0 : index
    %151 = vector.load %arg4[%150, %c0_41] : memref<2x128xf32, #tpu.memory_space<vmem>>, vector<1x128xf32>
    %152 = arith.index_cast %arg0 : i32 to index
    %c0_42 = arith.constant 0 : index
    %153 = vector.load %arg5[%152, %c0_42] : memref<2x128xf32, #tpu.memory_space<vmem>>, vector<1x128xf32>
    %cst_43 = arith.constant dense<0.000000e+00> : vector<32xf32>
    %154 = vector.multi_reduction <add>, %149, %cst_43 [1] : vector<32x128xf32> to vector<32xf32>
    %155 = vector.shape_cast %154 : vector<32xf32> to vector<32x1xf32>
    %cst_44 = arith.constant 1.280000e+02 : f32
    %156 = vector.broadcast %cst_44 : f32 to vector<32x1xf32>
    %157 = arith.divf %155, %156 : vector<32x1xf32>
    %158 = vector.broadcast %157 : vector<32x1xf32> to vector<32x128xf32>
    %159 = arith.subf %149, %158 : vector<32x128xf32>
    %160 = arith.mulf %159, %159 : vector<32x128xf32>
    %cst_45 = arith.constant dense<0.000000e+00> : vector<32xf32>
    %161 = vector.multi_reduction <add>, %160, %cst_45 [1] : vector<32x128xf32> to vector<32xf32>
    %162 = vector.shape_cast %161 : vector<32xf32> to vector<32x1xf32>
    %cst_46 = arith.constant 1.280000e+02 : f32
    %163 = vector.broadcast %cst_46 : f32 to vector<32x1xf32>
    %164 = arith.divf %162, %163 : vector<32x1xf32>
    %165 = vector.broadcast %157 : vector<32x1xf32> to vector<32x128xf32>
    %166 = arith.subf %149, %165 : vector<32x128xf32>
    %cst_47 = arith.constant 9.99999974E-6 : f32
    %167 = vector.broadcast %cst_47 : f32 to vector<32x1xf32>
    %168 = arith.addf %164, %167 : vector<32x1xf32>
    %169 = math.rsqrt %168 : vector<32x1xf32>
    %170 = vector.broadcast %169 : vector<32x1xf32> to vector<32x128xf32>
    %171 = arith.mulf %166, %170 : vector<32x128xf32>
    %172 = vector.broadcast %151 : vector<1x128xf32> to vector<32x128xf32>
    %173 = arith.mulf %171, %172 : vector<32x128xf32>
    %174 = vector.broadcast %153 : vector<1x128xf32> to vector<32x128xf32>
    %175 = arith.addf %173, %174 : vector<32x128xf32>
    %176 = arith.truncf %175 : vector<32x128xf32> to vector<32x128xbf16>
    %c0_48 = arith.constant 0 : index
    %c0_49 = arith.constant 0 : index
    %c0_50 = arith.constant 0 : index
    %177 = vector.load %arg11[%c0_48, %c0_49, %c0_50] : memref<1x128x512xbf16, #tpu.memory_space<vmem>>, vector<1x128x512xbf16>
    %178 = vector.shape_cast %177 : vector<1x128x512xbf16> to vector<128x512xbf16>
    %cst_51 = arith.constant dense<0.000000e+00> : vector<32x512xf32>
    %179 = tpu.matmul %176, %178, %cst_51 {dimension_numbers = #tpu.dot_dimension_numbers<[1], [0], [0], [1], [0, 0, 1, 1], [], []>} : vector<32x128xbf16>, vector<128x512xbf16>, vector<32x512xf32> -> vector<32x512xf32>
    %180 = arith.index_cast %arg0 : i32 to index
    %c0_52 = arith.constant 0 : index
    %181 = vector.load %arg7[%180, %c0_52] : memref<2x512xf32, #tpu.memory_space<vmem>>, vector<1x512xf32>
    %182 = vector.broadcast %181 : vector<1x512xf32> to vector<32x512xf32>
    %183 = arith.addf %179, %182 : vector<32x512xf32>
    %cst_53 = arith.constant 0.000000e+00 : f32
    %184 = vector.broadcast %cst_53 : f32 to vector<32x512xf32>
    %185 = arith.maximumf %183, %184 : vector<32x512xf32>
    %186 = arith.truncf %185 : vector<32x512xf32> to vector<32x512xbf16>
    %c0_54 = arith.constant 0 : index
    %c0_55 = arith.constant 0 : index
    %c0_56 = arith.constant 0 : index
    %187 = vector.load %arg12[%c0_54, %c0_55, %c0_56] : memref<1x512x128xbf16, #tpu.memory_space<vmem>>, vector<1x512x128xbf16>
    %188 = vector.shape_cast %187 : vector<1x512x128xbf16> to vector<512x128xbf16>
    %cst_57 = arith.constant dense<0.000000e+00> : vector<32x128xf32>
    %189 = tpu.matmul %186, %188, %cst_57 {dimension_numbers = #tpu.dot_dimension_numbers<[1], [0], [0], [1], [0, 0, 1, 1], [], []>} : vector<32x512xbf16>, vector<512x128xbf16>, vector<32x128xf32> -> vector<32x128xf32>
    %190 = arith.index_cast %arg0 : i32 to index
    %c0_58 = arith.constant 0 : index
    %191 = vector.load %arg8[%190, %c0_58] : memref<2x128xf32, #tpu.memory_space<vmem>>, vector<1x128xf32>
    %192 = vector.broadcast %191 : vector<1x128xf32> to vector<32x128xf32>
    %193 = arith.addf %189, %192 : vector<32x128xf32>
    %194 = arith.addf %149, %193 : vector<32x128xf32>
    %c0_59 = arith.constant 0 : index
    %c0_60 = arith.constant 0 : index
    %195 = vector.load %arg13[%c0_59, %c0_60] : memref<32x128xf32, #tpu.memory_space<vmem>>, vector<32x128xf32>
    tpu.vector_store %arg13[%c0_59, %c0_60], %194 {strides = array<i32>} : memref<32x128xf32, #tpu.memory_space<vmem>>, vector<32x128xf32>,
    return
  }
  func.func @transform_0(%arg0: i32) -> (i32, i32) {
    %c0_i32 = arith.constant 0 : i32
    %c0_i32_0 = arith.constant 0 : i32
    %c0_i32_1 = arith.constant 0 : i32
    return %c0_i32, %c0_i32_0 : i32, i32
  }
  func.func @transform_1(%arg0: i32) -> (i32, i32) {
    %c0_i32 = arith.constant 0 : i32
    %c0_i32_0 = arith.constant 0 : i32
    %c0_i32_1 = arith.constant 0 : i32
    return %c0_i32, %c0_i32_0 : i32, i32
  }
  func.func @transform_2(%arg0: i32) -> (i32, i32) {
    %c0_i32 = arith.constant 0 : i32
    %c0_i32_0 = arith.constant 0 : i32
    %c0_i32_1 = arith.constant 0 : i32
    return %c0_i32, %c0_i32_0 : i32, i32
  }
  func.func @transform_3(%arg0: i32) -> (i32, i32) {
    %c0_i32 = arith.constant 0 : i32
    %c0_i32_0 = arith.constant 0 : i32
    %c0_i32_1 = arith.constant 0 : i32
    return %c0_i32, %c0_i32_0 : i32, i32
  }
  func.func @transform_4(%arg0: i32) -> (i32, i32) {
    %c0_i32 = arith.constant 0 : i32
    %c0_i32_0 = arith.constant 0 : i32
    %c0_i32_1 = arith.constant 0 : i32
    return %c0_i32, %c0_i32_0 : i32, i32
  }
  func.func @transform_5(%arg0: i32) -> (i32, i32) {
    %c0_i32 = arith.constant 0 : i32
    %c0_i32_0 = arith.constant 0 : i32
    %c0_i32_1 = arith.constant 0 : i32
    return %c0_i32, %c0_i32_0 : i32, i32
  }
  func.func @transform_6(%arg0: i32) -> (i32, i32) {
    %c0_i32 = arith.constant 0 : i32
    %c0_i32_0 = arith.constant 0 : i32
    %c0_i32_1 = arith.constant 0 : i32
    return %c0_i32, %c0_i32_0 : i32, i32
  }
  func.func @transform_7(%arg0: i32) -> (i32, i32) {
    %c0_i32 = arith.constant 0 : i32
    %c0_i32_0 = arith.constant 0 : i32
    %c0_i32_1 = arith.constant 0 : i32
    return %c0_i32, %c0_i32_0 : i32, i32
  }
  func.func @transform_8(%arg0: i32) -> (i32, i32, i32) {
    %c0_i32 = arith.constant 0 : i32
    %c0_i32_0 = arith.constant 0 : i32
    %c0_i32_1 = arith.constant 0 : i32
    return %arg0, %c0_i32, %c0_i32_0 : i32, i32, i32
  }
  func.func @transform_9(%arg0: i32) -> (i32, i32, i32) {
    %c0_i32 = arith.constant 0 : i32
    %c0_i32_0 = arith.constant 0 : i32
    %c0_i32_1 = arith.constant 0 : i32
    return %arg0, %c0_i32, %c0_i32_0 : i32, i32, i32
  }
  func.func @transform_10(%arg0: i32) -> (i32, i32, i32) {
    %c0_i32 = arith.constant 0 : i32
    %c0_i32_0 = arith.constant 0 : i32
    %c0_i32_1 = arith.constant 0 : i32
    return %arg0, %c0_i32, %c0_i32_0 : i32, i32, i32
  }
  func.func @transform_11(%arg0: i32) -> (i32, i32, i32) {
    %c0_i32 = arith.constant 0 : i32
    %c0_i32_0 = arith.constant 0 : i32
    %c0_i32_1 = arith.constant 0 : i32
    return %arg0, %c0_i32, %c0_i32_0 : i32, i32, i32
  }
  func.func @transform_12(%arg0: i32) -> (i32, i32) {
    %c0_i32 = arith.constant 0 : i32
    %c0_i32_0 = arith.constant 0 : i32
    %c0_i32_1 = arith.constant 0 : i32
    return %c0_i32, %c0_i32_0 : i32, i32
  }
}

</mosaic_0001>

<llo_original>
// kernel: tpu_custom_call.1
$region0: #{tpu_custom_call.1}
  #allocation0 [shape = 'u32[]', space=smem, size = 0x4, offset = 0x4, fixed_abs, tag = 'smem constant byte address 0x4 - core index']
  #allocation1 [shape = 'u32[144,128]{1,0:T(1,128)}', space=vmem, size = 0x12000, scoped, tag = 'internal scratch']
  %s0 = inlined_call_operand.hbm [shape: f32[32,128], index: 0, kind: input, shape index: {}]
  %s1 = inlined_call_operand.hbm [shape: f32[2,128], index: 1, kind: input, shape index: {}]
  %s2 = inlined_call_operand.vmem [shape: f32[2,128], index: 2, kind: input, shape index: {}]
  %s3 = inlined_call_operand.hbm [shape: f32[2,128], index: 3, kind: input, shape index: {}]
  %s4 = inlined_call_operand.hbm [shape: f32[2,128], index: 4, kind: input, shape index: {}]
  %s5 = inlined_call_operand.hbm [shape: f32[2,128], index: 5, kind: input, shape index: {}]
  %s6 = inlined_call_operand.vmem [shape: f32[2,512], index: 6, kind: input, shape index: {}]
  %s7 = inlined_call_operand.vmem [shape: f32[2,128], index: 7, kind: input, shape index: {}]
  %s8 = inlined_call_operand.hbm [shape: bf16[2,128,384], index: 8, kind: input, shape index: {}]
  %s9 = inlined_call_operand.hbm [shape: bf16[2,128,128], index: 9, kind: input, shape index: {}]
  %s10 = inlined_call_operand.hbm [shape: bf16[2,128,512], index: 10, kind: input, shape index: {}]
  %s11 = inlined_call_operand.hbm [shape: bf16[2,512,128], index: 11, kind: input, shape index: {}]
  %s12 = inlined_call_operand.hbm [shape: f32[32,128], index: 12, kind: output, shape index: {}]
  %s13 = sld [smem:[#allocation0]]
  $region121: #{tpu_custom_call.1} parent=0
    _
  %s15 = ssub.s32 1, %s13
  %s16 = scalar_select 0, %s15, %s13
  $region1: #{tpu_custom_call.1} parent=0
    #allocation2 [shape = 'u8[16384]{0}', space=vmem, size = 0x4000, scoped, tag = 'input window, operand 0, single buffered']
    #allocation3 [shape = 's32[2]{0}', space=sflag, size = 0x8, scoped, tag = 'scoped memory for tpu_custom_call.1']
    #allocation4 [shape = 's32[2]{0}', space=sflag, size = 0x8, scoped, tag = 'scoped memory for tpu_custom_call.1']
    #allocation5 [shape = 'u8[1024]{0}', space=vmem, size = 0x400, scoped, tag = 'input window, operand 1, single buffered']
    #allocation6 [shape = 's32[1]{0}', space=sflag, size = 0x4, scoped, tag = 'scoped memory for tpu_custom_call.1']
    #allocation7 [shape = 'u8[1024]{0}', space=vmem, size = 0x400, scoped, tag = 'input window, operand 3, single buffered']
    #allocation8 [shape = 'u8[1024]{0}', space=vmem, size = 0x400, scoped, tag = 'input window, operand 4, single buffered']
    #allocation9 [shape = 's32[1]{0}', space=sflag, size = 0x4, scoped, tag = 'scoped memory for tpu_custom_call.1']
    #allocation10 [shape = 'u8[1024]{0}', space=vmem, size = 0x400, scoped, tag = 'input window, operand 5, single buffered']
    #allocation11 [shape = 'u8[196608]{0}', space=vmem, size = 0x30000, scoped, tag = 'input window, operand 8']
    #allocation12 [shape = 's32[2]{0}', space=sflag, size = 0x8, scoped, tag = 'scoped memory for tpu_custom_call.1']
    #allocation13 [shape = 'u8[65536]{0}', space=vmem, size = 0x10000, scoped, tag = 'input window, operand 9']
    #allocation14 [shape = 'u8[262144]{0}', space=vmem, size = 0x40000, scoped, tag = 'input window, operand 10']
    #allocation15 [shape = 's32[2]{0}', space=sflag, size = 0x8, scoped, tag = 'scoped memory for tpu_custom_call.1']
    #allocation16 [shape = 'u8[262144]{0}', space=vmem, size = 0x40000, scoped, tag = 'input window, operand 11']
    #allocation17 [shape = 'u8[16384]{0}', space=vmem, size = 0x4000, scoped, tag = 'output window, operand 0, single buffered']
    %17 = vsyncpa [#allocation3], 0
    %18 = vsyncpa [#allocation6], 0
    %19 = vsyncpa [#allocation9], 0
    %20 = vsyncpa [#allocation12], 0
    %s21 = scalar_lea.sflag [#allocation12], 1
    %22 = vsyncpa %s21, 0
    %23 = vsyncpa [#allocation15], 0
    %s24 = scalar_lea.sflag [#allocation15], 1
    %25 = vsyncpa %s24, 0
    %26 = vsyncpa [#allocation4], 0
    loop: start=0, step=1, limit=4
    $region2: #{tpu_custom_call.1} parent=1 // loop_pre_header
      _
    $region3: #{tpu_custom_call.1} parent=1 // loop_header
      %s28 = sphi 0, %s32
      %p29 = scmp.ge.s32.totalorder %s28, 4
      %s36 = sphi 0, %s36
      %s38 = sphi 0, %s36
      %s39 = sphi 0, %s38
      %s53 = sphi 0, %s39
      %s57 = sphi 0, %s57
      %s59 = sphi 0, %s57
      %s60 = sphi 0, %s59
      %s74 = sphi 0, %s60
      %s78 = sphi 0, %s78
      %s80 = sphi 0, %s78
      %s81 = sphi 0, %s80
      %s95 = sphi 0, %s81
      %s99 = sphi 0, %s99
      %s101 = sphi 0, %s99
      %s102 = sphi 0, %s101
      %s116 = sphi 0, %s102
      %s120 = sphi 0, %s120
      %s122 = sphi 0, %s120
      %s123 = sphi 0, %s122
      %s137 = sphi 0, %s123
      %s141 = sphi 0, %s141
      %s143 = sphi 0, %s141
      %s144 = sphi 0, %s143
      %s158 = sphi 0, %s144
      %s162 = sphi 0, %s162
      %s164 = sphi 0, %s162
      %s165 = sphi 0, %s164
      %s179 = sphi 0, %s165
      %s183 = sphi 0, %s183
      %s185 = sphi 0, %s183
      %s186 = sphi 0, %s185
      %s200 = sphi 0, %s186
      %s206 = sphi 0, %s208
      %s209 = sphi 0, %s206
      %s210 = sphi 0, %s209
      %s226 = sphi 0, %s210
      %s232 = sphi 0, %s234
      %s235 = sphi 0, %s232
      %s236 = sphi 0, %s235
      %s252 = sphi 0, %s236
      %s258 = sphi 0, %s260
      %s261 = sphi 0, %s258
      %s262 = sphi 0, %s261
      %s278 = sphi 0, %s262
      %s284 = sphi 0, %s286
      %s287 = sphi 0, %s284
      %s288 = sphi 0, %s287
      %s304 = sphi 0, %s288
      %s308 = sphi 0, %s308
      %s310 = sphi 0, %s308
      %s311 = sphi 0, %s310
      %s325 = sphi 0, %s311
    $region4: #{tpu_custom_call.1} parent=1 // loop_header_branch
      %31 = sbr.rel (%p29) target = $region8
    $region5: #{tpu_custom_call.1} parent=1 // loop_body
      %s33 = ssub.s32 %s28, 1
      %s34 = ssub.s32 %s28, 2
      %s35 = sadd.s32 %s28, 1
      %s37 = sadd.s32 %s36, 1
      %p40 = scmp.eq.s32.totalorder %s28, 1
      %p41 = scmp.ne.s32.totalorder %s36, %s38
      %p42 = scmp.eq.s32.totalorder %s28, 0
      %p43 = por %p41, %p42
      %p44 = scmp.ne.s32.totalorder %s36, %s38
      %p45 = scmp.eq.s32.totalorder %s33, 1
      %p46 = por %p44, %p45
      %p47 = scmp.ne.s32.totalorder %s38, %s39
      %p48 = scmp.eq.s32.totalorder %s33, 0
      %p49 = por %p47, %p48
      %p50 = scmp.ne.s32.totalorder %s38, %s39
      %p51 = scmp.eq.s32.totalorder %s34, 1
      %p52 = por %p50, %p51
      %p54 = scmp.ne.s32.totalorder %s39, %s53
      %p55 = scmp.eq.s32.totalorder %s34, 0
      %p56 = por %p54, %p55
      %s58 = sadd.s32 %s57, 1
      %p61 = scmp.eq.s32.totalorder %s28, 1
      %p62 = scmp.ne.s32.totalorder %s57, %s59
      %p63 = scmp.eq.s32.totalorder %s28, 0
      %p64 = por %p62, %p63
      %p65 = scmp.ne.s32.totalorder %s57, %s59
      %p66 = scmp.eq.s32.totalorder %s33, 1
      %p67 = por %p65, %p66
      %p68 = scmp.ne.s32.totalorder %s59, %s60
      %p69 = scmp.eq.s32.totalorder %s33, 0
      %p70 = por %p68, %p69
      %p71 = scmp.ne.s32.totalorder %s59, %s60
      %p72 = scmp.eq.s32.totalorder %s34, 1
      %p73 = por %p71, %p72
      %p75 = scmp.ne.s32.totalorder %s60, %s74
      %p76 = scmp.eq.s32.totalorder %s34, 0
      %p77 = por %p75, %p76
      %s79 = sadd.s32 %s78, 1
      %p82 = scmp.eq.s32.totalorder %s28, 1
      %p83 = scmp.ne.s32.totalorder %s78, %s80
      %p84 = scmp.eq.s32.totalorder %s28, 0
      %p85 = por %p83, %p84
      %p86 = scmp.ne.s32.totalorder %s78, %s80
      %p87 = scmp.eq.s32.totalorder %s33, 1
      %p88 = por %p86, %p87
      %p89 = scmp.ne.s32.totalorder %s80, %s81
      %p90 = scmp.eq.s32.totalorder %s33, 0
      %p91 = por %p89, %p90
      %p92 = scmp.ne.s32.totalorder %s80, %s81
      %p93 = scmp.eq.s32.totalorder %s34, 1
      %p94 = por %p92, %p93
      %p96 = scmp.ne.s32.totalorder %s81, %s95
      %p97 = scmp.eq.s32.totalorder %s34, 0
      %p98 = por %p96, %p97
      %s100 = sadd.s32 %s99, 1
      %p103 = scmp.eq.s32.totalorder %s28, 1
      %p104 = scmp.ne.s32.totalorder %s99, %s101
      %p105 = scmp.eq.s32.totalorder %s28, 0
      %p106 = por %p104, %p105
      %p107 = scmp.ne.s32.totalorder %s99, %s101
      %p108 = scmp.eq.s32.totalorder %s33, 1
      %p109 = por %p107, %p108
      %p110 = scmp.ne.s32.totalorder %s101, %s102
      %p111 = scmp.eq.s32.totalorder %s33, 0
      %p112 = por %p110, %p111
      %p113 = scmp.ne.s32.totalorder %s101, %s102
      %p114 = scmp.eq.s32.totalorder %s34, 1
      %p115 = por %p113, %p114
      %p117 = scmp.ne.s32.totalorder %s102, %s116
      %p118 = scmp.eq.s32.totalorder %s34, 0
      %p119 = por %p117, %p118
      %s121 = sadd.s32 %s120, 1
      %p124 = scmp.eq.s32.totalorder %s28, 1
      %p125 = scmp.ne.s32.totalorder %s120, %s122
      %p126 = scmp.eq.s32.totalorder %s28, 0
      %p127 = por %p125, %p126
      %p128 = scmp.ne.s32.totalorder %s120, %s122
      %p129 = scmp.eq.s32.totalorder %s33, 1
      %p130 = por %p128, %p129
      %p131 = scmp.ne.s32.totalorder %s122, %s123
      %p132 = scmp.eq.s32.totalorder %s33, 0
      %p133 = por %p131, %p132
      %p134 = scmp.ne.s32.totalorder %s122, %s123
      %p135 = scmp.eq.s32.totalorder %s34, 1
      %p136 = por %p134, %p135
      %p138 = scmp.ne.s32.totalorder %s123, %s137
      %p139 = scmp.eq.s32.totalorder %s34, 0
      %p140 = por %p138, %p139
      %s142 = sadd.s32 %s141, 1
      %p145 = scmp.eq.s32.totalorder %s28, 1
      %p146 = scmp.ne.s32.totalorder %s141, %s143
      %p147 = scmp.eq.s32.totalorder %s28, 0
      %p148 = por %p146, %p147
      %p149 = scmp.ne.s32.totalorder %s141, %s143
      %p150 = scmp.eq.s32.totalorder %s33, 1
      %p151 = por %p149, %p150
      %p152 = scmp.ne.s32.totalorder %s143, %s144
      %p153 = scmp.eq.s32.totalorder %s33, 0
      %p154 = por %p152, %p153
      %p155 = scmp.ne.s32.totalorder %s143, %s144
      %p156 = scmp.eq.s32.totalorder %s34, 1
      %p157 = por %p155, %p156
      %p159 = scmp.ne.s32.totalorder %s144, %s158
      %p160 = scmp.eq.s32.totalorder %s34, 0
      %p161 = por %p159, %p160
      %s163 = sadd.s32 %s162, 1
      %p166 = scmp.eq.s32.totalorder %s28, 1
      %p167 = scmp.ne.s32.totalorder %s162, %s164
      %p168 = scmp.eq.s32.totalorder %s28, 0
      %p169 = por %p167, %p168
      %p170 = scmp.ne.s32.totalorder %s162, %s164
      %p171 = scmp.eq.s32.totalorder %s33, 1
      %p172 = por %p170, %p171
      %p173 = scmp.ne.s32.totalorder %s164, %s165
      %p174 = scmp.eq.s32.totalorder %s33, 0
      %p175 = por %p173, %p174
      %p176 = scmp.ne.s32.totalorder %s164, %s165
      %p177 = scmp.eq.s32.totalorder %s34, 1
      %p178 = por %p176, %p177
      %p180 = scmp.ne.s32.totalorder %s165, %s179
      %p181 = scmp.eq.s32.totalorder %s34, 0
      %p182 = por %p180, %p181
      %s184 = sadd.s32 %s183, 1
      %p187 = scmp.eq.s32.totalorder %s28, 1
      %p188 = scmp.ne.s32.totalorder %s183, %s185
      %p189 = scmp.eq.s32.totalorder %s28, 0
      %p190 = por %p188, %p189
      %p191 = scmp.ne.s32.totalorder %s183, %s185
      %p192 = scmp.eq.s32.totalorder %s33, 1
      %p193 = por %p191, %p192
      %p194 = scmp.ne.s32.totalorder %s185, %s186
      %p195 = scmp.eq.s32.totalorder %s33, 0
      %p196 = por %p194, %p195
      %p197 = scmp.ne.s32.totalorder %s185, %s186
      %p198 = scmp.eq.s32.totalorder %s34, 1
      %p199 = por %p197, %p198
      %p201 = scmp.ne.s32.totalorder %s186, %s200
      %p202 = scmp.eq.s32.totalorder %s34, 0
      %p203 = por %p201, %p202
      %s204 = ssub.s32 %s28, %s35
      %p205 = scmp.eq.s32.totalorder %s204, 0
      %s207 = sadd.s32 %s206, 1
      %s208 = scalar_select %p205, %s206, %s207
      %p211 = pneg %p205
      %p212 = scmp.eq.s32.totalorder %s28, 1
      %p213 = por %p211, %p212
      %p214 = scmp.ne.s32.totalorder %s206, %s209
      %p215 = scmp.eq.s32.totalorder %s28, 0
      %p216 = por %p214, %p215
      %p217 = scmp.ne.s32.totalorder %s206, %s209
      %p218 = scmp.eq.s32.totalorder %s33, 1
      %p219 = por %p217, %p218
      %p220 = scmp.ne.s32.totalorder %s209, %s210
      %p221 = scmp.eq.s32.totalorder %s33, 0
      %p222 = por %p220, %p221
      %p223 = scmp.ne.s32.totalorder %s209, %s210
      %p224 = scmp.eq.s32.totalorder %s34, 1
      %p225 = por %p223, %p224
      %p227 = scmp.ne.s32.totalorder %s210, %s226
      %p228 = scmp.eq.s32.totalorder %s34, 0
      %p229 = por %p227, %p228
      %s230 = ssub.s32 %s28, %s35
      %p231 = scmp.eq.s32.totalorder %s230, 0
      %s233 = sadd.s32 %s232, 1
      %s234 = scalar_select %p231, %s232, %s233
      %p237 = pneg %p231
      %p238 = scmp.eq.s32.totalorder %s28, 1
      %p239 = por %p237, %p238
      %p240 = scmp.ne.s32.totalorder %s232, %s235
      %p241 = scmp.eq.s32.totalorder %s28, 0
      %p242 = por %p240, %p241
      %p243 = scmp.ne.s32.totalorder %s232, %s235
      %p244 = scmp.eq.s32.totalorder %s33, 1
      %p245 = por %p243, %p244
      %p246 = scmp.ne.s32.totalorder %s235, %s236
      %p247 = scmp.eq.s32.totalorder %s33, 0
      %p248 = por %p246, %p247
      %p249 = scmp.ne.s32.totalorder %s235, %s236
      %p250 = scmp.eq.s32.totalorder %s34, 1
      %p251 = por %p249, %p250
      %p253 = scmp.ne.s32.totalorder %s236, %s252
      %p254 = scmp.eq.s32.totalorder %s34, 0
      %p255 = por %p253, %p254
      %s256 = ssub.s32 %s28, %s35
      %p257 = scmp.eq.s32.totalorder %s256, 0
      %s259 = sadd.s32 %s258, 1
      %s260 = scalar_select %p257, %s258, %s259
      %p263 = pneg %p257
      %p264 = scmp.eq.s32.totalorder %s28, 1
      %p265 = por %p263, %p264
      %p266 = scmp.ne.s32.totalorder %s258, %s261
      %p267 = scmp.eq.s32.totalorder %s28, 0
      %p268 = por %p266, %p267
      %p269 = scmp.ne.s32.totalorder %s258, %s261
      %p270 = scmp.eq.s32.totalorder %s33, 1
      %p271 = por %p269, %p270
      %p272 = scmp.ne.s32.totalorder %s261, %s262
      %p273 = scmp.eq.s32.totalorder %s33, 0
      %p274 = por %p272, %p273
      %p275 = scmp.ne.s32.totalorder %s261, %s262
      %p276 = scmp.eq.s32.totalorder %s34, 1
      %p277 = por %p275, %p276
      %p279 = scmp.ne.s32.totalorder %s262, %s278
      %p280 = scmp.eq.s32.totalorder %s34, 0
      %p281 = por %p279, %p280
      %s282 = ssub.s32 %s28, %s35
      %p283 = scmp.eq.s32.totalorder %s282, 0
      %s285 = sadd.s32 %s284, 1
      %s286 = scalar_select %p283, %s284, %s285
      %p289 = pneg %p283
      %p290 = scmp.eq.s32.totalorder %s28, 1
      %p291 = por %p289, %p290
      %p292 = scmp.ne.s32.totalorder %s284, %s287
      %p293 = scmp.eq.s32.totalorder %s28, 0
      %p294 = por %p292, %p293
      %p295 = scmp.ne.s32.totalorder %s284, %s287
      %p296 = scmp.eq.s32.totalorder %s33, 1
      %p297 = por %p295, %p296
      %p298 = scmp.ne.s32.totalorder %s287, %s288
      %p299 = scmp.eq.s32.totalorder %s33, 0
      %p300 = por %p298, %p299
      %p301 = scmp.ne.s32.totalorder %s287, %s288
      %p302 = scmp.eq.s32.totalorder %s34, 1
      %p303 = por %p301, %p302
      %p305 = scmp.ne.s32.totalorder %s288, %s304
      %p306 = scmp.eq.s32.totalorder %s34, 0
      %p307 = por %p305, %p306
      %s309 = sadd.s32 %s308, 1
      %p312 = scmp.eq.s32.totalorder %s28, 1
      %p313 = scmp.ne.s32.totalorder %s308, %s310
      %p314 = scmp.eq.s32.totalorder %s28, 0
      %p315 = por %p313, %p314
      %p316 = scmp.ne.s32.totalorder %s308, %s310
      %p317 = scmp.eq.s32.totalorder %s33, 1
      %p318 = por %p316, %p317
      %p319 = scmp.ne.s32.totalorder %s310, %s311
      %p320 = scmp.eq.s32.totalorder %s33, 0
      %p321 = por %p319, %p320
      %p322 = scmp.ne.s32.totalorder %s310, %s311
      %p323 = scmp.eq.s32.totalorder %s34, 1
      %p324 = por %p322, %p323
      %p326 = scmp.ne.s32.totalorder %s311, %s325
      %p327 = scmp.eq.s32.totalorder %s34, 0
      %p328 = por %p326, %p327
      %p329 = scmp.le.s32.totalorder 1, %s28
      %p330 = scmp.lt.s32.totalorder %s28, 3
      %p331 = pnand %p329, %p330
      %p332 = pneg %p331
      // Predicated region
      $region9: #{tpu_custom_call.1} parent=5 // pred_check
        _
      $region10: #{tpu_custom_call.1} parent=5 // pred_check_branch
        %334 = sbr.rel (%p331) target = $region12
      $region11: #{tpu_custom_call.1} parent=5 // pred_region
        %s335 = ssub.s32 %s28, 1
        // Predicated region
        $region13: #{tpu_custom_call.1} parent=11 // pred_check
          %p336 = pneg %p49
        $region14: #{tpu_custom_call.1} parent=11 // pred_check_branch
          %338 = sbr.rel (%p336) target = $region16
        $region15: #{tpu_custom_call.1} parent=11 // pred_region
          %s340 = ssub.s32 512, 512
          %341 = vsyncadd [#allocation3], %s340
          %s342 = sshll.u32 [#allocation2], 4
          %s343 = int_to_ptr.vmem [resolvable:$true] %s342
          %348 = dma.hbm_to_vmem [thread:$0]  %s0, 512, %s343, [#allocation3], 128, 128, 8
        $region16: #{tpu_custom_call.1} parent=11 // pred_fallthru
          _
        // Predicated region
        $region17: #{tpu_custom_call.1} parent=11 // pred_check
          %p349 = pneg %p70
        $region18: #{tpu_custom_call.1} parent=11 // pred_check_branch
          %351 = sbr.rel (%p349) target = $region20
        $region19: #{tpu_custom_call.1} parent=11 // pred_region
          %s353 = ssub.s32 32, 32
          %354 = vsyncadd [#allocation6], %s353
          %s356 = sshll.u32 [#allocation5], 4
          %s357 = int_to_ptr.vmem [resolvable:$true] %s356
          %359 = dma.hbm_to_vmem [thread:$0]  %s1, 32, %s357, [#allocation6]
        $region20: #{tpu_custom_call.1} parent=11 // pred_fallthru
          _
        // Predicated region
        $region21: #{tpu_custom_call.1} parent=11 // pred_check
          %p360 = pneg %p91
        $region22: #{tpu_custom_call.1} parent=11 // pred_check_branch
          %362 = sbr.rel (%p360) target = $region24
        $region23: #{tpu_custom_call.1} parent=11 // pred_region
          _
        $region24: #{tpu_custom_call.1} parent=11 // pred_fallthru
          _
        // Predicated region
        $region25: #{tpu_custom_call.1} parent=11 // pred_check
          %p363 = pneg %p112
        $region26: #{tpu_custom_call.1} parent=11 // pred_check_branch
          %365 = sbr.rel (%p363) target = $region28
        $region27: #{tpu_custom_call.1} parent=11 // pred_region
          %s367 = ssub.s32 32, 32
          %368 = vsyncadd [#allocation6], %s367
          %s370 = sshll.u32 [#allocation7], 4
          %s371 = int_to_ptr.vmem [resolvable:$true] %s370
          %373 = dma.hbm_to_vmem [thread:$0]  %s3, 32, %s371, [#allocation6]
        $region28: #{tpu_custom_call.1} parent=11 // pred_fallthru
          _
        // Predicated region
        $region29: #{tpu_custom_call.1} parent=11 // pred_check
          %p374 = pneg %p133
        $region30: #{tpu_custom_call.1} parent=11 // pred_check_branch
          %376 = sbr.rel (%p374) target = $region32
        $region31: #{tpu_custom_call.1} parent=11 // pred_region
          %s378 = ssub.s32 32, 32
          %379 = vsyncadd [#allocation9], %s378
          %s381 = sshll.u32 [#allocation8], 4
          %s382 = int_to_ptr.vmem [resolvable:$true] %s381
          %384 = dma.hbm_to_vmem [thread:$0]  %s4, 32, %s382, [#allocation9]
        $region32: #{tpu_custom_call.1} parent=11 // pred_fallthru
          _
        // Predicated region
        $region33: #{tpu_custom_call.1} parent=11 // pred_check
          %p385 = pneg %p154
        $region34: #{tpu_custom_call.1} parent=11 // pred_check_branch
          %387 = sbr.rel (%p385) target = $region36
        $region35: #{tpu_custom_call.1} parent=11 // pred_region
          %s389 = ssub.s32 32, 32
          %390 = vsyncadd [#allocation9], %s389
          %s392 = sshll.u32 [#allocation10], 4
          %s393 = int_to_ptr.vmem [resolvable:$true] %s392
          %395 = dma.hbm_to_vmem [thread:$0]  %s5, 32, %s393, [#allocation9]
        $region36: #{tpu_custom_call.1} parent=11 // pred_fallthru
          _
        // Predicated region
        $region37: #{tpu_custom_call.1} parent=11 // pred_check
          %p396 = pneg %p175
        $region38: #{tpu_custom_call.1} parent=11 // pred_check_branch
          %398 = sbr.rel (%p396) target = $region40
        $region39: #{tpu_custom_call.1} parent=11 // pred_region
          _
        $region40: #{tpu_custom_call.1} parent=11 // pred_fallthru
          _
        // Predicated region
        $region41: #{tpu_custom_call.1} parent=11 // pred_check
          %p399 = pneg %p196
        $region42: #{tpu_custom_call.1} parent=11 // pred_check_branch
          %401 = sbr.rel (%p399) target = $region44
        $region43: #{tpu_custom_call.1} parent=11 // pred_region
          _
        $region44: #{tpu_custom_call.1} parent=11 // pred_fallthru
          _
      $region12: #{tpu_custom_call.1} parent=5 // pred_fallthru
        _
      %p402 = scmp.lt.s32.totalorder %s28, 2
      // Predicated region
      $region45: #{tpu_custom_call.1} parent=5 // pred_check
        %p403 = pneg %p402
      $region46: #{tpu_custom_call.1} parent=5 // pred_check_branch
        %405 = sbr.rel (%p403) target = $region48
      $region47: #{tpu_custom_call.1} parent=5 // pred_region
        // Predicated region
        $region49: #{tpu_custom_call.1} parent=47 // pred_check
          %p406 = pneg %p216
        $region50: #{tpu_custom_call.1} parent=47 // pred_check_branch
          %408 = sbr.rel (%p406) target = $region52
        $region51: #{tpu_custom_call.1} parent=47 // pred_region
          %s409 = sand.u32 %s28, 1
          %s410 = scalar_lea.sflag [#allocation12], %s409
          %s411 = sand.u32 %s206, 1
          %s412 = smul.addr %s411, 192
          %s413 = scalar_lea.vmem [#allocation11], %s412
          %s415 = ssub.s32 3072, 3072
          %416 = vsyncadd %s410, %s415
          %s417 = smul.addr %s28, 48
          %s418 = smul.addr %s417, 64
          %s419 = scalar_lea.hbm %s8, %s418
          %s420 = sshll.u32 %s413, 4
          %s421 = int_to_ptr.vmem [resolvable:$true] %s420
          %426 = dma.hbm_to_vmem [thread:$0]  %s419, 3072, %s421, %s410, 192, 192, 12
        $region52: #{tpu_custom_call.1} parent=47 // pred_fallthru
          _
        // Predicated region
        $region53: #{tpu_custom_call.1} parent=47 // pred_check
          %p427 = pneg %p242
        $region54: #{tpu_custom_call.1} parent=47 // pred_check_branch
          %429 = sbr.rel (%p427) target = $region56
        $region55: #{tpu_custom_call.1} parent=47 // pred_region
          %s430 = sand.u32 %s28, 1
          %s431 = scalar_lea.sflag [#allocation12], %s430
          %s432 = sand.u32 %s232, 1
          %s433 = smul.addr %s432, 64
          %s434 = scalar_lea.vmem [#allocation13], %s433
          %s436 = ssub.s32 1024, 1024
          %437 = vsyncadd %s431, %s436
          %s438 = smul.addr %s28, 16
          %s439 = smul.addr %s438, 64
          %s440 = scalar_lea.hbm %s9, %s439
          %s441 = sshll.u32 %s434, 4
          %s442 = int_to_ptr.vmem [resolvable:$true] %s441
          %447 = dma.hbm_to_vmem [thread:$0]  %s440, 1024, %s442, %s431, 64, 64, 4
        $region56: #{tpu_custom_call.1} parent=47 // pred_fallthru
          _
        // Predicated region
        $region57: #{tpu_custom_call.1} parent=47 // pred_check
          %p448 = pneg %p268
        $region58: #{tpu_custom_call.1} parent=47 // pred_check_branch
          %450 = sbr.rel (%p448) target = $region60
        $region59: #{tpu_custom_call.1} parent=47 // pred_region
          %s451 = sand.u32 %s28, 1
          %s452 = scalar_lea.sflag [#allocation15], %s451
          %s453 = sand.u32 %s258, 1
          %s454 = smul.addr %s453, 256
          %s455 = scalar_lea.vmem [#allocation14], %s454
          %s457 = ssub.s32 4096, 4096
          %458 = vsyncadd %s452, %s457
          %s459 = smul.addr %s28, 64
          %s460 = smul.addr %s459, 64
          %s461 = scalar_lea.hbm %s10, %s460
          %s462 = sshll.u32 %s455, 4
          %s463 = int_to_ptr.vmem [resolvable:$true] %s462
          %468 = dma.hbm_to_vmem [thread:$0]  %s461, 4096, %s463, %s452, 256, 256, 16
        $region60: #{tpu_custom_call.1} parent=47 // pred_fallthru
          _
        // Predicated region
        $region61: #{tpu_custom_call.1} parent=47 // pred_check
          %p469 = pneg %p294
        $region62: #{tpu_custom_call.1} parent=47 // pred_check_branch
          %471 = sbr.rel (%p469) target = $region64
        $region63: #{tpu_custom_call.1} parent=47 // pred_region
          %s472 = sand.u32 %s28, 1
          %s473 = scalar_lea.sflag [#allocation15], %s472
          %s474 = sand.u32 %s284, 1
          %s475 = smul.addr %s474, 256
          %s476 = scalar_lea.vmem [#allocation16], %s475
          %s478 = ssub.s32 4096, 4096
          %479 = vsyncadd %s473, %s478
          %s480 = smul.addr %s28, 64
          %s481 = smul.addr %s480, 64
          %s482 = scalar_lea.hbm %s11, %s481
          %s483 = sshll.u32 %s476, 4
          %s484 = int_to_ptr.vmem [resolvable:$true] %s483
          %489 = dma.hbm_to_vmem [thread:$0]  %s482, 4096, %s484, %s473, 64, 64, 4
        $region64: #{tpu_custom_call.1} parent=47 // pred_fallthru
          _
      $region48: #{tpu_custom_call.1} parent=5 // pred_fallthru
        _
      %p490 = scmp.le.s32.totalorder 1, %s28
      %p491 = scmp.lt.s32.totalorder %s28, 3
      %p492 = pnand %p490, %p491
      %p493 = pneg %p492
      // Predicated region
      $region65: #{tpu_custom_call.1} parent=5 // pred_check
        _
      $region66: #{tpu_custom_call.1} parent=5 // pred_check_branch
        %495 = sbr.rel (%p492) target = $region68
      $region67: #{tpu_custom_call.1} parent=5 // pred_region
        %s496 = ssub.s32 %s28, 1
        // Predicated region
        $region69: #{tpu_custom_call.1} parent=67 // pred_check
          %p497 = pneg %p49
        $region70: #{tpu_custom_call.1} parent=67 // pred_check_branch
          %499 = sbr.rel (%p497) target = $region72
        $region71: #{tpu_custom_call.1} parent=67 // pred_region
          %500 = dma.done [#allocation3], 512
        $region72: #{tpu_custom_call.1} parent=67 // pred_fallthru
          _
        // Predicated region
        $region73: #{tpu_custom_call.1} parent=67 // pred_check
          %p501 = pneg %p70
        $region74: #{tpu_custom_call.1} parent=67 // pred_check_branch
          %503 = sbr.rel (%p501) target = $region76
        $region75: #{tpu_custom_call.1} parent=67 // pred_region
          %504 = dma.done [#allocation6], 32
        $region76: #{tpu_custom_call.1} parent=67 // pred_fallthru
          _
        // Predicated region
        $region77: #{tpu_custom_call.1} parent=67 // pred_check
          %p505 = pneg %p112
        $region78: #{tpu_custom_call.1} parent=67 // pred_check_branch
          %507 = sbr.rel (%p505) target = $region80
        $region79: #{tpu_custom_call.1} parent=67 // pred_region
          %508 = dma.done [#allocation6], 32
        $region80: #{tpu_custom_call.1} parent=67 // pred_fallthru
          _
        // Predicated region
        $region81: #{tpu_custom_call.1} parent=67 // pred_check
          %p509 = pneg %p133
        $region82: #{tpu_custom_call.1} parent=67 // pred_check_branch
          %511 = sbr.rel (%p509) target = $region84
        $region83: #{tpu_custom_call.1} parent=67 // pred_region
          %512 = dma.done [#allocation9], 32
        $region84: #{tpu_custom_call.1} parent=67 // pred_fallthru
          _
        // Predicated region
        $region85: #{tpu_custom_call.1} parent=67 // pred_check
          %p513 = pneg %p154
        $region86: #{tpu_custom_call.1} parent=67 // pred_check_branch
          %515 = sbr.rel (%p513) target = $region88
        $region87: #{tpu_custom_call.1} parent=67 // pred_region
          %516 = dma.done [#allocation9], 32
        $region88: #{tpu_custom_call.1} parent=67 // pred_fallthru
          _
        %s517 = sand.u32 %s33, 1
        %s518 = scalar_lea.sflag [#allocation12], %s517
        %s519 = sand.u32 %s209, 1
        %s520 = smul.addr %s519, 192
        %s521 = scalar_lea.vmem [#allocation11], %s520
        // Predicated region
        $region89: #{tpu_custom_call.1} parent=67 // pred_check
          %p522 = pneg %p222
        $region90: #{tpu_custom_call.1} parent=67 // pred_check_branch
          %524 = sbr.rel (%p522) target = $region92
        $region91: #{tpu_custom_call.1} parent=67 // pred_region
          %525 = dma.done %s518, 3072
        $region92: #{tpu_custom_call.1} parent=67 // pred_fallthru
          _
        %s526 = sand.u32 %s33, 1
        %s527 = scalar_lea.sflag [#allocation12], %s526
        %s528 = sand.u32 %s235, 1
        %s529 = smul.addr %s528, 64
        %s530 = scalar_lea.vmem [#allocation13], %s529
        // Predicated region
        $region93: #{tpu_custom_call.1} parent=67 // pred_check
          %p531 = pneg %p248
        $region94: #{tpu_custom_call.1} parent=67 // pred_check_branch
          %533 = sbr.rel (%p531) target = $region96
        $region95: #{tpu_custom_call.1} parent=67 // pred_region
          %534 = dma.done %s527, 1024
        $region96: #{tpu_custom_call.1} parent=67 // pred_fallthru
          _
        %s535 = sand.u32 %s33, 1
        %s536 = scalar_lea.sflag [#allocation15], %s535
        %s537 = sand.u32 %s261, 1
        %s538 = smul.addr %s537, 256
        %s539 = scalar_lea.vmem [#allocation14], %s538
        // Predicated region
        $region97: #{tpu_custom_call.1} parent=67 // pred_check
          %p540 = pneg %p274
        $region98: #{tpu_custom_call.1} parent=67 // pred_check_branch
          %542 = sbr.rel (%p540) target = $region100
        $region99: #{tpu_custom_call.1} parent=67 // pred_region
          %543 = dma.done %s536, 4096
        $region100: #{tpu_custom_call.1} parent=67 // pred_fallthru
          _
        %s544 = sand.u32 %s33, 1
        %s545 = scalar_lea.sflag [#allocation15], %s544
        %s546 = sand.u32 %s287, 1
        %s547 = smul.addr %s546, 256
        %s548 = scalar_lea.vmem [#allocation16], %s547
        // Predicated region
        $region101: #{tpu_custom_call.1} parent=67 // pred_check
          %p549 = pneg %p300
        $region102: #{tpu_custom_call.1} parent=67 // pred_check_branch
          %551 = sbr.rel (%p549) target = $region104
        $region103: #{tpu_custom_call.1} parent=67 // pred_region
          %552 = dma.done %s545, 4096
        $region104: #{tpu_custom_call.1} parent=67 // pred_fallthru
          _
        %p553 = pneg %p49
        %p554 = pneg %p46
        %p555 = pneg %p70
        %p556 = pneg %p67
        %p557 = pneg %p91
        %p558 = pneg %p88
        %p559 = pneg %p112
        %p560 = pneg %p109
        %p561 = pneg %p133
        %p562 = pneg %p130
        %p563 = pneg %p154
        %p564 = pneg %p151
        %p565 = pneg %p175
        %p566 = pneg %p172
        %p567 = pneg %p196
        %p568 = pneg %p193
        %s569 = sand.u32 %s33, 1
        %s570 = scalar_lea.sflag [#allocation12], %s569
        %s571 = sand.u32 %s209, 1
        %s572 = smul.addr %s571, 192
        %s573 = scalar_lea.vmem [#allocation11], %s572
        %p574 = pneg %p222
        %p575 = pneg %p219
        %s576 = sand.u32 %s33, 1
        %s577 = scalar_lea.sflag [#allocation12], %s576
        %s578 = sand.u32 %s235, 1
        %s579 = smul.addr %s578, 64
        %s580 = scalar_lea.vmem [#allocation13], %s579
        %p581 = pneg %p248
        %p582 = pneg %p245
        %s583 = sand.u32 %s33, 1
        %s584 = scalar_lea.sflag [#allocation15], %s583
        %s585 = sand.u32 %s261, 1
        %s586 = smul.addr %s585, 256
        %s587 = scalar_lea.vmem [#allocation14], %s586
        %p588 = pneg %p274
        %p589 = pneg %p271
        %s590 = sand.u32 %s33, 1
        %s591 = scalar_lea.sflag [#allocation15], %s590
        %s592 = sand.u32 %s287, 1
        %s593 = smul.addr %s592, 256
        %s594 = scalar_lea.vmem [#allocation16], %s593
        %p595 = pneg %p300
        %p596 = pneg %p297
        %p597 = pneg %p321
        %p598 = pneg %p318
        %p600 = scmp.eq.s32.totalorder %s33, 0
        // Predicated region
        $region105: #{tpu_custom_call.1} parent=67 // pred_check
          %p601 = pneg %p600
        $region106: #{tpu_custom_call.1} parent=67 // pred_check_branch
          %603 = sbr.rel (%p601) target = $region108
        $region107: #{tpu_custom_call.1} parent=67 // pred_region
          %v604 = vld [vmem:[#allocation2] sm:$0xff]
          %v605 = vld [vmem:[#allocation2 + $0x8] sm:$0xff]
          %v606 = vld [vmem:[#allocation2 + $0x10] sm:$0xff]
          %v607 = vld [vmem:[#allocation2 + $0x18] sm:$0xff]
          %608 = vst [vmem:[#allocation17] sm:$0xff] %v604
          %609 = vst [vmem:[#allocation17 + $0x8] sm:$0xff] %v605
          %610 = vst [vmem:[#allocation17 + $0x10] sm:$0xff] %v606
          %611 = vst [vmem:[#allocation17 + $0x18] sm:$0xff] %v607
        $region108: #{tpu_custom_call.1} parent=67 // pred_fallthru
          _
        %v612 = vlaneseq
        %v613 = vshrl.u32 %v612, 7
        %v614 = vadd.s32 %v613, 8
        %v615 = vlaneseq
        %v616 = vand.u32 %v615, 127
        %vm617 = vcmp.ge.s32.totalorder %v613, %v616
        %vm618 = vcmp.ge.s32.totalorder %v614, %v616
        %v619 = vld [vmem:[#allocation17] sm:$0xff]
        %v620 = vld [vmem:[#allocation17 + $0x8] sm:$0xff]
        %v621 = vld [vmem:[#allocation17 + $0x10] sm:$0xff]
        %v622 = vld [vmem:[#allocation17 + $0x18] sm:$0xff]
        %s623 = scalar_lea.vmem [#allocation5], %s33
        %v624 = vld [vmem:[%s623] sm:$0x1]
        %s625 = scalar_lea.vmem %s2, %s33
        %v626 = vld [vmem:[%s625] sm:$0x1]
        %627 = vadd.xlane.f32.xlu0 %v619
        %v628 = vpop.xlane.xlu0 %627
        %629 = vadd.xlane.f32.xlu0 %v620
        %v630 = vpop.xlane.xlu0 %629
        %631 = vadd.xlane.f32.xlu0 %v621
        %v632 = vpop.xlane.xlu0 %631
        %633 = vadd.xlane.f32.xlu0 %v622
        %v634 = vpop.xlane.xlu0 %633
        %v635 = vrcp.pop 128.0
        %v636 = vmul.f32 %v628, %v635
        %v637 = vmul.f32 %v630, %v635
        %v638 = vmul.f32 %v632, %v635
        %v639 = vmul.f32 %v634, %v635
        %v640 = vsub.f32 %v619, %v636
        %v641 = vsub.f32 %v620, %v637
        %v642 = vsub.f32 %v621, %v638
        %v643 = vsub.f32 %v622, %v639
        %v644 = vmul.f32 %v640, %v640
        %v645 = vmul.f32 %v641, %v641
        %v646 = vmul.f32 %v642, %v642
        %v647 = vmul.f32 %v643, %v643
        %648 = vadd.xlane.f32.xlu0 %v644
        %v649 = vpop.xlane.xlu0 %648
        %650 = vadd.xlane.f32.xlu0 %v645
        %v651 = vpop.xlane.xlu0 %650
        %652 = vadd.xlane.f32.xlu0 %v646
        %v653 = vpop.xlane.xlu0 %652
        %654 = vadd.xlane.f32.xlu0 %v647
        %v655 = vpop.xlane.xlu0 %654
        %v656 = vmul.f32 %v649, %v635
        %v657 = vmul.f32 %v651, %v635
        %v658 = vmul.f32 %v653, %v635
        %v659 = vmul.f32 %v655, %v635
        %v660 = vadd.f32 %v656, 1e-05
        %v661 = vadd.f32 %v657, 1e-05
        %v662 = vadd.f32 %v658, 1e-05
        %v663 = vadd.f32 %v659, 1e-05
        %v664 = vrsqrt.pop %v660
        %v665 = vrsqrt.pop %v661
        %v666 = vrsqrt.pop %v662
        %v667 = vrsqrt.pop %v663
        %v668 = vmul.f32 %v640, %v664
        %v669 = vmul.f32 %v641, %v665
        %v670 = vmul.f32 %v642, %v666
        %v671 = vmul.f32 %v643, %v667
        %v672 = vlaneseq
        %v673 = vshrl.u32 %v672, 7
        %v674 = vsub.s32 0, %v673
        %v675 = vrot.slane %v624, %v674
        %v676 = vmul.f32 %v668, %v675
        %v677 = vmul.f32 %v669, %v675
        %v678 = vmul.f32 %v670, %v675
        %v679 = vmul.f32 %v671, %v675
        %v680 = vlaneseq
        %v681 = vshrl.u32 %v680, 7
        %v682 = vsub.s32 0, %v681
        %v683 = vrot.slane %v626, %v682
        %v684 = vadd.f32 %v676, %v683
        %v685 = vadd.f32 %v677, %v683
        %v686 = vadd.f32 %v678, %v683
        %v687 = vadd.f32 %v679, %v683
        %v688 = vpack.c.bf16 %v685, %v684
        %v689 = vpack.c.bf16 %v687, %v686
        %v690 = vld [vmem:[%s521] sm:$0xff]
        %v691 = vld [vmem:[%s521 + $0x8] sm:$0xf]
        %v692 = vld [vmem:[%s521 + $0xc] sm:$0xff]
        %v693 = vld [vmem:[%s521 + $0x14] sm:$0xf]
        %v694 = vld [vmem:[%s521 + $0x18] sm:$0xff]
        %v695 = vld [vmem:[%s521 + $0x20] sm:$0xf]
        %v696 = vld [vmem:[%s521 + $0x24] sm:$0xff]
        %v697 = vld [vmem:[%s521 + $0x2c] sm:$0xf]
        %v698 = vld [vmem:[%s521 + $0x30] sm:$0xff]
        %v699 = vld [vmem:[%s521 + $0x38] sm:$0xf]
        %v700 = vld [vmem:[%s521 + $0x3c] sm:$0xff]
        %v701 = vld [vmem:[%s521 + $0x44] sm:$0xf]
        %v702 = vld [vmem:[%s521 + $0x48] sm:$0xff]
        %v703 = vld [vmem:[%s521 + $0x50] sm:$0xf]
        %v704 = vld [vmem:[%s521 + $0x54] sm:$0xff]
        %v705 = vld [vmem:[%s521 + $0x5c] sm:$0xf]
        %v706 = vld [vmem:[%s521 + $0x60] sm:$0xff]
        %v707 = vld [vmem:[%s521 + $0x68] sm:$0xf]
        %v708 = vld [vmem:[%s521 + $0x6c] sm:$0xff]
        %v709 = vld [vmem:[%s521 + $0x74] sm:$0xf]
        %v710 = vld [vmem:[%s521 + $0x78] sm:$0xff]
        %v711 = vld [vmem:[%s521 + $0x80] sm:$0xf]
        %v712 = vld [vmem:[%s521 + $0x84] sm:$0xff]
        %v713 = vld [vmem:[%s521 + $0x8c] sm:$0xf]
        %v714 = vld [vmem:[%s521 + $0x90] sm:$0xff]
        %v715 = vld [vmem:[%s521 + $0x98] sm:$0xf]
        %v716 = vld [vmem:[%s521 + $0x9c] sm:$0xff]
        %v717 = vld [vmem:[%s521 + $0xa4] sm:$0xf]
        %v718 = vld [vmem:[%s521 + $0xa8] sm:$0xff]
        %v719 = vld [vmem:[%s521 + $0xb0] sm:$0xf]
        %v720 = vld [vmem:[%s521 + $0xb4] sm:$0xff]
        %v721 = vld [vmem:[%s521 + $0xbc] sm:$0xf]
        %v754 = vunpack.c.l.b16 %v690
        %v755 = vunpack.c.h.b16 %v690
        %v756 = vunpack.c.l.b16 %v691
        %v757 = vunpack.c.l.b16 %v692
        %v758 = vunpack.c.h.b16 %v692
        %v759 = vunpack.c.l.b16 %v693
        %v760 = vunpack.c.l.b16 %v694
        %v761 = vunpack.c.h.b16 %v694
        %v762 = vunpack.c.l.b16 %v695
        %v763 = vunpack.c.l.b16 %v696
        %v764 = vunpack.c.h.b16 %v696
        %v765 = vunpack.c.l.b16 %v697
        %v766 = vunpack.c.l.b16 %v698
        %v767 = vunpack.c.h.b16 %v698
        %v768 = vunpack.c.l.b16 %v699
        %v769 = vunpack.c.l.b16 %v700
        %v770 = vunpack.c.h.b16 %v700
        %v771 = vunpack.c.l.b16 %v701
        %v772 = vunpack.c.l.b16 %v702
        %v773 = vunpack.c.h.b16 %v702
        %v774 = vunpack.c.l.b16 %v703
        %v775 = vunpack.c.l.b16 %v704
        %v776 = vunpack.c.h.b16 %v704
        %v777 = vunpack.c.l.b16 %v705
        %v778 = vunpack.c.l.b16 %v706
        %v779 = vunpack.c.h.b16 %v706
        %v780 = vunpack.c.l.b16 %v707
        %v781 = vunpack.c.l.b16 %v708
        %v782 = vunpack.c.h.b16 %v708
        %v783 = vunpack.c.l.b16 %v709
        %v784 = vunpack.c.l.b16 %v710
        %v785 = vunpack.c.h.b16 %v710
        %v786 = vunpack.c.l.b16 %v711
        %v787 = vunpack.c.l.b16 %v712
        %v788 = vunpack.c.h.b16 %v712
        %v789 = vunpack.c.l.b16 %v713
        %v790 = vunpack.c.l.b16 %v714
        %v791 = vunpack.c.h.b16 %v714
        %v792 = vunpack.c.l.b16 %v715
        %v793 = vunpack.c.l.b16 %v716
        %v794 = vunpack.c.h.b16 %v716
        %v795 = vunpack.c.l.b16 %v717
        %v796 = vunpack.c.l.b16 %v718
        %v797 = vunpack.c.h.b16 %v718
        %v798 = vunpack.c.l.b16 %v719
        %v799 = vunpack.c.l.b16 %v720
        %v800 = vunpack.c.h.b16 %v720
        %v801 = vunpack.c.l.b16 %v721
        %v802 = vpack.c.b16 %v757, %v754
        %v803 = vpack.c.b16 %v758, %v755
        %v804 = vpack.c.b16 %v759, %v756
        %v805 = vpack.c.b16 %v763, %v760
        %v806 = vpack.c.b16 %v764, %v761
        %v807 = vpack.c.b16 %v765, %v762
        %v808 = vpack.c.b16 %v769, %v766
        %v809 = vpack.c.b16 %v770, %v767
        %v810 = vpack.c.b16 %v771, %v768
        %v811 = vpack.c.b16 %v775, %v772
        %v812 = vpack.c.b16 %v776, %v773
        %v813 = vpack.c.b16 %v777, %v774
        %v814 = vpack.c.b16 %v781, %v778
        %v815 = vpack.c.b16 %v782, %v779
        %v816 = vpack.c.b16 %v783, %v780
        %v817 = vpack.c.b16 %v787, %v784
        %v818 = vpack.c.b16 %v788, %v785
        %v819 = vpack.c.b16 %v789, %v786
        %v820 = vpack.c.b16 %v793, %v790
        %v821 = vpack.c.b16 %v794, %v791
        %v822 = vpack.c.b16 %v795, %v792
        %v823 = vpack.c.b16 %v799, %v796
        %v824 = vpack.c.b16 %v800, %v797
        %v825 = vpack.c.b16 %v801, %v798
        %850 = vmatprep.subr.bf16.mxu0 %v824
        %851 = vmatpush1.bf16.msra.mxu0 %v823
        %852 = vmatprep.subr.bf16.mxu0 %v821
        %853 = vmatpush1.bf16.msra.mxu0 %v820
        %854 = vmatprep.subr.bf16.mxu0 %v818
        %855 = vmatpush1.bf16.msra.mxu0 %v817
        %856 = vmatprep.subr.bf16.mxu0 %v815
        %857 = vmatpush1.bf16.msra.mxu0 %v814
        %858 = vmatprep.subr.bf16.mxu0 %v812
        %859 = vmatpush1.bf16.msra.mxu0 %v811
        %860 = vmatprep.subr.bf16.mxu0 %v809
        %861 = vmatpush1.bf16.msra.mxu0 %v808
        %862 = vmatprep.subr.bf16.mxu0 %v806
        %863 = vmatpush1.bf16.msra.mxu0 %v805
        %864 = vmatprep.subr.bf16.mxu0 %v803
        %865 = vmatpush1.bf16.msra.mxu0 %v802
        %866 = vmatprep.subr.bf16.mxu0 0
        %867 = vmatpush2.bf16.msra.mxu0 0
        %868 = vmatprep.subr.bf16.mxu0 0
        %869 = vmatpush2.bf16.msra.mxu0 0
        %870 = vmatprep.subr.bf16.mxu0 0
        %871 = vmatpush2.bf16.msra.mxu0 0
        %872 = vmatprep.subr.bf16.mxu0 0
        %873 = vmatpush2.bf16.msra.mxu0 0
        %874 = vmatprep.subr.bf16.mxu0 0
        %875 = vmatpush2.bf16.msra.mxu0 0
        %876 = vmatprep.subr.bf16.mxu0 0
        %877 = vmatpush2.bf16.msra.mxu0 0
        %878 = vmatprep.subr.bf16.mxu0 0
        %879 = vmatpush2.bf16.msra.mxu0 0
        %880 = vmatprep.subr.bf16.mxu0 0
        %881 = vmatpush2.bf16.msra.mxu0 0
        %882 = vmatprep.mubr.bf16.mxu0 0
        %883 = vmatmul.mubr.bf16.gmra.mxu0 %v688
        %v884 = vpop.f32.mrf.mxu0
        %v885 = vadd.f32 0.0, %v884
        %v886 = vpop.f32.mrf.mxu0
        %v887 = vadd.f32 0.0, %v886
        %v888 = vpop.f32.mrf.mxu0
        %v889 = vadd.f32 0.0, %v888
        %v890 = vpop.f32.mrf.mxu0
        %v891 = vadd.f32 0.0, %v890
        %892 = vmatprep.mubr.bf16.mxu0 0
        %893 = vmatmul.mubr.bf16.gmra.mxu0 %v689
        %v894 = vpop.f32.mrf.mxu0
        %v895 = vadd.f32 0.0, %v894
        %v896 = vpop.f32.mrf.mxu0
        %v897 = vadd.f32 0.0, %v896
        %v898 = vpop.f32.mrf.mxu0
        %v899 = vadd.f32 0.0, %v898
        %v900 = vpop.f32.mrf.mxu0
        %v901 = vadd.f32 0.0, %v900
        %902 = vdwg.mxu0
        %903 = vmatprep.subr.bf16.mxu0 0
        %904 = vmatpush1.bf16.msra.mxu0 %v825
        %905 = vmatprep.subr.bf16.mxu0 0
        %906 = vmatpush1.bf16.msra.mxu0 %v822
        %907 = vmatprep.subr.bf16.mxu0 0
        %908 = vmatpush1.bf16.msra.mxu0 %v819
        %909 = vmatprep.subr.bf16.mxu0 0
        %910 = vmatpush1.bf16.msra.mxu0 %v816
        %911 = vmatprep.subr.bf16.mxu0 0
        %912 = vmatpush1.bf16.msra.mxu0 %v813
        %913 = vmatprep.subr.bf16.mxu0 0
        %914 = vmatpush1.bf16.msra.mxu0 %v810
        %915 = vmatprep.subr.bf16.mxu0 0
        %916 = vmatpush1.bf16.msra.mxu0 %v807
        %917 = vmatprep.subr.bf16.mxu0 0
        %918 = vmatpush1.bf16.msra.mxu0 %v804
        %919 = vmatprep.subr.bf16.mxu0 0
        %920 = vmatpush2.bf16.msra.mxu0 0
        %921 = vmatprep.subr.bf16.mxu0 0
        %922 = vmatpush2.bf16.msra.mxu0 0
        %923 = vmatprep.subr.bf16.mxu0 0
        %924 = vmatpush2.bf16.msra.mxu0 0
        %925 = vmatprep.subr.bf16.mxu0 0
        %926 = vmatpush2.bf16.msra.mxu0 0
        %927 = vmatprep.subr.bf16.mxu0 0
        %928 = vmatpush2.bf16.msra.mxu0 0
        %929 = vmatprep.subr.bf16.mxu0 0
        %930 = vmatpush2.bf16.msra.mxu0 0
        %931 = vmatprep.subr.bf16.mxu0 0
        %932 = vmatpush2.bf16.msra.mxu0 0
        %933 = vmatprep.subr.bf16.mxu0 0
        %934 = vmatpush2.bf16.msra.mxu0 0
        %935 = vmatprep.mubr.bf16.mxu0 0
        %936 = vmatmul.mubr.bf16.gmra.mxu0 %v688
        %v937 = vpop.f32.mrf.mxu0
        %v938 = vadd.f32 0.0, %v937
        %v939 = vpop.f32.mrf.mxu0
        %v940 = vpop.f32.mrf.mxu0
        %v941 = vadd.f32 0.0, %v940
        %v942 = vpop.f32.mrf.mxu0
        %943 = vmatprep.mubr.bf16.mxu0 0
        %944 = vmatmul.mubr.bf16.gmra.mxu0 %v689
        %v945 = vpop.f32.mrf.mxu0
        %v946 = vadd.f32 0.0, %v945
        %v947 = vpop.f32.mrf.mxu0
        %v948 = vpop.f32.mrf.mxu0
        %v949 = vadd.f32 0.0, %v948
        %v950 = vpop.f32.mrf.mxu0
        %951 = vdwg.mxu0
        %v952 = vpack.c.bf16 %v889, %v885
        %v953 = vpack.c.bf16 %v899, %v895
        %v954 = vpack.c.bf16 %v891, %v887
        %v955 = vpack.c.bf16 %v901, %v897
        %vm956 = vcmask 261120
        %v958 = vsel %vm956, %v952, 0
        %v961 = vsel %vm956, %v954, 0
        %963 = vmatprep.subr.bf16.mxu0 0
        %964 = vmatpush1.bf16.xpose.msra.mxu0 0
        %965 = vmatprep.subr.bf16.mxu0 0
        %966 = vmatpush1.bf16.xpose.msra.mxu0 0
        %967 = vmatprep.subr.bf16.mxu0 0
        %968 = vmatpush1.bf16.xpose.msra.mxu0 0
        %969 = vmatprep.subr.bf16.mxu0 0
        %970 = vmatpush1.bf16.xpose.msra.mxu0 0
        %971 = vmatprep.subr.bf16.mxu0 0
        %972 = vmatpush1.bf16.xpose.msra.mxu0 0
        %973 = vmatprep.subr.bf16.mxu0 0
        %974 = vmatpush1.bf16.xpose.msra.mxu0 0
        %975 = vmatprep.subr.bf16.mxu0 0
        %976 = vmatpush1.bf16.xpose.msra.mxu0 0
        %977 = vmatprep.subr.bf16.mxu0 0
        %978 = vmatpush1.bf16.xpose.msra.mxu0 %v961
        %979 = vmatprep.subr.bf16.mxu0 0
        %980 = vmatpush2.bf16.xpose.msra.mxu0 0
        %981 = vmatprep.subr.bf16.mxu0 0
        %982 = vmatpush2.bf16.xpose.msra.mxu0 0
        %983 = vmatprep.subr.bf16.mxu0 0
        %984 = vmatpush2.bf16.xpose.msra.mxu0 0
        %985 = vmatprep.subr.bf16.mxu0 0
        %986 = vmatpush2.bf16.xpose.msra.mxu0 0
        %987 = vmatprep.subr.bf16.mxu0 0
        %988 = vmatpush2.bf16.xpose.msra.mxu0 0
        %989 = vmatprep.subr.bf16.mxu0 0
        %990 = vmatpush2.bf16.xpose.msra.mxu0 0
        %991 = vmatprep.subr.bf16.mxu0 0
        %992 = vmatpush2.bf16.xpose.msra.mxu0 0
        %993 = vmatprep.subr.bf16.mxu0 0
        %994 = vmatpush2.bf16.xpose.msra.mxu0 0
        %995 = vmatprep.mubr.bf16.mxu0 0
        %996 = vmatmul.mubr.bf16.gmra.mxu0 %v958
        %v997 = vpop.f32.mrf.mxu0
        %v998 = vadd.f32 0.0, %v997
        %v999 = vpop.f32.mrf.mxu0
        %v1000 = vpop.f32.mrf.mxu0
        %v1001 = vadd.f32 0.0, %v1000
        %v1002 = vpop.f32.mrf.mxu0
        %1003 = vdwg.mxu0
        %v1005 = vsel %vm956, %v953, 0
        %v1008 = vsel %vm956, %v955, 0
        %1010 = vmatprep.subr.bf16.mxu0 0
        %1011 = vmatpush1.bf16.xpose.msra.mxu0 0
        %1012 = vmatprep.subr.bf16.mxu0 0
        %1013 = vmatpush1.bf16.xpose.msra.mxu0 0
        %1014 = vmatprep.subr.bf16.mxu0 0
        %1015 = vmatpush1.bf16.xpose.msra.mxu0 0
        %1016 = vmatprep.subr.bf16.mxu0 0
        %1017 = vmatpush1.bf16.xpose.msra.mxu0 0
        %1018 = vmatprep.subr.bf16.mxu0 0
        %1019 = vmatpush1.bf16.xpose.msra.mxu0 0
        %1020 = vmatprep.subr.bf16.mxu0 0
        %1021 = vmatpush1.bf16.xpose.msra.mxu0 0
        %1022 = vmatprep.subr.bf16.mxu0 0
        %1023 = vmatpush1.bf16.xpose.msra.mxu0 0
        %1024 = vmatprep.subr.bf16.mxu0 0
        %1025 = vmatpush1.bf16.xpose.msra.mxu0 %v1008
        %1026 = vmatprep.subr.bf16.mxu0 0
        %1027 = vmatpush2.bf16.xpose.msra.mxu0 0
        %1028 = vmatprep.subr.bf16.mxu0 0
        %1029 = vmatpush2.bf16.xpose.msra.mxu0 0
        %1030 = vmatprep.subr.bf16.mxu0 0
        %1031 = vmatpush2.bf16.xpose.msra.mxu0 0
        %1032 = vmatprep.subr.bf16.mxu0 0
        %1033 = vmatpush2.bf16.xpose.msra.mxu0 0
        %1034 = vmatprep.subr.bf16.mxu0 0
        %1035 = vmatpush2.bf16.xpose.msra.mxu0 0
        %1036 = vmatprep.subr.bf16.mxu0 0
        %1037 = vmatpush2.bf16.xpose.msra.mxu0 0
        %1038 = vmatprep.subr.bf16.mxu0 0
        %1039 = vmatpush2.bf16.xpose.msra.mxu0 0
        %1040 = vmatprep.subr.bf16.mxu0 0
        %1041 = vmatpush2.bf16.xpose.msra.mxu0 0
        %1042 = vmatprep.mubr.bf16.mxu0 0
        %1043 = vmatmul.mubr.bf16.gmra.mxu0 %v1005
        %v1044 = vpop.f32.mrf.mxu0
        %v1045 = vadd.f32 0.0, %v1044
        %v1046 = vpop.f32.mrf.mxu0
        %v1047 = vpop.f32.mrf.mxu0
        %v1048 = vadd.f32 0.0, %v1047
        %v1049 = vpop.f32.mrf.mxu0
        %1050 = vdwg.mxu0
        %v1051 = vmul.f32 %v998, 0.17677669
        %v1052 = vmul.f32 %v1001, 0.17677669
        %v1053 = vmul.f32 %v1045, 0.17677669
        %v1054 = vmul.f32 %v1048, 0.17677669
        %v1055 = vsel %vm617, 1, 0
        %v1056 = vsel %vm618, 1, 0
        %vm1057 = vcmp.eq.s32.totalorder %v1055, 1
        %vm1058 = vcmp.eq.s32.totalorder %v1056, 1
        %v1059 = vsel %vm1057, %v1051, -1e+30
        %v1060 = vsel %vm1058, %v1052, -1e+30
        %v1061 = vsel %vm1057, %v1053, -1e+30
        %v1062 = vsel %vm1058, %v1054, -1e+30
        %vm1063 = vcmask 130048
        %v1064 = vsel %vm1063, %v1059, -inf
        %1065 = vmax.xlane.f32.xlu0 %v1064
        %v1066 = vpop.xlane.xlu0 %1065
        %v1067 = vsel %vm1063, %v1060, -inf
        %1068 = vmax.xlane.f32.xlu0 %v1067
        %v1069 = vpop.xlane.xlu0 %1068
        %v1070 = vsel %vm1063, %v1061, -inf
        %1071 = vmax.xlane.f32.xlu0 %v1070
        %v1072 = vpop.xlane.xlu0 %1071
        %v1073 = vsel %vm1063, %v1062, -inf
        %1074 = vmax.xlane.f32.xlu0 %v1073
        %v1075 = vpop.xlane.xlu0 %1074
        %v1076 = vsub.f32 %v1059, %v1066
        %v1077 = vsub.f32 %v1060, %v1069
        %v1078 = vsub.f32 %v1061, %v1072
        %v1079 = vsub.f32 %v1062, %v1075
        %v1080 = vmul.f32 %v1076, 1.442695
        %v1081 = vpow.pop %v1080
        %v1082 = vmul.f32 %v1077, 1.442695
        %v1083 = vpow.pop %v1082
        %v1084 = vmul.f32 %v1078, 1.442695
        %v1085 = vpow.pop %v1084
        %v1086 = vmul.f32 %v1079, 1.442695
        %v1087 = vpow.pop %v1086
        %v1088 = vsel %vm1063, %v1081, 0.0
        %1089 = vadd.xlane.f32.xlu0 %v1088
        %v1090 = vpop.xlane.xlu0 %1089
        %v1091 = vsel %vm1063, %v1083, 0.0
        %1092 = vadd.xlane.f32.xlu0 %v1091
        %v1093 = vpop.xlane.xlu0 %1092
        %v1094 = vsel %vm1063, %v1085, 0.0
        %1095 = vadd.xlane.f32.xlu0 %v1094
        %v1096 = vpop.xlane.xlu0 %1095
        %v1097 = vsel %vm1063, %v1087, 0.0
        %1098 = vadd.xlane.f32.xlu0 %v1097
        %v1099 = vpop.xlane.xlu0 %1098
        %v1100 = vrcp.pop %v1090
        %v1101 = vrcp.pop %v1093
        %v1102 = vrcp.pop %v1096
        %v1103 = vrcp.pop %v1099
        %v1104 = vmul.f32 %v1081, %v1100
        %v1105 = vmul.f32 %v1083, %v1101
        %v1106 = vmul.f32 %v1085, %v1102
        %v1107 = vmul.f32 %v1087, %v1103
        %v1108 = vpack.c.bf16 %v1105, %v1104
        %v1109 = vpack.c.bf16 %v1107, %v1106
        %v1110 = vpack.c.bf16 %v941, %v938
        %v1111 = vpack.c.bf16 %v949, %v946
        %v1113 = vsel %vm1063, %v1108, 0
        %1115 = vmatprep.subr.bf16.mxu0 0
        %1116 = vmatpush1.bf16.msra.mxu0 0
        %1117 = vmatprep.subr.bf16.mxu0 0
        %1118 = vmatpush1.bf16.msra.mxu0 0
        %1119 = vmatprep.subr.bf16.mxu0 0
        %1120 = vmatpush1.bf16.msra.mxu0 0
        %1121 = vmatprep.subr.bf16.mxu0 0
        %1122 = vmatpush1.bf16.msra.mxu0 0
        %1123 = vmatprep.subr.bf16.mxu0 0
        %1124 = vmatpush1.bf16.msra.mxu0 0
        %1125 = vmatprep.subr.bf16.mxu0 0
        %1126 = vmatpush1.bf16.msra.mxu0 0
        %1127 = vmatprep.subr.bf16.mxu0 0
        %1128 = vmatpush1.bf16.msra.mxu0 0
        %1129 = vmatprep.subr.bf16.mxu0 0
        %1130 = vmatpush1.bf16.msra.mxu0 %v1110
        %1131 = vmatprep.subr.bf16.mxu0 0
        %1132 = vmatpush2.bf16.msra.mxu0 0
        %1133 = vmatprep.subr.bf16.mxu0 0
        %1134 = vmatpush2.bf16.msra.mxu0 0
        %1135 = vmatprep.subr.bf16.mxu0 0
        %1136 = vmatpush2.bf16.msra.mxu0 0
        %1137 = vmatprep.subr.bf16.mxu0 0
        %1138 = vmatpush2.bf16.msra.mxu0 0
        %1139 = vmatprep.subr.bf16.mxu0 0
        %1140 = vmatpush2.bf16.msra.mxu0 0
        %1141 = vmatprep.subr.bf16.mxu0 0
        %1142 = vmatpush2.bf16.msra.mxu0 0
        %1143 = vmatprep.subr.bf16.mxu0 0
        %1144 = vmatpush2.bf16.msra.mxu0 0
        %1145 = vmatprep.subr.bf16.mxu0 0
        %1146 = vmatpush2.bf16.msra.mxu0 0
        %1147 = vmatprep.mubr.bf16.mxu0 0
        %1148 = vmatmul.mubr.bf16.gmra.mxu0 %v1113
        %v1149 = vpop.f32.mrf.mxu0
        %v1150 = vadd.f32 0.0, %v1149
        %v1151 = vpop.f32.mrf.mxu0
        %v1152 = vpop.f32.mrf.mxu0
        %v1153 = vadd.f32 0.0, %v1152
        %v1154 = vpop.f32.mrf.mxu0
        %1155 = vdwg.mxu0
        %v1157 = vsel %vm1063, %v1109, 0
        %1159 = vmatprep.subr.bf16.mxu0 0
        %1160 = vmatpush1.bf16.msra.mxu0 0
        %1161 = vmatprep.subr.bf16.mxu0 0
        %1162 = vmatpush1.bf16.msra.mxu0 0
        %1163 = vmatprep.subr.bf16.mxu0 0
        %1164 = vmatpush1.bf16.msra.mxu0 0
        %1165 = vmatprep.subr.bf16.mxu0 0
        %1166 = vmatpush1.bf16.msra.mxu0 0
        %1167 = vmatprep.subr.bf16.mxu0 0
        %1168 = vmatpush1.bf16.msra.mxu0 0
        %1169 = vmatprep.subr.bf16.mxu0 0
        %1170 = vmatpush1.bf16.msra.mxu0 0
        %1171 = vmatprep.subr.bf16.mxu0 0
        %1172 = vmatpush1.bf16.msra.mxu0 0
        %1173 = vmatprep.subr.bf16.mxu0 0
        %1174 = vmatpush1.bf16.msra.mxu0 %v1111
        %1175 = vmatprep.subr.bf16.mxu0 0
        %1176 = vmatpush2.bf16.msra.mxu0 0
        %1177 = vmatprep.subr.bf16.mxu0 0
        %1178 = vmatpush2.bf16.msra.mxu0 0
        %1179 = vmatprep.subr.bf16.mxu0 0
        %1180 = vmatpush2.bf16.msra.mxu0 0
        %1181 = vmatprep.subr.bf16.mxu0 0
        %1182 = vmatpush2.bf16.msra.mxu0 0
        %1183 = vmatprep.subr.bf16.mxu0 0
        %1184 = vmatpush2.bf16.msra.mxu0 0
        %1185 = vmatprep.subr.bf16.mxu0 0
        %1186 = vmatpush2.bf16.msra.mxu0 0
        %1187 = vmatprep.subr.bf16.mxu0 0
        %1188 = vmatpush2.bf16.msra.mxu0 0
        %1189 = vmatprep.subr.bf16.mxu0 0
        %1190 = vmatpush2.bf16.msra.mxu0 0
        %1191 = vmatprep.mubr.bf16.mxu0 0
        %1192 = vmatmul.mubr.bf16.gmra.mxu0 %v1157
        %v1193 = vpop.f32.mrf.mxu0
        %v1194 = vadd.f32 0.0, %v1193
        %v1195 = vpop.f32.mrf.mxu0
        %v1196 = vpop.f32.mrf.mxu0
        %v1197 = vadd.f32 0.0, %v1196
        %v1198 = vpop.f32.mrf.mxu0
        %1199 = vdwg.mxu0
        %1201 = vrot.lane.b32.xlu0 %v952, 96
        %v1202 = vpop.permute.xlu0 %1201
        %1204 = vrot.lane.b32.xlu0 %v954, 96
        %v1205 = vpop.permute.xlu0 %1204
        %v1207 = vsel %vm956, %v1202, 0
        %v1210 = vsel %vm956, %v1205, 0
        %1212 = vmatprep.subr.bf16.mxu0 0
        %1213 = vmatpush1.bf16.xpose.msra.mxu0 0
        %1214 = vmatprep.subr.bf16.mxu0 0
        %1215 = vmatpush1.bf16.xpose.msra.mxu0 0
        %1216 = vmatprep.subr.bf16.mxu0 0
        %1217 = vmatpush1.bf16.xpose.msra.mxu0 0
        %1218 = vmatprep.subr.bf16.mxu0 0
        %1219 = vmatpush1.bf16.xpose.msra.mxu0 0
        %1220 = vmatprep.subr.bf16.mxu0 0
        %1221 = vmatpush1.bf16.xpose.msra.mxu0 0
        %1222 = vmatprep.subr.bf16.mxu0 0
        %1223 = vmatpush1.bf16.xpose.msra.mxu0 0
        %1224 = vmatprep.subr.bf16.mxu0 0
        %1225 = vmatpush1.bf16.xpose.msra.mxu0 0
        %1226 = vmatprep.subr.bf16.mxu0 0
        %1227 = vmatpush1.bf16.xpose.msra.mxu0 %v1210
        %1228 = vmatprep.subr.bf16.mxu0 0
        %1229 = vmatpush2.bf16.xpose.msra.mxu0 0
        %1230 = vmatprep.subr.bf16.mxu0 0
        %1231 = vmatpush2.bf16.xpose.msra.mxu0 0
        %1232 = vmatprep.subr.bf16.mxu0 0
        %1233 = vmatpush2.bf16.xpose.msra.mxu0 0
        %1234 = vmatprep.subr.bf16.mxu0 0
        %1235 = vmatpush2.bf16.xpose.msra.mxu0 0
        %1236 = vmatprep.subr.bf16.mxu0 0
        %1237 = vmatpush2.bf16.xpose.msra.mxu0 0
        %1238 = vmatprep.subr.bf16.mxu0 0
        %1239 = vmatpush2.bf16.xpose.msra.mxu0 0
        %1240 = vmatprep.subr.bf16.mxu0 0
        %1241 = vmatpush2.bf16.xpose.msra.mxu0 0
        %1242 = vmatprep.subr.bf16.mxu0 0
        %1243 = vmatpush2.bf16.xpose.msra.mxu0 0
        %1244 = vmatprep.mubr.bf16.mxu0 0
        %1245 = vmatmul.mubr.bf16.gmra.mxu0 %v1207
        %v1246 = vpop.f32.mrf.mxu0
        %v1247 = vadd.f32 0.0, %v1246
        %v1248 = vpop.f32.mrf.mxu0
        %v1249 = vpop.f32.mrf.mxu0
        %v1250 = vadd.f32 0.0, %v1249
        %v1251 = vpop.f32.mrf.mxu0
        %1252 = vdwg.mxu0
        %1254 = vrot.lane.b32.xlu0 %v953, 96
        %v1255 = vpop.permute.xlu0 %1254
        %1257 = vrot.lane.b32.xlu0 %v955, 96
        %v1258 = vpop.permute.xlu0 %1257
        %v1260 = vsel %vm956, %v1255, 0
        %v1263 = vsel %vm956, %v1258, 0
        %1265 = vmatprep.subr.bf16.mxu0 0
        %1266 = vmatpush1.bf16.xpose.msra.mxu0 0
        %1267 = vmatprep.subr.bf16.mxu0 0
        %1268 = vmatpush1.bf16.xpose.msra.mxu0 0
        %1269 = vmatprep.subr.bf16.mxu0 0
        %1270 = vmatpush1.bf16.xpose.msra.mxu0 0
        %1271 = vmatprep.subr.bf16.mxu0 0
        %1272 = vmatpush1.bf16.xpose.msra.mxu0 0
        %1273 = vmatprep.subr.bf16.mxu0 0
        %1274 = vmatpush1.bf16.xpose.msra.mxu0 0
        %1275 = vmatprep.subr.bf16.mxu0 0
        %1276 = vmatpush1.bf16.xpose.msra.mxu0 0
        %1277 = vmatprep.subr.bf16.mxu0 0
        %1278 = vmatpush1.bf16.xpose.msra.mxu0 0
        %1279 = vmatprep.subr.bf16.mxu0 0
        %1280 = vmatpush1.bf16.xpose.msra.mxu0 %v1263
        %1281 = vmatprep.subr.bf16.mxu0 0
        %1282 = vmatpush2.bf16.xpose.msra.mxu0 0
        %1283 = vmatprep.subr.bf16.mxu0 0
        %1284 = vmatpush2.bf16.xpose.msra.mxu0 0
        %1285 = vmatprep.subr.bf16.mxu0 0
        %1286 = vmatpush2.bf16.xpose.msra.mxu0 0
        %1287 = vmatprep.subr.bf16.mxu0 0
        %1288 = vmatpush2.bf16.xpose.msra.mxu0 0
        %1289 = vmatprep.subr.bf16.mxu0 0
        %1290 = vmatpush2.bf16.xpose.msra.mxu0 0
        %1291 = vmatprep.subr.bf16.mxu0 0
        %1292 = vmatpush2.bf16.xpose.msra.mxu0 0
        %1293 = vmatprep.subr.bf16.mxu0 0
        %1294 = vmatpush2.bf16.xpose.msra.mxu0 0
        %1295 = vmatprep.subr.bf16.mxu0 0
        %1296 = vmatpush2.bf16.xpose.msra.mxu0 0
        %1297 = vmatprep.mubr.bf16.mxu0 0
        %1298 = vmatmul.mubr.bf16.gmra.mxu0 %v1260
        %v1299 = vpop.f32.mrf.mxu0
        %v1300 = vadd.f32 0.0, %v1299
        %v1301 = vpop.f32.mrf.mxu0
        %v1302 = vpop.f32.mrf.mxu0
        %v1303 = vadd.f32 0.0, %v1302
        %v1304 = vpop.f32.mrf.mxu0
        %1305 = vdwg.mxu0
        %v1306 = vmul.f32 %v1247, 0.17677669
        %v1307 = vmul.f32 %v1250, 0.17677669
        %v1308 = vmul.f32 %v1300, 0.17677669
        %v1309 = vmul.f32 %v1303, 0.17677669
        %v1310 = vsel %vm1057, %v1306, -1e+30
        %v1311 = vsel %vm1058, %v1307, -1e+30
        %v1312 = vsel %vm1057, %v1308, -1e+30
        %v1313 = vsel %vm1058, %v1309, -1e+30
        %v1314 = vsel %vm1063, %v1310, -inf
        %1315 = vmax.xlane.f32.xlu0 %v1314
        %v1316 = vpop.xlane.xlu0 %1315
        %v1317 = vsel %vm1063, %v1311, -inf
        %1318 = vmax.xlane.f32.xlu0 %v1317
        %v1319 = vpop.xlane.xlu0 %1318
        %v1320 = vsel %vm1063, %v1312, -inf
        %1321 = vmax.xlane.f32.xlu0 %v1320
        %v1322 = vpop.xlane.xlu0 %1321
        %v1323 = vsel %vm1063, %v1313, -inf
        %1324 = vmax.xlane.f32.xlu0 %v1323
        %v1325 = vpop.xlane.xlu0 %1324
        %v1326 = vsub.f32 %v1310, %v1316
        %v1327 = vsub.f32 %v1311, %v1319
        %v1328 = vsub.f32 %v1312, %v1322
        %v1329 = vsub.f32 %v1313, %v1325
        %v1330 = vmul.f32 %v1326, 1.442695
        %v1331 = vpow.pop %v1330
        %v1332 = vmul.f32 %v1327, 1.442695
        %v1333 = vpow.pop %v1332
        %v1334 = vmul.f32 %v1328, 1.442695
        %v1335 = vpow.pop %v1334
        %v1336 = vmul.f32 %v1329, 1.442695
        %v1337 = vpow.pop %v1336
        %v1338 = vsel %vm1063, %v1331, 0.0
        %1339 = vadd.xlane.f32.xlu0 %v1338
        %v1340 = vpop.xlane.xlu0 %1339
        %v1341 = vsel %vm1063, %v1333, 0.0
        %1342 = vadd.xlane.f32.xlu0 %v1341
        %v1343 = vpop.xlane.xlu0 %1342
        %v1344 = vsel %vm1063, %v1335, 0.0
        %1345 = vadd.xlane.f32.xlu0 %v1344
        %v1346 = vpop.xlane.xlu0 %1345
        %v1347 = vsel %vm1063, %v1337, 0.0
        %1348 = vadd.xlane.f32.xlu0 %v1347
        %v1349 = vpop.xlane.xlu0 %1348
        %v1350 = vrcp.pop %v1340
        %v1351 = vrcp.pop %v1343
        %v1352 = vrcp.pop %v1346
        %v1353 = vrcp.pop %v1349
        %v1354 = vmul.f32 %v1331, %v1350
        %v1355 = vmul.f32 %v1333, %v1351
        %v1356 = vmul.f32 %v1335, %v1352
        %v1357 = vmul.f32 %v1337, %v1353
        %v1358 = vpack.c.bf16 %v1355, %v1354
        %v1359 = vpack.c.bf16 %v1357, %v1356
        %1361 = vrot.lane.b32.xlu0 %v1110, 96
        %v1362 = vpop.permute.xlu0 %1361
        %v1365 = vsel %vm1063, %v1358, 0
        %1367 = vmatprep.subr.bf16.mxu0 0
        %1368 = vmatpush1.bf16.msra.mxu0 0
        %1369 = vmatprep.subr.bf16.mxu0 0
        %1370 = vmatpush1.bf16.msra.mxu0 0
        %1371 = vmatprep.subr.bf16.mxu0 0
        %1372 = vmatpush1.bf16.msra.mxu0 0
        %1373 = vmatprep.subr.bf16.mxu0 0
        %1374 = vmatpush1.bf16.msra.mxu0 0
        %1375 = vmatprep.subr.bf16.mxu0 0
        %1376 = vmatpush1.bf16.msra.mxu0 0
        %1377 = vmatprep.subr.bf16.mxu0 0
        %1378 = vmatpush1.bf16.msra.mxu0 0
        %1379 = vmatprep.subr.bf16.mxu0 0
        %1380 = vmatpush1.bf16.msra.mxu0 0
        %1381 = vmatprep.subr.bf16.mxu0 0
        %1382 = vmatpush1.bf16.msra.mxu0 %v1362
        %1383 = vmatprep.subr.bf16.mxu0 0
        %1384 = vmatpush2.bf16.msra.mxu0 0
        %1385 = vmatprep.subr.bf16.mxu0 0
        %1386 = vmatpush2.bf16.msra.mxu0 0
        %1387 = vmatprep.subr.bf16.mxu0 0
        %1388 = vmatpush2.bf16.msra.mxu0 0
        %1389 = vmatprep.subr.bf16.mxu0 0
        %1390 = vmatpush2.bf16.msra.mxu0 0
        %1391 = vmatprep.subr.bf16.mxu0 0
        %1392 = vmatpush2.bf16.msra.mxu0 0
        %1393 = vmatprep.subr.bf16.mxu0 0
        %1394 = vmatpush2.bf16.msra.mxu0 0
        %1395 = vmatprep.subr.bf16.mxu0 0
        %1396 = vmatpush2.bf16.msra.mxu0 0
        %1397 = vmatprep.subr.bf16.mxu0 0
        %1398 = vmatpush2.bf16.msra.mxu0 0
        %1399 = vmatprep.mubr.bf16.mxu0 0
        %1400 = vmatmul.mubr.bf16.gmra.mxu0 %v1365
        %v1401 = vpop.f32.mrf.mxu0
        %v1402 = vadd.f32 0.0, %v1401
        %v1403 = vpop.f32.mrf.mxu0
        %v1404 = vpop.f32.mrf.mxu0
        %v1405 = vadd.f32 0.0, %v1404
        %v1406 = vpop.f32.mrf.mxu0
        %1407 = vdwg.mxu0
        %1409 = vrot.lane.b32.xlu0 %v1111, 96
        %v1410 = vpop.permute.xlu0 %1409
        %v1413 = vsel %vm1063, %v1359, 0
        %1415 = vmatprep.subr.bf16.mxu0 0
        %1416 = vmatpush1.bf16.msra.mxu0 0
        %1417 = vmatprep.subr.bf16.mxu0 0
        %1418 = vmatpush1.bf16.msra.mxu0 0
        %1419 = vmatprep.subr.bf16.mxu0 0
        %1420 = vmatpush1.bf16.msra.mxu0 0
        %1421 = vmatprep.subr.bf16.mxu0 0
        %1422 = vmatpush1.bf16.msra.mxu0 0
        %1423 = vmatprep.subr.bf16.mxu0 0
        %1424 = vmatpush1.bf16.msra.mxu0 0
        %1425 = vmatprep.subr.bf16.mxu0 0
        %1426 = vmatpush1.bf16.msra.mxu0 0
        %1427 = vmatprep.subr.bf16.mxu0 0
        %1428 = vmatpush1.bf16.msra.mxu0 0
        %1429 = vmatprep.subr.bf16.mxu0 0
        %1430 = vmatpush1.bf16.msra.mxu0 %v1410
        %1431 = vmatprep.subr.bf16.mxu0 0
        %1432 = vmatpush2.bf16.msra.mxu0 0
        %1433 = vmatprep.subr.bf16.mxu0 0
        %1434 = vmatpush2.bf16.msra.mxu0 0
        %1435 = vmatprep.subr.bf16.mxu0 0
        %1436 = vmatpush2.bf16.msra.mxu0 0
        %1437 = vmatprep.subr.bf16.mxu0 0
        %1438 = vmatpush2.bf16.msra.mxu0 0
        %1439 = vmatprep.subr.bf16.mxu0 0
        %1440 = vmatpush2.bf16.msra.mxu0 0
        %1441 = vmatprep.subr.bf16.mxu0 0
        %1442 = vmatpush2.bf16.msra.mxu0 0
        %1443 = vmatprep.subr.bf16.mxu0 0
        %1444 = vmatpush2.bf16.msra.mxu0 0
        %1445 = vmatprep.subr.bf16.mxu0 0
        %1446 = vmatpush2.bf16.msra.mxu0 0
        %1447 = vmatprep.mubr.bf16.mxu0 0
        %1448 = vmatmul.mubr.bf16.gmra.mxu0 %v1413
        %v1449 = vpop.f32.mrf.mxu0
        %v1450 = vadd.f32 0.0, %v1449
        %v1451 = vpop.f32.mrf.mxu0
        %v1452 = vpop.f32.mrf.mxu0
        %v1453 = vadd.f32 0.0, %v1452
        %v1454 = vpop.f32.mrf.mxu0
        %1455 = vdwg.mxu0
        %1456 = vrot.lane.b32.xlu0 %v952, 64
        %v1457 = vpop.permute.xlu0 %1456
        %1458 = vrot.lane.b32.xlu0 %v954, 64
        %v1459 = vpop.permute.xlu0 %1458
        %v1461 = vsel %vm956, %v1457, 0
        %v1464 = vsel %vm956, %v1459, 0
        %1466 = vmatprep.subr.bf16.mxu0 0
        %1467 = vmatpush1.bf16.xpose.msra.mxu0 0
        %1468 = vmatprep.subr.bf16.mxu0 0
        %1469 = vmatpush1.bf16.xpose.msra.mxu0 0
        %1470 = vmatprep.subr.bf16.mxu0 0
        %1471 = vmatpush1.bf16.xpose.msra.mxu0 0
        %1472 = vmatprep.subr.bf16.mxu0 0
        %1473 = vmatpush1.bf16.xpose.msra.mxu0 0
        %1474 = vmatprep.subr.bf16.mxu0 0
        %1475 = vmatpush1.bf16.xpose.msra.mxu0 0
        %1476 = vmatprep.subr.bf16.mxu0 0
        %1477 = vmatpush1.bf16.xpose.msra.mxu0 0
        %1478 = vmatprep.subr.bf16.mxu0 0
        %1479 = vmatpush1.bf16.xpose.msra.mxu0 0
        %1480 = vmatprep.subr.bf16.mxu0 0
        %1481 = vmatpush1.bf16.xpose.msra.mxu0 %v1464
        %1482 = vmatprep.subr.bf16.mxu0 0
        %1483 = vmatpush2.bf16.xpose.msra.mxu0 0
        %1484 = vmatprep.subr.bf16.mxu0 0
        %1485 = vmatpush2.bf16.xpose.msra.mxu0 0
        %1486 = vmatprep.subr.bf16.mxu0 0
        %1487 = vmatpush2.bf16.xpose.msra.mxu0 0
        %1488 = vmatprep.subr.bf16.mxu0 0
        %1489 = vmatpush2.bf16.xpose.msra.mxu0 0
        %1490 = vmatprep.subr.bf16.mxu0 0
        %1491 = vmatpush2.bf16.xpose.msra.mxu0 0
        %1492 = vmatprep.subr.bf16.mxu0 0
        %1493 = vmatpush2.bf16.xpose.msra.mxu0 0
        %1494 = vmatprep.subr.bf16.mxu0 0
        %1495 = vmatpush2.bf16.xpose.msra.mxu0 0
        %1496 = vmatprep.subr.bf16.mxu0 0
        %1497 = vmatpush2.bf16.xpose.msra.mxu0 0
        %1498 = vmatprep.mubr.bf16.mxu0 0
        %1499 = vmatmul.mubr.bf16.gmra.mxu0 %v1461
        %v1500 = vpop.f32.mrf.mxu0
        %v1501 = vadd.f32 0.0, %v1500
        %v1502 = vpop.f32.mrf.mxu0
        %v1503 = vpop.f32.mrf.mxu0
        %v1504 = vadd.f32 0.0, %v1503
        %v1505 = vpop.f32.mrf.mxu0
        %1506 = vdwg.mxu0
        %1507 = vrot.lane.b32.xlu0 %v953, 64
        %v1508 = vpop.permute.xlu0 %1507
        %1509 = vrot.lane.b32.xlu0 %v955, 64
        %v1510 = vpop.permute.xlu0 %1509
        %v1512 = vsel %vm956, %v1508, 0
        %v1515 = vsel %vm956, %v1510, 0
        %1517 = vmatprep.subr.bf16.mxu0 0
        %1518 = vmatpush1.bf16.xpose.msra.mxu0 0
        %1519 = vmatprep.subr.bf16.mxu0 0
        %1520 = vmatpush1.bf16.xpose.msra.mxu0 0
        %1521 = vmatprep.subr.bf16.mxu0 0
        %1522 = vmatpush1.bf16.xpose.msra.mxu0 0
        %1523 = vmatprep.subr.bf16.mxu0 0
        %1524 = vmatpush1.bf16.xpose.msra.mxu0 0
        %1525 = vmatprep.subr.bf16.mxu0 0
        %1526 = vmatpush1.bf16.xpose.msra.mxu0 0
        %1527 = vmatprep.subr.bf16.mxu0 0
        %1528 = vmatpush1.bf16.xpose.msra.mxu0 0
        %1529 = vmatprep.subr.bf16.mxu0 0
        %1530 = vmatpush1.bf16.xpose.msra.mxu0 0
        %1531 = vmatprep.subr.bf16.mxu0 0
        %1532 = vmatpush1.bf16.xpose.msra.mxu0 %v1515
        %1533 = vmatprep.subr.bf16.mxu0 0
        %1534 = vmatpush2.bf16.xpose.msra.mxu0 0
        %1535 = vmatprep.subr.bf16.mxu0 0
        %1536 = vmatpush2.bf16.xpose.msra.mxu0 0
        %1537 = vmatprep.subr.bf16.mxu0 0
        %1538 = vmatpush2.bf16.xpose.msra.mxu0 0
        %1539 = vmatprep.subr.bf16.mxu0 0
        %1540 = vmatpush2.bf16.xpose.msra.mxu0 0
        %1541 = vmatprep.subr.bf16.mxu0 0
        %1542 = vmatpush2.bf16.xpose.msra.mxu0 0
        %1543 = vmatprep.subr.bf16.mxu0 0
        %1544 = vmatpush2.bf16.xpose.msra.mxu0 0
        %1545 = vmatprep.subr.bf16.mxu0 0
        %1546 = vmatpush2.bf16.xpose.msra.mxu0 0
        %1547 = vmatprep.subr.bf16.mxu0 0
        %1548 = vmatpush2.bf16.xpose.msra.mxu0 0
        %1549 = vmatprep.mubr.bf16.mxu0 0
        %1550 = vmatmul.mubr.bf16.gmra.mxu0 %v1512
        %v1551 = vpop.f32.mrf.mxu0
        %v1552 = vadd.f32 0.0, %v1551
        %v1553 = vpop.f32.mrf.mxu0
        %v1554 = vpop.f32.mrf.mxu0
        %v1555 = vadd.f32 0.0, %v1554
        %v1556 = vpop.f32.mrf.mxu0
        %1557 = vdwg.mxu0
        %v1558 = vmul.f32 %v1501, 0.17677669
        %v1559 = vmul.f32 %v1504, 0.17677669
        %v1560 = vmul.f32 %v1552, 0.17677669
        %v1561 = vmul.f32 %v1555, 0.17677669
        %v1562 = vsel %vm1057, %v1558, -1e+30
        %v1563 = vsel %vm1058, %v1559, -1e+30
        %v1564 = vsel %vm1057, %v1560, -1e+30
        %v1565 = vsel %vm1058, %v1561, -1e+30
        %v1566 = vsel %vm1063, %v1562, -inf
        %1567 = vmax.xlane.f32.xlu0 %v1566
        %v1568 = vpop.xlane.xlu0 %1567
        %v1569 = vsel %vm1063, %v1563, -inf
        %1570 = vmax.xlane.f32.xlu0 %v1569
        %v1571 = vpop.xlane.xlu0 %1570
        %v1572 = vsel %vm1063, %v1564, -inf
        %1573 = vmax.xlane.f32.xlu0 %v1572
        %v1574 = vpop.xlane.xlu0 %1573
        %v1575 = vsel %vm1063, %v1565, -inf
        %1576 = vmax.xlane.f32.xlu0 %v1575
        %v1577 = vpop.xlane.xlu0 %1576
        %v1578 = vsub.f32 %v1562, %v1568
        %v1579 = vsub.f32 %v1563, %v1571
        %v1580 = vsub.f32 %v1564, %v1574
        %v1581 = vsub.f32 %v1565, %v1577
        %v1582 = vmul.f32 %v1578, 1.442695
        %v1583 = vpow.pop %v1582
        %v1584 = vmul.f32 %v1579, 1.442695
        %v1585 = vpow.pop %v1584
        %v1586 = vmul.f32 %v1580, 1.442695
        %v1587 = vpow.pop %v1586
        %v1588 = vmul.f32 %v1581, 1.442695
        %v1589 = vpow.pop %v1588
        %v1590 = vsel %vm1063, %v1583, 0.0
        %1591 = vadd.xlane.f32.xlu0 %v1590
        %v1592 = vpop.xlane.xlu0 %1591
        %v1593 = vsel %vm1063, %v1585, 0.0
        %1594 = vadd.xlane.f32.xlu0 %v1593
        %v1595 = vpop.xlane.xlu0 %1594
        %v1596 = vsel %vm1063, %v1587, 0.0
        %1597 = vadd.xlane.f32.xlu0 %v1596
        %v1598 = vpop.xlane.xlu0 %1597
        %v1599 = vsel %vm1063, %v1589, 0.0
        %1600 = vadd.xlane.f32.xlu0 %v1599
        %v1601 = vpop.xlane.xlu0 %1600
        %v1602 = vrcp.pop %v1592
        %v1603 = vrcp.pop %v1595
        %v1604 = vrcp.pop %v1598
        %v1605 = vrcp.pop %v1601
        %v1606 = vmul.f32 %v1583, %v1602
        %v1607 = vmul.f32 %v1585, %v1603
        %v1608 = vmul.f32 %v1587, %v1604
        %v1609 = vmul.f32 %v1589, %v1605
        %v1610 = vpack.c.bf16 %v1607, %v1606
        %v1611 = vpack.c.bf16 %v1609, %v1608
        %1612 = vrot.lane.b32.xlu0 %v1110, 64
        %v1613 = vpop.permute.xlu0 %1612
        %v1616 = vsel %vm1063, %v1610, 0
        %1618 = vmatprep.subr.bf16.mxu0 0
        %1619 = vmatpush1.bf16.msra.mxu0 0
        %1620 = vmatprep.subr.bf16.mxu0 0
        %1621 = vmatpush1.bf16.msra.mxu0 0
        %1622 = vmatprep.subr.bf16.mxu0 0
        %1623 = vmatpush1.bf16.msra.mxu0 0
        %1624 = vmatprep.subr.bf16.mxu0 0
        %1625 = vmatpush1.bf16.msra.mxu0 0
        %1626 = vmatprep.subr.bf16.mxu0 0
        %1627 = vmatpush1.bf16.msra.mxu0 0
        %1628 = vmatprep.subr.bf16.mxu0 0
        %1629 = vmatpush1.bf16.msra.mxu0 0
        %1630 = vmatprep.subr.bf16.mxu0 0
        %1631 = vmatpush1.bf16.msra.mxu0 0
        %1632 = vmatprep.subr.bf16.mxu0 0
        %1633 = vmatpush1.bf16.msra.mxu0 %v1613
        %1634 = vmatprep.subr.bf16.mxu0 0
        %1635 = vmatpush2.bf16.msra.mxu0 0
        %1636 = vmatprep.subr.bf16.mxu0 0
        %1637 = vmatpush2.bf16.msra.mxu0 0
        %1638 = vmatprep.subr.bf16.mxu0 0
        %1639 = vmatpush2.bf16.msra.mxu0 0
        %1640 = vmatprep.subr.bf16.mxu0 0
        %1641 = vmatpush2.bf16.msra.mxu0 0
        %1642 = vmatprep.subr.bf16.mxu0 0
        %1643 = vmatpush2.bf16.msra.mxu0 0
        %1644 = vmatprep.subr.bf16.mxu0 0
        %1645 = vmatpush2.bf16.msra.mxu0 0
        %1646 = vmatprep.subr.bf16.mxu0 0
        %1647 = vmatpush2.bf16.msra.mxu0 0
        %1648 = vmatprep.subr.bf16.mxu0 0
        %1649 = vmatpush2.bf16.msra.mxu0 0
        %1650 = vmatprep.mubr.bf16.mxu0 0
        %1651 = vmatmul.mubr.bf16.gmra.mxu0 %v1616
        %v1652 = vpop.f32.mrf.mxu0
        %v1653 = vadd.f32 0.0, %v1652
        %v1654 = vpop.f32.mrf.mxu0
        %v1655 = vpop.f32.mrf.mxu0
        %v1656 = vadd.f32 0.0, %v1655
        %v1657 = vpop.f32.mrf.mxu0
        %1658 = vdwg.mxu0
        %1659 = vrot.lane.b32.xlu0 %v1111, 64
        %v1660 = vpop.permute.xlu0 %1659
        %v1663 = vsel %vm1063, %v1611, 0
        %1665 = vmatprep.subr.bf16.mxu0 0
        %1666 = vmatpush1.bf16.msra.mxu0 0
        %1667 = vmatprep.subr.bf16.mxu0 0
        %1668 = vmatpush1.bf16.msra.mxu0 0
        %1669 = vmatprep.subr.bf16.mxu0 0
        %1670 = vmatpush1.bf16.msra.mxu0 0
        %1671 = vmatprep.subr.bf16.mxu0 0
        %1672 = vmatpush1.bf16.msra.mxu0 0
        %1673 = vmatprep.subr.bf16.mxu0 0
        %1674 = vmatpush1.bf16.msra.mxu0 0
        %1675 = vmatprep.subr.bf16.mxu0 0
        %1676 = vmatpush1.bf16.msra.mxu0 0
        %1677 = vmatprep.subr.bf16.mxu0 0
        %1678 = vmatpush1.bf16.msra.mxu0 0
        %1679 = vmatprep.subr.bf16.mxu0 0
        %1680 = vmatpush1.bf16.msra.mxu0 %v1660
        %1681 = vmatprep.subr.bf16.mxu0 0
        %1682 = vmatpush2.bf16.msra.mxu0 0
        %1683 = vmatprep.subr.bf16.mxu0 0
        %1684 = vmatpush2.bf16.msra.mxu0 0
        %1685 = vmatprep.subr.bf16.mxu0 0
        %1686 = vmatpush2.bf16.msra.mxu0 0
        %1687 = vmatprep.subr.bf16.mxu0 0
        %1688 = vmatpush2.bf16.msra.mxu0 0
        %1689 = vmatprep.subr.bf16.mxu0 0
        %1690 = vmatpush2.bf16.msra.mxu0 0
        %1691 = vmatprep.subr.bf16.mxu0 0
        %1692 = vmatpush2.bf16.msra.mxu0 0
        %1693 = vmatprep.subr.bf16.mxu0 0
        %1694 = vmatpush2.bf16.msra.mxu0 0
        %1695 = vmatprep.subr.bf16.mxu0 0
        %1696 = vmatpush2.bf16.msra.mxu0 0
        %1697 = vmatprep.mubr.bf16.mxu0 0
        %1698 = vmatmul.mubr.bf16.gmra.mxu0 %v1663
        %v1699 = vpop.f32.mrf.mxu0
        %v1700 = vadd.f32 0.0, %v1699
        %v1701 = vpop.f32.mrf.mxu0
        %v1702 = vpop.f32.mrf.mxu0
        %v1703 = vadd.f32 0.0, %v1702
        %v1704 = vpop.f32.mrf.mxu0
        %1705 = vdwg.mxu0
        %1706 = vrot.lane.b32.xlu0 %v952, 32
        %v1707 = vpop.permute.xlu0 %1706
        %1708 = vrot.lane.b32.xlu0 %v954, 32
        %v1709 = vpop.permute.xlu0 %1708
        %v1711 = vsel %vm956, %v1707, 0
        %v1714 = vsel %vm956, %v1709, 0
        %1716 = vmatprep.subr.bf16.mxu0 0
        %1717 = vmatpush1.bf16.xpose.msra.mxu0 0
        %1718 = vmatprep.subr.bf16.mxu0 0
        %1719 = vmatpush1.bf16.xpose.msra.mxu0 0
        %1720 = vmatprep.subr.bf16.mxu0 0
        %1721 = vmatpush1.bf16.xpose.msra.mxu0 0
        %1722 = vmatprep.subr.bf16.mxu0 0
        %1723 = vmatpush1.bf16.xpose.msra.mxu0 0
        %1724 = vmatprep.subr.bf16.mxu0 0
        %1725 = vmatpush1.bf16.xpose.msra.mxu0 0
        %1726 = vmatprep.subr.bf16.mxu0 0
        %1727 = vmatpush1.bf16.xpose.msra.mxu0 0
        %1728 = vmatprep.subr.bf16.mxu0 0
        %1729 = vmatpush1.bf16.xpose.msra.mxu0 0
        %1730 = vmatprep.subr.bf16.mxu0 0
        %1731 = vmatpush1.bf16.xpose.msra.mxu0 %v1714
        %1732 = vmatprep.subr.bf16.mxu0 0
        %1733 = vmatpush2.bf16.xpose.msra.mxu0 0
        %1734 = vmatprep.subr.bf16.mxu0 0
        %1735 = vmatpush2.bf16.xpose.msra.mxu0 0
        %1736 = vmatprep.subr.bf16.mxu0 0
        %1737 = vmatpush2.bf16.xpose.msra.mxu0 0
        %1738 = vmatprep.subr.bf16.mxu0 0
        %1739 = vmatpush2.bf16.xpose.msra.mxu0 0
        %1740 = vmatprep.subr.bf16.mxu0 0
        %1741 = vmatpush2.bf16.xpose.msra.mxu0 0
        %1742 = vmatprep.subr.bf16.mxu0 0
        %1743 = vmatpush2.bf16.xpose.msra.mxu0 0
        %1744 = vmatprep.subr.bf16.mxu0 0
        %1745 = vmatpush2.bf16.xpose.msra.mxu0 0
        %1746 = vmatprep.subr.bf16.mxu0 0
        %1747 = vmatpush2.bf16.xpose.msra.mxu0 0
        %1748 = vmatprep.mubr.bf16.mxu0 0
        %1749 = vmatmul.mubr.bf16.gmra.mxu0 %v1711
        %v1750 = vpop.f32.mrf.mxu0
        %v1751 = vadd.f32 0.0, %v1750
        %v1752 = vpop.f32.mrf.mxu0
        %v1753 = vpop.f32.mrf.mxu0
        %v1754 = vadd.f32 0.0, %v1753
        %v1755 = vpop.f32.mrf.mxu0
        %1756 = vdwg.mxu0
        %1757 = vrot.lane.b32.xlu0 %v953, 32
        %v1758 = vpop.permute.xlu0 %1757
        %1759 = vrot.lane.b32.xlu0 %v955, 32
        %v1760 = vpop.permute.xlu0 %1759
        %v1762 = vsel %vm956, %v1758, 0
        %v1765 = vsel %vm956, %v1760, 0
        %1767 = vmatprep.subr.bf16.mxu0 0
        %1768 = vmatpush1.bf16.xpose.msra.mxu0 0
        %1769 = vmatprep.subr.bf16.mxu0 0
        %1770 = vmatpush1.bf16.xpose.msra.mxu0 0
        %1771 = vmatprep.subr.bf16.mxu0 0
        %1772 = vmatpush1.bf16.xpose.msra.mxu0 0
        %1773 = vmatprep.subr.bf16.mxu0 0
        %1774 = vmatpush1.bf16.xpose.msra.mxu0 0
        %1775 = vmatprep.subr.bf16.mxu0 0
        %1776 = vmatpush1.bf16.xpose.msra.mxu0 0
        %1777 = vmatprep.subr.bf16.mxu0 0
        %1778 = vmatpush1.bf16.xpose.msra.mxu0 0
        %1779 = vmatprep.subr.bf16.mxu0 0
        %1780 = vmatpush1.bf16.xpose.msra.mxu0 0
        %1781 = vmatprep.subr.bf16.mxu0 0
        %1782 = vmatpush1.bf16.xpose.msra.mxu0 %v1765
        %1783 = vmatprep.subr.bf16.mxu0 0
        %1784 = vmatpush2.bf16.xpose.msra.mxu0 0
        %1785 = vmatprep.subr.bf16.mxu0 0
        %1786 = vmatpush2.bf16.xpose.msra.mxu0 0
        %1787 = vmatprep.subr.bf16.mxu0 0
        %1788 = vmatpush2.bf16.xpose.msra.mxu0 0
        %1789 = vmatprep.subr.bf16.mxu0 0
        %1790 = vmatpush2.bf16.xpose.msra.mxu0 0
        %1791 = vmatprep.subr.bf16.mxu0 0
        %1792 = vmatpush2.bf16.xpose.msra.mxu0 0
        %1793 = vmatprep.subr.bf16.mxu0 0
        %1794 = vmatpush2.bf16.xpose.msra.mxu0 0
        %1795 = vmatprep.subr.bf16.mxu0 0
        %1796 = vmatpush2.bf16.xpose.msra.mxu0 0
        %1797 = vmatprep.subr.bf16.mxu0 0
        %1798 = vmatpush2.bf16.xpose.msra.mxu0 0
        %1799 = vmatprep.mubr.bf16.mxu0 0
        %1800 = vmatmul.mubr.bf16.gmra.mxu0 %v1762
        %v1801 = vpop.f32.mrf.mxu0
        %v1802 = vadd.f32 0.0, %v1801
        %v1803 = vpop.f32.mrf.mxu0
        %v1804 = vpop.f32.mrf.mxu0
        %v1805 = vadd.f32 0.0, %v1804
        %v1806 = vpop.f32.mrf.mxu0
        %1807 = vdwg.mxu0
        %v1808 = vmul.f32 %v1751, 0.17677669
        %v1809 = vmul.f32 %v1754, 0.17677669
        %v1810 = vmul.f32 %v1802, 0.17677669
        %v1811 = vmul.f32 %v1805, 0.17677669
        %v1812 = vsel %vm1057, %v1808, -1e+30
        %v1813 = vsel %vm1058, %v1809, -1e+30
        %v1814 = vsel %vm1057, %v1810, -1e+30
        %v1815 = vsel %vm1058, %v1811, -1e+30
        %v1816 = vsel %vm1063, %v1812, -inf
        %1817 = vmax.xlane.f32.xlu0 %v1816
        %v1818 = vpop.xlane.xlu0 %1817
        %v1819 = vsel %vm1063, %v1813, -inf
        %1820 = vmax.xlane.f32.xlu0 %v1819
        %v1821 = vpop.xlane.xlu0 %1820
        %v1822 = vsel %vm1063, %v1814, -inf
        %1823 = vmax.xlane.f32.xlu0 %v1822
        %v1824 = vpop.xlane.xlu0 %1823
        %v1825 = vsel %vm1063, %v1815, -inf
        %1826 = vmax.xlane.f32.xlu0 %v1825
        %v1827 = vpop.xlane.xlu0 %1826
        %v1828 = vsub.f32 %v1812, %v1818
        %v1829 = vsub.f32 %v1813, %v1821
        %v1830 = vsub.f32 %v1814, %v1824
        %v1831 = vsub.f32 %v1815, %v1827
        %v1832 = vmul.f32 %v1828, 1.442695
        %v1833 = vpow.pop %v1832
        %v1834 = vmul.f32 %v1829, 1.442695
        %v1835 = vpow.pop %v1834
        %v1836 = vmul.f32 %v1830, 1.442695
        %v1837 = vpow.pop %v1836
        %v1838 = vmul.f32 %v1831, 1.442695
        %v1839 = vpow.pop %v1838
        %v1840 = vsel %vm1063, %v1833, 0.0
        %1841 = vadd.xlane.f32.xlu0 %v1840
        %v1842 = vpop.xlane.xlu0 %1841
        %v1843 = vsel %vm1063, %v1835, 0.0
        %1844 = vadd.xlane.f32.xlu0 %v1843
        %v1845 = vpop.xlane.xlu0 %1844
        %v1846 = vsel %vm1063, %v1837, 0.0
        %1847 = vadd.xlane.f32.xlu0 %v1846
        %v1848 = vpop.xlane.xlu0 %1847
        %v1849 = vsel %vm1063, %v1839, 0.0
        %1850 = vadd.xlane.f32.xlu0 %v1849
        %v1851 = vpop.xlane.xlu0 %1850
        %v1852 = vrcp.pop %v1842
        %v1853 = vrcp.pop %v1845
        %v1854 = vrcp.pop %v1848
        %v1855 = vrcp.pop %v1851
        %v1856 = vmul.f32 %v1833, %v1852
        %v1857 = vmul.f32 %v1835, %v1853
        %v1858 = vmul.f32 %v1837, %v1854
        %v1859 = vmul.f32 %v1839, %v1855
        %v1860 = vpack.c.bf16 %v1857, %v1856
        %v1861 = vpack.c.bf16 %v1859, %v1858
        %1862 = vrot.lane.b32.xlu0 %v1110, 32
        %v1863 = vpop.permute.xlu0 %1862
        %v1866 = vsel %vm1063, %v1860, 0
        %1868 = vmatprep.subr.bf16.mxu0 0
        %1869 = vmatpush1.bf16.msra.mxu0 0
        %1870 = vmatprep.subr.bf16.mxu0 0
        %1871 = vmatpush1.bf16.msra.mxu0 0
        %1872 = vmatprep.subr.bf16.mxu0 0
        %1873 = vmatpush1.bf16.msra.mxu0 0
        %1874 = vmatprep.subr.bf16.mxu0 0
        %1875 = vmatpush1.bf16.msra.mxu0 0
        %1876 = vmatprep.subr.bf16.mxu0 0
        %1877 = vmatpush1.bf16.msra.mxu0 0
        %1878 = vmatprep.subr.bf16.mxu0 0
        %1879 = vmatpush1.bf16.msra.mxu0 0
        %1880 = vmatprep.subr.bf16.mxu0 0
        %1881 = vmatpush1.bf16.msra.mxu0 0
        %1882 = vmatprep.subr.bf16.mxu0 0
        %1883 = vmatpush1.bf16.msra.mxu0 %v1863
        %1884 = vmatprep.subr.bf16.mxu0 0
        %1885 = vmatpush2.bf16.msra.mxu0 0
        %1886 = vmatprep.subr.bf16.mxu0 0
        %1887 = vmatpush2.bf16.msra.mxu0 0
        %1888 = vmatprep.subr.bf16.mxu0 0
        %1889 = vmatpush2.bf16.msra.mxu0 0
        %1890 = vmatprep.subr.bf16.mxu0 0
        %1891 = vmatpush2.bf16.msra.mxu0 0
        %1892 = vmatprep.subr.bf16.mxu0 0
        %1893 = vmatpush2.bf16.msra.mxu0 0
        %1894 = vmatprep.subr.bf16.mxu0 0
        %1895 = vmatpush2.bf16.msra.mxu0 0
        %1896 = vmatprep.subr.bf16.mxu0 0
        %1897 = vmatpush2.bf16.msra.mxu0 0
        %1898 = vmatprep.subr.bf16.mxu0 0
        %1899 = vmatpush2.bf16.msra.mxu0 0
        %1900 = vmatprep.mubr.bf16.mxu0 0
        %1901 = vmatmul.mubr.bf16.gmra.mxu0 %v1866
        %v1902 = vpop.f32.mrf.mxu0
        %v1903 = vadd.f32 0.0, %v1902
        %v1904 = vpop.f32.mrf.mxu0
        %v1905 = vpop.f32.mrf.mxu0
        %v1906 = vadd.f32 0.0, %v1905
        %v1907 = vpop.f32.mrf.mxu0
        %1908 = vdwg.mxu0
        %1909 = vrot.lane.b32.xlu0 %v1111, 32
        %v1910 = vpop.permute.xlu0 %1909
        %v1913 = vsel %vm1063, %v1861, 0
        %1915 = vmatprep.subr.bf16.mxu0 0
        %1916 = vmatpush1.bf16.msra.mxu0 0
        %1917 = vmatprep.subr.bf16.mxu0 0
        %1918 = vmatpush1.bf16.msra.mxu0 0
        %1919 = vmatprep.subr.bf16.mxu0 0
        %1920 = vmatpush1.bf16.msra.mxu0 0
        %1921 = vmatprep.subr.bf16.mxu0 0
        %1922 = vmatpush1.bf16.msra.mxu0 0
        %1923 = vmatprep.subr.bf16.mxu0 0
        %1924 = vmatpush1.bf16.msra.mxu0 0
        %1925 = vmatprep.subr.bf16.mxu0 0
        %1926 = vmatpush1.bf16.msra.mxu0 0
        %1927 = vmatprep.subr.bf16.mxu0 0
        %1928 = vmatpush1.bf16.msra.mxu0 0
        %1929 = vmatprep.subr.bf16.mxu0 0
        %1930 = vmatpush1.bf16.msra.mxu0 %v1910
        %1931 = vmatprep.subr.bf16.mxu0 0
        %1932 = vmatpush2.bf16.msra.mxu0 0
        %1933 = vmatprep.subr.bf16.mxu0 0
        %1934 = vmatpush2.bf16.msra.mxu0 0
        %1935 = vmatprep.subr.bf16.mxu0 0
        %1936 = vmatpush2.bf16.msra.mxu0 0
        %1937 = vmatprep.subr.bf16.mxu0 0
        %1938 = vmatpush2.bf16.msra.mxu0 0
        %1939 = vmatprep.subr.bf16.mxu0 0
        %1940 = vmatpush2.bf16.msra.mxu0 0
        %1941 = vmatprep.subr.bf16.mxu0 0
        %1942 = vmatpush2.bf16.msra.mxu0 0
        %1943 = vmatprep.subr.bf16.mxu0 0
        %1944 = vmatpush2.bf16.msra.mxu0 0
        %1945 = vmatprep.subr.bf16.mxu0 0
        %1946 = vmatpush2.bf16.msra.mxu0 0
        %1947 = vmatprep.mubr.bf16.mxu0 0
        %1948 = vmatmul.mubr.bf16.gmra.mxu0 %v1913
        %v1949 = vpop.f32.mrf.mxu0
        %v1950 = vadd.f32 0.0, %v1949
        %v1951 = vpop.f32.mrf.mxu0
        %v1952 = vpop.f32.mrf.mxu0
        %v1953 = vadd.f32 0.0, %v1952
        %v1954 = vpop.f32.mrf.mxu0
        %1955 = vdwg.mxu0
        %1960 = vrot.lane.b32.xlu0 %v1402, 32
        %v1961 = vpop.permute.xlu0 %1960
        %1962 = vrot.lane.b32.xlu0 %v1405, 32
        %v1963 = vpop.permute.xlu0 %1962
        %1964 = vrot.lane.b32.xlu0 %v1450, 32
        %v1965 = vpop.permute.xlu0 %1964
        %1966 = vrot.lane.b32.xlu0 %v1453, 32
        %v1967 = vpop.permute.xlu0 %1966
        %1976 = vrot.lane.b32.xlu0 %v1653, 64
        %v1977 = vpop.permute.xlu0 %1976
        %1978 = vrot.lane.b32.xlu0 %v1656, 64
        %v1979 = vpop.permute.xlu0 %1978
        %1980 = vrot.lane.b32.xlu0 %v1700, 64
        %v1981 = vpop.permute.xlu0 %1980
        %1982 = vrot.lane.b32.xlu0 %v1703, 64
        %v1983 = vpop.permute.xlu0 %1982
        %1992 = vrot.lane.b32.xlu0 %v1903, 96
        %v1993 = vpop.permute.xlu0 %1992
        %1994 = vrot.lane.b32.xlu0 %v1906, 96
        %v1995 = vpop.permute.xlu0 %1994
        %1996 = vrot.lane.b32.xlu0 %v1950, 96
        %v1997 = vpop.permute.xlu0 %1996
        %1998 = vrot.lane.b32.xlu0 %v1953, 96
        %v1999 = vpop.permute.xlu0 %1998
        %v2004 = vsel %vm956, %v1150, %v1961
        %v2005 = vsel %vm956, %v1153, %v1963
        %v2006 = vsel %vm956, %v1194, %v1965
        %v2007 = vsel %vm956, %v1197, %v1967
        %vm2008 = vcmask 523264
        %v2009 = vsel %vm2008, %v2004, %v1977
        %v2010 = vsel %vm2008, %v2005, %v1979
        %v2011 = vsel %vm2008, %v2006, %v1981
        %v2012 = vsel %vm2008, %v2007, %v1983
        %vm2013 = vcmask 785408
        %v2014 = vsel %vm2013, %v2009, %v1993
        %v2015 = vsel %vm2013, %v2010, %v1995
        %v2016 = vsel %vm2013, %v2011, %v1997
        %v2017 = vsel %vm2013, %v2012, %v1999
        %v2018 = vpack.c.bf16 %v2015, %v2014
        %v2019 = vpack.c.bf16 %v2017, %v2016
        %v2020 = vld [vmem:[%s530] sm:$0xf]
        %v2021 = vld [vmem:[%s530 + $0x4] sm:$0xf]
        %v2022 = vld [vmem:[%s530 + $0x8] sm:$0xf]
        %v2023 = vld [vmem:[%s530 + $0xc] sm:$0xf]
        %v2024 = vld [vmem:[%s530 + $0x10] sm:$0xf]
        %v2025 = vld [vmem:[%s530 + $0x14] sm:$0xf]
        %v2026 = vld [vmem:[%s530 + $0x18] sm:$0xf]
        %v2027 = vld [vmem:[%s530 + $0x1c] sm:$0xf]
        %v2028 = vld [vmem:[%s530 + $0x20] sm:$0xf]
        %v2029 = vld [vmem:[%s530 + $0x24] sm:$0xf]
        %v2030 = vld [vmem:[%s530 + $0x28] sm:$0xf]
        %v2031 = vld [vmem:[%s530 + $0x2c] sm:$0xf]
        %v2032 = vld [vmem:[%s530 + $0x30] sm:$0xf]
        %v2033 = vld [vmem:[%s530 + $0x34] sm:$0xf]
        %v2034 = vld [vmem:[%s530 + $0x38] sm:$0xf]
        %v2035 = vld [vmem:[%s530 + $0x3c] sm:$0xf]
        %s2036 = scalar_lea.vmem [#allocation10], %s33
        %v2037 = vld [vmem:[%s2036] sm:$0x1]
        %v2038 = vlaneseq
        %v2039 = vshrl.u32 %v2038, 7
        %v2040 = vsub.s32 0, %v2039
        %v2041 = vrot.slane %v2037, %v2040
        %v2058 = vunpack.c.l.b16 %v2020
        %v2059 = vunpack.c.l.b16 %v2021
        %v2060 = vunpack.c.l.b16 %v2022
        %v2061 = vunpack.c.l.b16 %v2023
        %v2062 = vunpack.c.l.b16 %v2024
        %v2063 = vunpack.c.l.b16 %v2025
        %v2064 = vunpack.c.l.b16 %v2026
        %v2065 = vunpack.c.l.b16 %v2027
        %v2066 = vunpack.c.l.b16 %v2028
        %v2067 = vunpack.c.l.b16 %v2029
        %v2068 = vunpack.c.l.b16 %v2030
        %v2069 = vunpack.c.l.b16 %v2031
        %v2070 = vunpack.c.l.b16 %v2032
        %v2071 = vunpack.c.l.b16 %v2033
        %v2072 = vunpack.c.l.b16 %v2034
        %v2073 = vunpack.c.l.b16 %v2035
        %v2074 = vpack.c.b16 %v2059, %v2058
        %v2075 = vpack.c.b16 %v2061, %v2060
        %v2076 = vpack.c.b16 %v2063, %v2062
        %v2077 = vpack.c.b16 %v2065, %v2064
        %v2078 = vpack.c.b16 %v2067, %v2066
        %v2079 = vpack.c.b16 %v2069, %v2068
        %v2080 = vpack.c.b16 %v2071, %v2070
        %v2081 = vpack.c.b16 %v2073, %v2072
        %2090 = vmatprep.subr.bf16.mxu0 0
        %2091 = vmatpush1.bf16.msra.mxu0 %v2081
        %2092 = vmatprep.subr.bf16.mxu0 0
        %2093 = vmatpush1.bf16.msra.mxu0 %v2080
        %2094 = vmatprep.subr.bf16.mxu0 0
        %2095 = vmatpush1.bf16.msra.mxu0 %v2079
        %2096 = vmatprep.subr.bf16.mxu0 0
        %2097 = vmatpush1.bf16.msra.mxu0 %v2078
        %2098 = vmatprep.subr.bf16.mxu0 0
        %2099 = vmatpush1.bf16.msra.mxu0 %v2077
        %2100 = vmatprep.subr.bf16.mxu0 0
        %2101 = vmatpush1.bf16.msra.mxu0 %v2076
        %2102 = vmatprep.subr.bf16.mxu0 0
        %2103 = vmatpush1.bf16.msra.mxu0 %v2075
        %2104 = vmatprep.subr.bf16.mxu0 0
        %2105 = vmatpush1.bf16.msra.mxu0 %v2074
        %2106 = vmatprep.subr.bf16.mxu0 0
        %2107 = vmatpush2.bf16.msra.mxu0 0
        %2108 = vmatprep.subr.bf16.mxu0 0
        %2109 = vmatpush2.bf16.msra.mxu0 0
        %2110 = vmatprep.subr.bf16.mxu0 0
        %2111 = vmatpush2.bf16.msra.mxu0 0
        %2112 = vmatprep.subr.bf16.mxu0 0
        %2113 = vmatpush2.bf16.msra.mxu0 0
        %2114 = vmatprep.subr.bf16.mxu0 0
        %2115 = vmatpush2.bf16.msra.mxu0 0
        %2116 = vmatprep.subr.bf16.mxu0 0
        %2117 = vmatpush2.bf16.msra.mxu0 0
        %2118 = vmatprep.subr.bf16.mxu0 0
        %2119 = vmatpush2.bf16.msra.mxu0 0
        %2120 = vmatprep.subr.bf16.mxu0 0
        %2121 = vmatpush2.bf16.msra.mxu0 0
        %2122 = vmatprep.mubr.bf16.mxu0 0
        %2123 = vmatmul.mubr.bf16.gmra.mxu0 %v2018
        %v2124 = vpop.f32.mrf.mxu0
        %v2125 = vadd.f32 %v2041, %v2124
        %v2126 = vpop.f32.mrf.mxu0
        %v2127 = vpop.f32.mrf.mxu0
        %v2128 = vadd.f32 %v2041, %v2127
        %v2129 = vpop.f32.mrf.mxu0
        %2130 = vmatprep.mubr.bf16.mxu0 0
        %2131 = vmatmul.mubr.bf16.gmra.mxu0 %v2019
        %v2132 = vpop.f32.mrf.mxu0
        %v2133 = vadd.f32 %v2041, %v2132
        %v2134 = vpop.f32.mrf.mxu0
        %v2135 = vpop.f32.mrf.mxu0
        %v2136 = vadd.f32 %v2041, %v2135
        %v2137 = vpop.f32.mrf.mxu0
        %2138 = vdwg.mxu0
        %v2139 = vadd.f32 %v619, %v2125
        %v2140 = vadd.f32 %v620, %v2128
        %v2141 = vadd.f32 %v621, %v2133
        %v2142 = vadd.f32 %v622, %v2136
        %s2143 = scalar_lea.vmem [#allocation7], %s33
        %v2144 = vld [vmem:[%s2143] sm:$0x1]
        %s2145 = scalar_lea.vmem [#allocation8], %s33
        %v2146 = vld [vmem:[%s2145] sm:$0x1]
        %2147 = vadd.xlane.f32.xlu0 %v2139
        %v2148 = vpop.xlane.xlu0 %2147
        %2149 = vadd.xlane.f32.xlu0 %v2140
        %v2150 = vpop.xlane.xlu0 %2149
        %2151 = vadd.xlane.f32.xlu0 %v2141
        %v2152 = vpop.xlane.xlu0 %2151
        %2153 = vadd.xlane.f32.xlu0 %v2142
        %v2154 = vpop.xlane.xlu0 %2153
        %v2155 = vmul.f32 %v2148, %v635
        %v2156 = vmul.f32 %v2150, %v635
        %v2157 = vmul.f32 %v2152, %v635
        %v2158 = vmul.f32 %v2154, %v635
        %v2159 = vsub.f32 %v2139, %v2155
        %v2160 = vsub.f32 %v2140, %v2156
        %v2161 = vsub.f32 %v2141, %v2157
        %v2162 = vsub.f32 %v2142, %v2158
        %v2163 = vmul.f32 %v2159, %v2159
        %v2164 = vmul.f32 %v2160, %v2160
        %v2165 = vmul.f32 %v2161, %v2161
        %v2166 = vmul.f32 %v2162, %v2162
        %2167 = vadd.xlane.f32.xlu0 %v2163
        %v2168 = vpop.xlane.xlu0 %2167
        %2169 = vadd.xlane.f32.xlu0 %v2164
        %v2170 = vpop.xlane.xlu0 %2169
        %2171 = vadd.xlane.f32.xlu0 %v2165
        %v2172 = vpop.xlane.xlu0 %2171
        %2173 = vadd.xlane.f32.xlu0 %v2166
        %v2174 = vpop.xlane.xlu0 %2173
        %v2175 = vmul.f32 %v2168, %v635
        %v2176 = vmul.f32 %v2170, %v635
        %v2177 = vmul.f32 %v2172, %v635
        %v2178 = vmul.f32 %v2174, %v635
        %v2179 = vadd.f32 %v2175, 1e-05
        %v2180 = vadd.f32 %v2176, 1e-05
        %v2181 = vadd.f32 %v2177, 1e-05
        %v2182 = vadd.f32 %v2178, 1e-05
        %v2183 = vrsqrt.pop %v2179
        %v2184 = vrsqrt.pop %v2180
        %v2185 = vrsqrt.pop %v2181
        %v2186 = vrsqrt.pop %v2182
        %v2187 = vmul.f32 %v2159, %v2183
        %v2188 = vmul.f32 %v2160, %v2184
        %v2189 = vmul.f32 %v2161, %v2185
        %v2190 = vmul.f32 %v2162, %v2186
        %v2191 = vlaneseq
        %v2192 = vshrl.u32 %v2191, 7
        %v2193 = vsub.s32 0, %v2192
        %v2194 = vrot.slane %v2144, %v2193
        %v2195 = vmul.f32 %v2187, %v2194
        %v2196 = vmul.f32 %v2188, %v2194
        %v2197 = vmul.f32 %v2189, %v2194
        %v2198 = vmul.f32 %v2190, %v2194
        %v2199 = vlaneseq
        %v2200 = vshrl.u32 %v2199, 7
        %v2201 = vsub.s32 0, %v2200
        %v2202 = vrot.slane %v2146, %v2201
        %v2203 = vadd.f32 %v2195, %v2202
        %v2204 = vadd.f32 %v2196, %v2202
        %v2205 = vadd.f32 %v2197, %v2202
        %v2206 = vadd.f32 %v2198, %v2202
        %v2207 = vpack.c.bf16 %v2204, %v2203
        %v2208 = vpack.c.bf16 %v2206, %v2205
        %v2209 = vld [vmem:[%s539] sm:$0xff]
        %v2210 = vld [vmem:[%s539 + $0x8] sm:$0xff]
        %v2211 = vld [vmem:[%s539 + $0x10] sm:$0xff]
        %v2212 = vld [vmem:[%s539 + $0x18] sm:$0xff]
        %v2213 = vld [vmem:[%s539 + $0x20] sm:$0xff]
        %v2214 = vld [vmem:[%s539 + $0x28] sm:$0xff]
        %v2215 = vld [vmem:[%s539 + $0x30] sm:$0xff]
        %v2216 = vld [vmem:[%s539 + $0x38] sm:$0xff]
        %v2217 = vld [vmem:[%s539 + $0x40] sm:$0xff]
        %v2218 = vld [vmem:[%s539 + $0x48] sm:$0xff]
        %v2219 = vld [vmem:[%s539 + $0x50] sm:$0xff]
        %v2220 = vld [vmem:[%s539 + $0x58] sm:$0xff]
        %v2221 = vld [vmem:[%s539 + $0x60] sm:$0xff]
        %v2222 = vld [vmem:[%s539 + $0x68] sm:$0xff]
        %v2223 = vld [vmem:[%s539 + $0x70] sm:$0xff]
        %v2224 = vld [vmem:[%s539 + $0x78] sm:$0xff]
        %v2225 = vld [vmem:[%s539 + $0x80] sm:$0xff]
        %v2226 = vld [vmem:[%s539 + $0x88] sm:$0xff]
        %v2227 = vld [vmem:[%s539 + $0x90] sm:$0xff]
        %v2228 = vld [vmem:[%s539 + $0x98] sm:$0xff]
        %v2229 = vld [vmem:[%s539 + $0xa0] sm:$0xff]
        %v2230 = vld [vmem:[%s539 + $0xa8] sm:$0xff]
        %v2231 = vld [vmem:[%s539 + $0xb0] sm:$0xff]
        %v2232 = vld [vmem:[%s539 + $0xb8] sm:$0xff]
        %v2233 = vld [vmem:[%s539 + $0xc0] sm:$0xff]
        %v2234 = vld [vmem:[%s539 + $0xc8] sm:$0xff]
        %v2235 = vld [vmem:[%s539 + $0xd0] sm:$0xff]
        %v2236 = vld [vmem:[%s539 + $0xd8] sm:$0xff]
        %v2237 = vld [vmem:[%s539 + $0xe0] sm:$0xff]
        %v2238 = vld [vmem:[%s539 + $0xe8] sm:$0xff]
        %v2239 = vld [vmem:[%s539 + $0xf0] sm:$0xff]
        %v2240 = vld [vmem:[%s539 + $0xf8] sm:$0xff]
        %s2241 = sshra.s32 %s33, 1
        %s2242 = sand.u32 %s33, 1
        %s2243 = sshra.s32 %s33, 1
        %s2244 = sand.u32 %s33, 1
        %s2245 = smul.u32 %s2241, 4
        %s2246 = smul.u32 %s2245, 2
        %s2247 = sadd.s32 %s2246, %s2244
        %s2248 = scalar_lea.vmem %s6, %s2247
        %v2249 = vld [vmem:[%s2248] ss:$2 sm:$0xf]
        %v2251 = vlaneseq
        %v2252 = vshrl.u32 %v2251, 7
        %v2253 = vsub.s32 0, %v2252
        %v2254 = vrot.slane %v2249, %v2253
        %v2255 = vlaneseq
        %v2256 = vshrl.u32 %v2255, 7
        %v2257 = vsub.s32 1, %v2256
        %v2258 = vrot.slane %v2249, %v2257
        %v2259 = vlaneseq
        %v2260 = vshrl.u32 %v2259, 7
        %v2261 = vsub.s32 2, %v2260
        %v2262 = vrot.slane %v2249, %v2261
        %v2263 = vlaneseq
        %v2264 = vshrl.u32 %v2263, 7
        %v2265 = vsub.s32 3, %v2264
        %v2266 = vrot.slane %v2249, %v2265
        %v2303 = vunpack.c.l.b16 %v2209
        %v2304 = vunpack.c.h.b16 %v2209
        %v2305 = vunpack.c.l.b16 %v2210
        %v2306 = vunpack.c.h.b16 %v2210
        %v2307 = vunpack.c.l.b16 %v2211
        %v2308 = vunpack.c.h.b16 %v2211
        %v2309 = vunpack.c.l.b16 %v2212
        %v2310 = vunpack.c.h.b16 %v2212
        %v2311 = vunpack.c.l.b16 %v2213
        %v2312 = vunpack.c.h.b16 %v2213
        %v2313 = vunpack.c.l.b16 %v2214
        %v2314 = vunpack.c.h.b16 %v2214
        %v2315 = vunpack.c.l.b16 %v2215
        %v2316 = vunpack.c.h.b16 %v2215
        %v2317 = vunpack.c.l.b16 %v2216
        %v2318 = vunpack.c.h.b16 %v2216
        %v2319 = vunpack.c.l.b16 %v2217
        %v2320 = vunpack.c.h.b16 %v2217
        %v2321 = vunpack.c.l.b16 %v2218
        %v2322 = vunpack.c.h.b16 %v2218
        %v2323 = vunpack.c.l.b16 %v2219
        %v2324 = vunpack.c.h.b16 %v2219
        %v2325 = vunpack.c.l.b16 %v2220
        %v2326 = vunpack.c.h.b16 %v2220
        %v2327 = vunpack.c.l.b16 %v2221
        %v2328 = vunpack.c.h.b16 %v2221
        %v2329 = vunpack.c.l.b16 %v2222
        %v2330 = vunpack.c.h.b16 %v2222
        %v2331 = vunpack.c.l.b16 %v2223
        %v2332 = vunpack.c.h.b16 %v2223
        %v2333 = vunpack.c.l.b16 %v2224
        %v2334 = vunpack.c.h.b16 %v2224
        %v2335 = vunpack.c.l.b16 %v2225
        %v2336 = vunpack.c.h.b16 %v2225
        %v2337 = vunpack.c.l.b16 %v2226
        %v2338 = vunpack.c.h.b16 %v2226
        %v2339 = vunpack.c.l.b16 %v2227
        %v2340 = vunpack.c.h.b16 %v2227
        %v2341 = vunpack.c.l.b16 %v2228
        %v2342 = vunpack.c.h.b16 %v2228
        %v2343 = vunpack.c.l.b16 %v2229
        %v2344 = vunpack.c.h.b16 %v2229
        %v2345 = vunpack.c.l.b16 %v2230
        %v2346 = vunpack.c.h.b16 %v2230
        %v2347 = vunpack.c.l.b16 %v2231
        %v2348 = vunpack.c.h.b16 %v2231
        %v2349 = vunpack.c.l.b16 %v2232
        %v2350 = vunpack.c.h.b16 %v2232
        %v2351 = vunpack.c.l.b16 %v2233
        %v2352 = vunpack.c.h.b16 %v2233
        %v2353 = vunpack.c.l.b16 %v2234
        %v2354 = vunpack.c.h.b16 %v2234
        %v2355 = vunpack.c.l.b16 %v2235
        %v2356 = vunpack.c.h.b16 %v2235
        %v2357 = vunpack.c.l.b16 %v2236
        %v2358 = vunpack.c.h.b16 %v2236
        %v2359 = vunpack.c.l.b16 %v2237
        %v2360 = vunpack.c.h.b16 %v2237
        %v2361 = vunpack.c.l.b16 %v2238
        %v2362 = vunpack.c.h.b16 %v2238
        %v2363 = vunpack.c.l.b16 %v2239
        %v2364 = vunpack.c.h.b16 %v2239
        %v2365 = vunpack.c.l.b16 %v2240
        %v2366 = vunpack.c.h.b16 %v2240
        %v2367 = vpack.c.b16 %v2307, %v2303
        %v2368 = vpack.c.b16 %v2308, %v2304
        %v2369 = vpack.c.b16 %v2309, %v2305
        %v2370 = vpack.c.b16 %v2310, %v2306
        %v2371 = vpack.c.b16 %v2315, %v2311
        %v2372 = vpack.c.b16 %v2316, %v2312
        %v2373 = vpack.c.b16 %v2317, %v2313
        %v2374 = vpack.c.b16 %v2318, %v2314
        %v2375 = vpack.c.b16 %v2323, %v2319
        %v2376 = vpack.c.b16 %v2324, %v2320
        %v2377 = vpack.c.b16 %v2325, %v2321
        %v2378 = vpack.c.b16 %v2326, %v2322
        %v2379 = vpack.c.b16 %v2331, %v2327
        %v2380 = vpack.c.b16 %v2332, %v2328
        %v2381 = vpack.c.b16 %v2333, %v2329
        %v2382 = vpack.c.b16 %v2334, %v2330
        %v2383 = vpack.c.b16 %v2339, %v2335
        %v2384 = vpack.c.b16 %v2340, %v2336
        %v2385 = vpack.c.b16 %v2341, %v2337
        %v2386 = vpack.c.b16 %v2342, %v2338
        %v2387 = vpack.c.b16 %v2347, %v2343
        %v2388 = vpack.c.b16 %v2348, %v2344
        %v2389 = vpack.c.b16 %v2349, %v2345
        %v2390 = vpack.c.b16 %v2350, %v2346
        %v2391 = vpack.c.b16 %v2355, %v2351
        %v2392 = vpack.c.b16 %v2356, %v2352
        %v2393 = vpack.c.b16 %v2357, %v2353
        %v2394 = vpack.c.b16 %v2358, %v2354
        %v2395 = vpack.c.b16 %v2363, %v2359
        %v2396 = vpack.c.b16 %v2364, %v2360
        %v2397 = vpack.c.b16 %v2365, %v2361
        %v2398 = vpack.c.b16 %v2366, %v2362
        %2431 = vmatprep.subr.bf16.mxu0 %v2396
        %2432 = vmatpush1.bf16.msra.mxu0 %v2395
        %2433 = vmatprep.subr.bf16.mxu0 %v2392
        %2434 = vmatpush1.bf16.msra.mxu0 %v2391
        %2435 = vmatprep.subr.bf16.mxu0 %v2388
        %2436 = vmatpush1.bf16.msra.mxu0 %v2387
        %2437 = vmatprep.subr.bf16.mxu0 %v2384
        %2438 = vmatpush1.bf16.msra.mxu0 %v2383
        %2439 = vmatprep.subr.bf16.mxu0 %v2380
        %2440 = vmatpush1.bf16.msra.mxu0 %v2379
        %2441 = vmatprep.subr.bf16.mxu0 %v2376
        %2442 = vmatpush1.bf16.msra.mxu0 %v2375
        %2443 = vmatprep.subr.bf16.mxu0 %v2372
        %2444 = vmatpush1.bf16.msra.mxu0 %v2371
        %2445 = vmatprep.subr.bf16.mxu0 %v2368
        %2446 = vmatpush1.bf16.msra.mxu0 %v2367
        %2447 = vmatprep.subr.bf16.mxu0 0
        %2448 = vmatpush2.bf16.msra.mxu0 0
        %2449 = vmatprep.subr.bf16.mxu0 0
        %2450 = vmatpush2.bf16.msra.mxu0 0
        %2451 = vmatprep.subr.bf16.mxu0 0
        %2452 = vmatpush2.bf16.msra.mxu0 0
        %2453 = vmatprep.subr.bf16.mxu0 0
        %2454 = vmatpush2.bf16.msra.mxu0 0
        %2455 = vmatprep.subr.bf16.mxu0 0
        %2456 = vmatpush2.bf16.msra.mxu0 0
        %2457 = vmatprep.subr.bf16.mxu0 0
        %2458 = vmatpush2.bf16.msra.mxu0 0
        %2459 = vmatprep.subr.bf16.mxu0 0
        %2460 = vmatpush2.bf16.msra.mxu0 0
        %2461 = vmatprep.subr.bf16.mxu0 0
        %2462 = vmatpush2.bf16.msra.mxu0 0
        %2463 = vmatprep.mubr.bf16.mxu0 0
        %2464 = vmatmul.mubr.bf16.gmra.mxu0 %v2207
        %v2465 = vpop.f32.mrf.mxu0
        %v2466 = vadd.f32 %v2254, %v2465
        %v2467 = vpop.f32.mrf.mxu0
        %v2468 = vadd.f32 %v2258, %v2467
        %v2469 = vpop.f32.mrf.mxu0
        %v2470 = vadd.f32 %v2254, %v2469
        %v2471 = vpop.f32.mrf.mxu0
        %v2472 = vadd.f32 %v2258, %v2471
        %2473 = vmatprep.mubr.bf16.mxu0 0
        %2474 = vmatmul.mubr.bf16.gmra.mxu0 %v2208
        %v2475 = vpop.f32.mrf.mxu0
        %v2476 = vadd.f32 %v2254, %v2475
        %v2477 = vpop.f32.mrf.mxu0
        %v2478 = vadd.f32 %v2258, %v2477
        %v2479 = vpop.f32.mrf.mxu0
        %v2480 = vadd.f32 %v2254, %v2479
        %v2481 = vpop.f32.mrf.mxu0
        %v2482 = vadd.f32 %v2258, %v2481
        %2483 = vdwg.mxu0
        %2484 = vmatprep.subr.bf16.mxu0 %v2398
        %2485 = vmatpush1.bf16.msra.mxu0 %v2397
        %2486 = vmatprep.subr.bf16.mxu0 %v2394
        %2487 = vmatpush1.bf16.msra.mxu0 %v2393
        %2488 = vmatprep.subr.bf16.mxu0 %v2390
        %2489 = vmatpush1.bf16.msra.mxu0 %v2389
        %2490 = vmatprep.subr.bf16.mxu0 %v2386
        %2491 = vmatpush1.bf16.msra.mxu0 %v2385
        %2492 = vmatprep.subr.bf16.mxu0 %v2382
        %2493 = vmatpush1.bf16.msra.mxu0 %v2381
        %2494 = vmatprep.subr.bf16.mxu0 %v2378
        %2495 = vmatpush1.bf16.msra.mxu0 %v2377
        %2496 = vmatprep.subr.bf16.mxu0 %v2374
        %2497 = vmatpush1.bf16.msra.mxu0 %v2373
        %2498 = vmatprep.subr.bf16.mxu0 %v2370
        %2499 = vmatpush1.bf16.msra.mxu0 %v2369
        %2500 = vmatprep.subr.bf16.mxu0 0
        %2501 = vmatpush2.bf16.msra.mxu0 0
        %2502 = vmatprep.subr.bf16.mxu0 0
        %2503 = vmatpush2.bf16.msra.mxu0 0
        %2504 = vmatprep.subr.bf16.mxu0 0
        %2505 = vmatpush2.bf16.msra.mxu0 0
        %2506 = vmatprep.subr.bf16.mxu0 0
        %2507 = vmatpush2.bf16.msra.mxu0 0
        %2508 = vmatprep.subr.bf16.mxu0 0
        %2509 = vmatpush2.bf16.msra.mxu0 0
        %2510 = vmatprep.subr.bf16.mxu0 0
        %2511 = vmatpush2.bf16.msra.mxu0 0
        %2512 = vmatprep.subr.bf16.mxu0 0
        %2513 = vmatpush2.bf16.msra.mxu0 0
        %2514 = vmatprep.subr.bf16.mxu0 0
        %2515 = vmatpush2.bf16.msra.mxu0 0
        %2516 = vmatprep.mubr.bf16.mxu0 0
        %2517 = vmatmul.mubr.bf16.gmra.mxu0 %v2207
        %v2518 = vpop.f32.mrf.mxu0
        %v2519 = vadd.f32 %v2262, %v2518
        %v2520 = vpop.f32.mrf.mxu0
        %v2521 = vadd.f32 %v2266, %v2520
        %v2522 = vpop.f32.mrf.mxu0
        %v2523 = vadd.f32 %v2262, %v2522
        %v2524 = vpop.f32.mrf.mxu0
        %v2525 = vadd.f32 %v2266, %v2524
        %2526 = vmatprep.mubr.bf16.mxu0 0
        %2527 = vmatmul.mubr.bf16.gmra.mxu0 %v2208
        %v2528 = vpop.f32.mrf.mxu0
        %v2529 = vadd.f32 %v2262, %v2528
        %v2530 = vpop.f32.mrf.mxu0
        %v2531 = vadd.f32 %v2266, %v2530
        %v2532 = vpop.f32.mrf.mxu0
        %v2533 = vadd.f32 %v2262, %v2532
        %v2534 = vpop.f32.mrf.mxu0
        %v2535 = vadd.f32 %v2266, %v2534
        %2536 = vdwg.mxu0
        %v2537 = vmax.f32 %v2466, 0.0
        %v2538 = vmax.f32 %v2468, 0.0
        %v2539 = vmax.f32 %v2519, 0.0
        %v2540 = vmax.f32 %v2521, 0.0
        %v2541 = vmax.f32 %v2470, 0.0
        %v2542 = vmax.f32 %v2472, 0.0
        %v2543 = vmax.f32 %v2523, 0.0
        %v2544 = vmax.f32 %v2525, 0.0
        %v2545 = vmax.f32 %v2476, 0.0
        %v2546 = vmax.f32 %v2478, 0.0
        %v2547 = vmax.f32 %v2529, 0.0
        %v2548 = vmax.f32 %v2531, 0.0
        %v2549 = vmax.f32 %v2480, 0.0
        %v2550 = vmax.f32 %v2482, 0.0
        %v2551 = vmax.f32 %v2533, 0.0
        %v2552 = vmax.f32 %v2535, 0.0
        %v2553 = vpack.c.bf16 %v2541, %v2537
        %v2554 = vpack.c.bf16 %v2542, %v2538
        %v2555 = vpack.c.bf16 %v2543, %v2539
        %v2556 = vpack.c.bf16 %v2544, %v2540
        %v2557 = vpack.c.bf16 %v2549, %v2545
        %v2558 = vpack.c.bf16 %v2550, %v2546
        %v2559 = vpack.c.bf16 %v2551, %v2547
        %v2560 = vpack.c.bf16 %v2552, %v2548
        %v2561 = vld [vmem:[%s548] sm:$0xf]
        %v2562 = vld [vmem:[%s548 + $0x4] sm:$0xf]
        %v2563 = vld [vmem:[%s548 + $0x8] sm:$0xf]
        %v2564 = vld [vmem:[%s548 + $0xc] sm:$0xf]
        %v2565 = vld [vmem:[%s548 + $0x10] sm:$0xf]
        %v2566 = vld [vmem:[%s548 + $0x14] sm:$0xf]
        %v2567 = vld [vmem:[%s548 + $0x18] sm:$0xf]
        %v2568 = vld [vmem:[%s548 + $0x1c] sm:$0xf]
        %v2569 = vld [vmem:[%s548 + $0x20] sm:$0xf]
        %v2570 = vld [vmem:[%s548 + $0x24] sm:$0xf]
        %v2571 = vld [vmem:[%s548 + $0x28] sm:$0xf]
        %v2572 = vld [vmem:[%s548 + $0x2c] sm:$0xf]
        %v2573 = vld [vmem:[%s548 + $0x30] sm:$0xf]
        %v2574 = vld [vmem:[%s548 + $0x34] sm:$0xf]
        %v2575 = vld [vmem:[%s548 + $0x38] sm:$0xf]
        %v2576 = vld [vmem:[%s548 + $0x3c] sm:$0xf]
        %v2577 = vld [vmem:[%s548 + $0x40] sm:$0xf]
        %v2578 = vld [vmem:[%s548 + $0x44] sm:$0xf]
        %v2579 = vld [vmem:[%s548 + $0x48] sm:$0xf]
        %v2580 = vld [vmem:[%s548 + $0x4c] sm:$0xf]
        %v2581 = vld [vmem:[%s548 + $0x50] sm:$0xf]
        %v2582 = vld [vmem:[%s548 + $0x54] sm:$0xf]
        %v2583 = vld [vmem:[%s548 + $0x58] sm:$0xf]
        %v2584 = vld [vmem:[%s548 + $0x5c] sm:$0xf]
        %v2585 = vld [vmem:[%s548 + $0x60] sm:$0xf]
        %v2586 = vld [vmem:[%s548 + $0x64] sm:$0xf]
        %v2587 = vld [vmem:[%s548 + $0x68] sm:$0xf]
        %v2588 = vld [vmem:[%s548 + $0x6c] sm:$0xf]
        %v2589 = vld [vmem:[%s548 + $0x70] sm:$0xf]
        %v2590 = vld [vmem:[%s548 + $0x74] sm:$0xf]
        %v2591 = vld [vmem:[%s548 + $0x78] sm:$0xf]
        %v2592 = vld [vmem:[%s548 + $0x7c] sm:$0xf]
        %v2593 = vld [vmem:[%s548 + $0x80] sm:$0xf]
        %v2594 = vld [vmem:[%s548 + $0x84] sm:$0xf]
        %v2595 = vld [vmem:[%s548 + $0x88] sm:$0xf]
        %v2596 = vld [vmem:[%s548 + $0x8c] sm:$0xf]
        %v2597 = vld [vmem:[%s548 + $0x90] sm:$0xf]
        %v2598 = vld [vmem:[%s548 + $0x94] sm:$0xf]
        %v2599 = vld [vmem:[%s548 + $0x98] sm:$0xf]
        %v2600 = vld [vmem:[%s548 + $0x9c] sm:$0xf]
        %v2601 = vld [vmem:[%s548 + $0xa0] sm:$0xf]
        %v2602 = vld [vmem:[%s548 + $0xa4] sm:$0xf]
        %v2603 = vld [vmem:[%s548 + $0xa8] sm:$0xf]
        %v2604 = vld [vmem:[%s548 + $0xac] sm:$0xf]
        %v2605 = vld [vmem:[%s548 + $0xb0] sm:$0xf]
        %v2606 = vld [vmem:[%s548 + $0xb4] sm:$0xf]
        %v2607 = vld [vmem:[%s548 + $0xb8] sm:$0xf]
        %v2608 = vld [vmem:[%s548 + $0xbc] sm:$0xf]
        %v2609 = vld [vmem:[%s548 + $0xc0] sm:$0xf]
        %v2610 = vld [vmem:[%s548 + $0xc4] sm:$0xf]
        %v2611 = vld [vmem:[%s548 + $0xc8] sm:$0xf]
        %v2612 = vld [vmem:[%s548 + $0xcc] sm:$0xf]
        %v2613 = vld [vmem:[%s548 + $0xd0] sm:$0xf]
        %v2614 = vld [vmem:[%s548 + $0xd4] sm:$0xf]
        %v2615 = vld [vmem:[%s548 + $0xd8] sm:$0xf]
        %v2616 = vld [vmem:[%s548 + $0xdc] sm:$0xf]
        %v2617 = vld [vmem:[%s548 + $0xe0] sm:$0xf]
        %v2618 = vld [vmem:[%s548 + $0xe4] sm:$0xf]
        %v2619 = vld [vmem:[%s548 + $0xe8] sm:$0xf]
        %v2620 = vld [vmem:[%s548 + $0xec] sm:$0xf]
        %v2621 = vld [vmem:[%s548 + $0xf0] sm:$0xf]
        %v2622 = vld [vmem:[%s548 + $0xf4] sm:$0xf]
        %v2623 = vld [vmem:[%s548 + $0xf8] sm:$0xf]
        %v2624 = vld [vmem:[%s548 + $0xfc] sm:$0xf]
        %s2625 = scalar_lea.vmem %s7, %s33
        %v2626 = vld [vmem:[%s2625] sm:$0x1]
        %v2627 = vlaneseq
        %v2628 = vshrl.u32 %v2627, 7
        %v2629 = vsub.s32 0, %v2628
        %v2630 = vrot.slane %v2626, %v2629
        %v2695 = vunpack.c.l.b16 %v2561
        %v2696 = vunpack.c.l.b16 %v2562
        %v2697 = vunpack.c.l.b16 %v2563
        %v2698 = vunpack.c.l.b16 %v2564
        %v2699 = vunpack.c.l.b16 %v2565
        %v2700 = vunpack.c.l.b16 %v2566
        %v2701 = vunpack.c.l.b16 %v2567
        %v2702 = vunpack.c.l.b16 %v2568
        %v2703 = vunpack.c.l.b16 %v2569
        %v2704 = vunpack.c.l.b16 %v2570
        %v2705 = vunpack.c.l.b16 %v2571
        %v2706 = vunpack.c.l.b16 %v2572
        %v2707 = vunpack.c.l.b16 %v2573
        %v2708 = vunpack.c.l.b16 %v2574
        %v2709 = vunpack.c.l.b16 %v2575
        %v2710 = vunpack.c.l.b16 %v2576
        %v2711 = vunpack.c.l.b16 %v2577
        %v2712 = vunpack.c.l.b16 %v2578
        %v2713 = vunpack.c.l.b16 %v2579
        %v2714 = vunpack.c.l.b16 %v2580
        %v2715 = vunpack.c.l.b16 %v2581
        %v2716 = vunpack.c.l.b16 %v2582
        %v2717 = vunpack.c.l.b16 %v2583
        %v2718 = vunpack.c.l.b16 %v2584
        %v2719 = vunpack.c.l.b16 %v2585
        %v2720 = vunpack.c.l.b16 %v2586
        %v2721 = vunpack.c.l.b16 %v2587
        %v2722 = vunpack.c.l.b16 %v2588
        %v2723 = vunpack.c.l.b16 %v2589
        %v2724 = vunpack.c.l.b16 %v2590
        %v2725 = vunpack.c.l.b16 %v2591
        %v2726 = vunpack.c.l.b16 %v2592
        %v2727 = vunpack.c.l.b16 %v2593
        %v2728 = vunpack.c.l.b16 %v2594
        %v2729 = vunpack.c.l.b16 %v2595
        %v2730 = vunpack.c.l.b16 %v2596
        %v2731 = vunpack.c.l.b16 %v2597
        %v2732 = vunpack.c.l.b16 %v2598
        %v2733 = vunpack.c.l.b16 %v2599
        %v2734 = vunpack.c.l.b16 %v2600
        %v2735 = vunpack.c.l.b16 %v2601
        %v2736 = vunpack.c.l.b16 %v2602
        %v2737 = vunpack.c.l.b16 %v2603
        %v2738 = vunpack.c.l.b16 %v2604
        %v2739 = vunpack.c.l.b16 %v2605
        %v2740 = vunpack.c.l.b16 %v2606
        %v2741 = vunpack.c.l.b16 %v2607
        %v2742 = vunpack.c.l.b16 %v2608
        %v2743 = vunpack.c.l.b16 %v2609
        %v2744 = vunpack.c.l.b16 %v2610
        %v2745 = vunpack.c.l.b16 %v2611
        %v2746 = vunpack.c.l.b16 %v2612
        %v2747 = vunpack.c.l.b16 %v2613
        %v2748 = vunpack.c.l.b16 %v2614
        %v2749 = vunpack.c.l.b16 %v2615
        %v2750 = vunpack.c.l.b16 %v2616
        %v2751 = vunpack.c.l.b16 %v2617
        %v2752 = vunpack.c.l.b16 %v2618
        %v2753 = vunpack.c.l.b16 %v2619
        %v2754 = vunpack.c.l.b16 %v2620
        %v2755 = vunpack.c.l.b16 %v2621
        %v2756 = vunpack.c.l.b16 %v2622
        %v2757 = vunpack.c.l.b16 %v2623
        %v2758 = vunpack.c.l.b16 %v2624
        %v2759 = vpack.c.b16 %v2696, %v2695
        %v2760 = vpack.c.b16 %v2698, %v2697
        %v2761 = vpack.c.b16 %v2700, %v2699
        %v2762 = vpack.c.b16 %v2702, %v2701
        %v2763 = vpack.c.b16 %v2704, %v2703
        %v2764 = vpack.c.b16 %v2706, %v2705
        %v2765 = vpack.c.b16 %v2708, %v2707
        %v2766 = vpack.c.b16 %v2710, %v2709
        %v2767 = vpack.c.b16 %v2712, %v2711
        %v2768 = vpack.c.b16 %v2714, %v2713
        %v2769 = vpack.c.b16 %v2716, %v2715
        %v2770 = vpack.c.b16 %v2718, %v2717
        %v2771 = vpack.c.b16 %v2720, %v2719
        %v2772 = vpack.c.b16 %v2722, %v2721
        %v2773 = vpack.c.b16 %v2724, %v2723
        %v2774 = vpack.c.b16 %v2726, %v2725
        %v2775 = vpack.c.b16 %v2728, %v2727
        %v2776 = vpack.c.b16 %v2730, %v2729
        %v2777 = vpack.c.b16 %v2732, %v2731
        %v2778 = vpack.c.b16 %v2734, %v2733
        %v2779 = vpack.c.b16 %v2736, %v2735
        %v2780 = vpack.c.b16 %v2738, %v2737
        %v2781 = vpack.c.b16 %v2740, %v2739
        %v2782 = vpack.c.b16 %v2742, %v2741
        %v2783 = vpack.c.b16 %v2744, %v2743
        %v2784 = vpack.c.b16 %v2746, %v2745
        %v2785 = vpack.c.b16 %v2748, %v2747
        %v2786 = vpack.c.b16 %v2750, %v2749
        %v2787 = vpack.c.b16 %v2752, %v2751
        %v2788 = vpack.c.b16 %v2754, %v2753
        %v2789 = vpack.c.b16 %v2756, %v2755
        %v2790 = vpack.c.b16 %v2758, %v2757
        %2823 = vmatprep.subr.bf16.mxu0 0
        %2824 = vmatpush1.bf16.msra.mxu0 %v2766
        %2825 = vmatprep.subr.bf16.mxu0 0
        %2826 = vmatpush1.bf16.msra.mxu0 %v2765
        %2827 = vmatprep.subr.bf16.mxu0 0
        %2828 = vmatpush1.bf16.msra.mxu0 %v2764
        %2829 = vmatprep.subr.bf16.mxu0 0
        %2830 = vmatpush1.bf16.msra.mxu0 %v2763
        %2831 = vmatprep.subr.bf16.mxu0 0
        %2832 = vmatpush1.bf16.msra.mxu0 %v2762
        %2833 = vmatprep.subr.bf16.mxu0 0
        %2834 = vmatpush1.bf16.msra.mxu0 %v2761
        %2835 = vmatprep.subr.bf16.mxu0 0
        %2836 = vmatpush1.bf16.msra.mxu0 %v2760
        %2837 = vmatprep.subr.bf16.mxu0 0
        %2838 = vmatpush1.bf16.msra.mxu0 %v2759
        %2839 = vmatprep.subr.bf16.mxu0 0
        %2840 = vmatpush2.bf16.msra.mxu0 %v2774
        %2841 = vmatprep.subr.bf16.mxu0 0
        %2842 = vmatpush2.bf16.msra.mxu0 %v2773
        %2843 = vmatprep.subr.bf16.mxu0 0
        %2844 = vmatpush2.bf16.msra.mxu0 %v2772
        %2845 = vmatprep.subr.bf16.mxu0 0
        %2846 = vmatpush2.bf16.msra.mxu0 %v2771
        %2847 = vmatprep.subr.bf16.mxu0 0
        %2848 = vmatpush2.bf16.msra.mxu0 %v2770
        %2849 = vmatprep.subr.bf16.mxu0 0
        %2850 = vmatpush2.bf16.msra.mxu0 %v2769
        %2851 = vmatprep.subr.bf16.mxu0 0
        %2852 = vmatpush2.bf16.msra.mxu0 %v2768
        %2853 = vmatprep.subr.bf16.mxu0 0
        %2854 = vmatpush2.bf16.msra.mxu0 %v2767
        %2855 = vmatprep.mubr.bf16.mxu0 %v2554
        %2856 = vmatmul.mubr.bf16.gmra.mxu0 %v2553
        %v2857 = vpop.f32.mrf.mxu0
        %v2858 = vadd.f32 %v2630, %v2857
        %v2859 = vpop.f32.mrf.mxu0
        %v2860 = vpop.f32.mrf.mxu0
        %v2861 = vadd.f32 %v2630, %v2860
        %v2862 = vpop.f32.mrf.mxu0
        %2863 = vmatprep.mubr.bf16.mxu0 %v2558
        %2864 = vmatmul.mubr.bf16.gmra.mxu0 %v2557
        %v2865 = vpop.f32.mrf.mxu0
        %v2866 = vadd.f32 %v2630, %v2865
        %v2867 = vpop.f32.mrf.mxu0
        %v2868 = vpop.f32.mrf.mxu0
        %v2869 = vadd.f32 %v2630, %v2868
        %v2870 = vpop.f32.mrf.mxu0
        %2871 = vdwg.mxu0
        %2872 = vmatprep.subr.bf16.mxu0 0
        %2873 = vmatpush1.bf16.msra.mxu0 %v2782
        %2874 = vmatprep.subr.bf16.mxu0 0
        %2875 = vmatpush1.bf16.msra.mxu0 %v2781
        %2876 = vmatprep.subr.bf16.mxu0 0
        %2877 = vmatpush1.bf16.msra.mxu0 %v2780
        %2878 = vmatprep.subr.bf16.mxu0 0
        %2879 = vmatpush1.bf16.msra.mxu0 %v2779
        %2880 = vmatprep.subr.bf16.mxu0 0
        %2881 = vmatpush1.bf16.msra.mxu0 %v2778
        %2882 = vmatprep.subr.bf16.mxu0 0
        %2883 = vmatpush1.bf16.msra.mxu0 %v2777
        %2884 = vmatprep.subr.bf16.mxu0 0
        %2885 = vmatpush1.bf16.msra.mxu0 %v2776
        %2886 = vmatprep.subr.bf16.mxu0 0
        %2887 = vmatpush1.bf16.msra.mxu0 %v2775
        %2888 = vmatprep.subr.bf16.mxu0 0
        %2889 = vmatpush2.bf16.msra.mxu0 %v2790
        %2890 = vmatprep.subr.bf16.mxu0 0
        %2891 = vmatpush2.bf16.msra.mxu0 %v2789
        %2892 = vmatprep.subr.bf16.mxu0 0
        %2893 = vmatpush2.bf16.msra.mxu0 %v2788
        %2894 = vmatprep.subr.bf16.mxu0 0
        %2895 = vmatpush2.bf16.msra.mxu0 %v2787
        %2896 = vmatprep.subr.bf16.mxu0 0
        %2897 = vmatpush2.bf16.msra.mxu0 %v2786
        %2898 = vmatprep.subr.bf16.mxu0 0
        %2899 = vmatpush2.bf16.msra.mxu0 %v2785
        %2900 = vmatprep.subr.bf16.mxu0 0
        %2901 = vmatpush2.bf16.msra.mxu0 %v2784
        %2902 = vmatprep.subr.bf16.mxu0 0
        %2903 = vmatpush2.bf16.msra.mxu0 %v2783
        %2904 = vmatprep.mubr.bf16.mxu0 %v2556
        %2905 = vmatmul.mubr.bf16.gmra.mxu0 %v2555
        %v2906 = vpop.f32.mrf.mxu0
        %v2907 = vadd.f32 %v2858, %v2906
        %v2908 = vpop.f32.mrf.mxu0
        %v2909 = vpop.f32.mrf.mxu0
        %v2910 = vadd.f32 %v2861, %v2909
        %v2911 = vpop.f32.mrf.mxu0
        %2912 = vmatprep.mubr.bf16.mxu0 %v2560
        %2913 = vmatmul.mubr.bf16.gmra.mxu0 %v2559
        %v2914 = vpop.f32.mrf.mxu0
        %v2915 = vadd.f32 %v2866, %v2914
        %v2916 = vpop.f32.mrf.mxu0
        %v2917 = vpop.f32.mrf.mxu0
        %v2918 = vadd.f32 %v2869, %v2917
        %v2919 = vpop.f32.mrf.mxu0
        %2920 = vdwg.mxu0
        %v2921 = vadd.f32 %v2139, %v2907
        %v2922 = vadd.f32 %v2140, %v2910
        %v2923 = vadd.f32 %v2141, %v2915
        %v2924 = vadd.f32 %v2142, %v2918
        %2925 = vst [vmem:[#allocation17] sm:$0xff] %v2921
        %2926 = vst [vmem:[#allocation17 + $0x8] sm:$0xff] %v2922
        %2927 = vst [vmem:[#allocation17 + $0x10] sm:$0xff] %v2923
        %2928 = vst [vmem:[#allocation17 + $0x18] sm:$0xff] %v2924
        // Predicated region
        $region109: #{tpu_custom_call.1} parent=67 // pred_check
          %p2929 = pneg %p318
        $region110: #{tpu_custom_call.1} parent=67 // pred_check_branch
          %2931 = sbr.rel (%p2929) target = $region112
        $region111: #{tpu_custom_call.1} parent=67 // pred_region
          %s2933 = ssub.s32 512, 512
          %2934 = vsyncadd [#allocation4], %s2933
          %s2935 = sshll.u32 [#allocation17], 4
          %s2936 = int_to_ptr.vmem [resolvable:$true] %s2935
          %2941 = dma.vmem_to_hbm [thread:$0]  %s2936, 512, %s12, [#allocation4], 128, 128, 8
        $region112: #{tpu_custom_call.1} parent=67 // pred_fallthru
          _
        // Predicated region
        $region113: #{tpu_custom_call.1} parent=67 // pred_check
          %p2942 = pneg %p318
        $region114: #{tpu_custom_call.1} parent=67 // pred_check_branch
          %2944 = sbr.rel (%p2942) target = $region116
        $region115: #{tpu_custom_call.1} parent=67 // pred_region
          %2945 = dma.done [#allocation4], 512
        $region116: #{tpu_custom_call.1} parent=67 // pred_fallthru
          _
      $region68: #{tpu_custom_call.1} parent=5 // pred_fallthru
        _
      %p2946 = scmp.le.s32.totalorder 2, %s28
      // Predicated region
      $region117: #{tpu_custom_call.1} parent=5 // pred_check
        %p2947 = pneg %p2946
      $region118: #{tpu_custom_call.1} parent=5 // pred_check_branch
        %2949 = sbr.rel (%p2947) target = $region120
      $region119: #{tpu_custom_call.1} parent=5 // pred_region
        %s2950 = ssub.s32 %s28, 2
      $region120: #{tpu_custom_call.1} parent=5 // pred_fallthru
        _
    $region6: #{tpu_custom_call.1} parent=1 // loop_footer
      %s32 = sadd.s32 1, %s28
    $region7: #{tpu_custom_call.1} parent=1 // loop_footer_branch
      %27 = sbr.rel target = $region3
    $region8: #{tpu_custom_call.1} parent=1 // loop_exit
      _
    %2951 = vsyncpa [#allocation3], 1
    %s2952 = scalar_lea.sflag [#allocation3], 1
    %2953 = vsyncpa %s2952, 1
    %2954 = vsyncpa [#allocation6], 1
    %2955 = vsyncpa [#allocation9], 1
    %2956 = vsyncpa [#allocation12], 1
    %s2957 = scalar_lea.sflag [#allocation12], 1
    %2958 = vsyncpa %s2957, 1
    %2959 = vsyncpa [#allocation15], 1
    %s2960 = scalar_lea.sflag [#allocation15], 1
    %2961 = vsyncpa %s2960, 1
    %2962 = vsyncpa [#allocation4], 1
    %s2963 = scalar_lea.sflag [#allocation4], 1
    %2964 = vsyncpa %s2963, 1

</llo_original>
